<compile_context>
chip_gen: v6e
topology: v6e:2x2x1
jax: 0.10.0
libtpu: 0.0.40
codegen_flags: <defaults>
</compile_context>

<pallas_src>
import jax
import jax.numpy as jnp
from jax.experimental import pallas as pl
from jax.experimental.pallas import tpu as pltpu

# ----------------------------- hyper parameters -----------------------------
PAD = 0              # Offsets.PAD
VSZ = 50             # char vocab size
DSZ = 16             # char embedding dim (embed.output_dim == input_sz)
D_MODEL = 32         # wsz
NUM_HEADS = 2
D_K = D_MODEL // NUM_HEADS
RPR_K = 2            # relative position window
D_FF = 4 * D_MODEL
LN_EPS = 1e-6
NEG_INF = -1e9
N_TILE = 256         # word-rows per grid step (multiple of 8)


def _layer_norm(x, g, b):
    # torch.nn.LayerNorm over the last dim (biased variance), eps=1e-6
    mu = jnp.mean(x, axis=-1, keepdims=True)
    var = jnp.mean((x - mu) ** 2, axis=-1, keepdims=True)
    return (x - mu) * jax.lax.rsqrt(var + LN_EPS) * g + b


# --------------------------------- kernel -----------------------------------
def char_transformer_kernel(
    emb_ref, len_ref, rk_ref, rv_ref,
    wqkv_ref, bqkv_ref,
    ln1g_ref, ln1b_ref,
    wo_ref, bo_ref,
    ln2g_ref, ln2b_ref,
    w1_ref, b1_ref, w2_ref, b2_ref,
    lnfg_ref, lnfb_ref,
    out_ref,
):
    NT, W, D = emb_ref.shape
    H = NUM_HEADS
    DK = D // H
    NTW = NT * W
    HNT = H * NT
    bf16 = jnp.bfloat16

    # embedding block already carries the folded input projection (-> d_model)
    x2 = emb_ref[...].reshape(NTW, D)

    # --------------- transformer encoder layer (pre-LN, reassignment style) ---
    y2 = _layer_norm(x2, ln1g_ref[...], ln1b_ref[...])               # x = ln1(x)

    # fused Q|K|V projection: one (NTW, D) @ (D, 3D) GEMM (bf16 in, f32 acc)
    qkv2 = jnp.dot(y2.astype(bf16), wqkv_ref[...],
                   preferred_element_type=jnp.float32) + bqkv_ref[...]

    # head-batched layout: batch axis = (head, word-row), size H*NT
    def split_heads(x2d):
        x3 = x2d.reshape(NT, W, D)
        return jnp.concatenate(
            [x3[:, :, h * DK:(h + 1) * DK] for h in range(H)], axis=0
        ).astype(bf16)                                               # (H*NT, W, DK)

    q_b = split_heads(qkv2[:, 0 * D:1 * D])
    k_b = split_heads(qkv2[:, 1 * D:2 * D])
    v_b = split_heads(qkv2[:, 2 * D:3 * D])

    # content-content scores (scale=False -> no 1/sqrt(d_k))
    s = jnp.einsum('bqd,bkd->bqk', q_b, k_b,
                   preferred_element_type=jnp.float32)               # (HNT, W, W)
    # content-position scores via a block-diagonal rpr-key GEMM on the MXU
    # (replaces the (HNT, W, W, DK) broadcast-and-reduce temporaries)
    s = s + jnp.dot(q_b.reshape(HNT, W * DK), rk_ref[...],
                    preferred_element_type=jnp.float32).reshape(HNT, W, W)

    # length mask rebuilt in-kernel from int32 lengths (masks the key axis)
    lens_b = jnp.concatenate([len_ref[...]] * H, axis=0)             # (HNT, 1)
    valid = jax.lax.broadcasted_iota(jnp.int32, (HNT, W), 1) < lens_b
    s = jnp.where(valid[:, None, :], s, NEG_INF)

    # softmax: exp on the EUP, approximate reciprocal instead of a VALU divide
    m = jnp.max(s, axis=-1, keepdims=True)
    e = jnp.exp(s - m)
    a = e * pl.reciprocal(jnp.sum(e, axis=-1, keepdims=True), approx=True)
    a_b = a.astype(bf16)

    # attention output: content values + block-diagonal rpr-value GEMM
    oh = jnp.einsum('bqk,bkd->bqd', a_b, v_b,
                    preferred_element_type=jnp.float32)              # (HNT, W, DK)
    oh = oh + jnp.dot(a_b.reshape(HNT, W * W), rv_ref[...],
                      preferred_element_type=jnp.float32).reshape(HNT, W, DK)

    # merge heads + output projection: per-head GEMMs against wo row blocks
    # (avoids a sub-128-lane concat of the head outputs)
    wo = wo_ref[...]
    attn2 = jnp.dot(oh[0:NT].reshape(NTW, DK).astype(bf16), wo[0:DK, :],
                    preferred_element_type=jnp.float32)
    for h in range(1, H):
        attn2 = attn2 + jnp.dot(
            oh[h * NT:(h + 1) * NT].reshape(NTW, DK).astype(bf16),
            wo[h * DK:(h + 1) * DK, :], preferred_element_type=jnp.float32)
    attn2 = attn2 + bo_ref[...]

    x2 = y2 + attn2                                      # residual (dropout = id)
    y2 = _layer_norm(x2, ln2g_ref[...], ln2b_ref[...])   # x = ln2(x)
    h2 = jnp.dot(y2.astype(bf16), w1_ref[...],
                 preferred_element_type=jnp.float32) + b1_ref[...]
    h2 = jnp.maximum(h2, 0.0)                            # relu
    h2 = jnp.dot(h2.astype(bf16), w2_ref[...],
                 preferred_element_type=jnp.float32) + b2_ref[...]
    x2 = y2 + h2                                         # residual (dropout = id)

    # stack-level final LayerNorm (layer_norms_after=False)
    x2 = _layer_norm(x2, lnfg_ref[...], lnfb_ref[...])

    # pooled = max over char positions (dim=-2), including padded positions
    # (matches torch.max over the full axis, no masking)
    out_ref[...] = jnp.max(x2.reshape(NT, W, D), axis=1)


# -------------------------------- wrapper ------------------------------------
def char_transformer_embeddings(xch, params, n_tile=N_TILE):
    B, T, W = xch.shape
    N = B * T
    flat = xch.reshape(N, W)

    # ----- glue (gathers) in plain JAX ---------------------------------------
    # fold the input projection into the embedding table:
    #   lookup(x) @ wp + bp  ==  (embed @ wp + bp)[x]   (PAD row of embed is 0)
    table = jnp.dot(params['embed'], params['wp']) + params['bp']     # (VSZ, D)
    emb = jnp.take(table, flat, axis=0).astype(jnp.float32)           # (N, W, D)

    lengths = jnp.sum(flat != PAD, axis=1).astype(jnp.int32)[:, None]  # (N, 1)

    # relative-position tables -> block-diagonal GEMM operands
    pos = jnp.arange(W)
    edges = jnp.clip(pos[None, :] - pos[:, None] + RPR_K, 0, 2 * RPR_K)
    rprk = jnp.take(params['rpr_key'], edges, axis=0)                  # (W, W, DK)
    rprv = jnp.take(params['rpr_value'], edges, axis=0)                # (W, W, DK)
    eye = jnp.eye(W, dtype=jnp.float32)
    # Rk[t*DK + d, t*W + j] = rprk[t, j, d]  (zero off the block diagonal)
    rk_blk = jnp.einsum('tjd,ts->tdsj', rprk, eye).reshape(W * D_K, W * W)
    # Rv[t*W + j, t*DK + d] = rprv[t, j, d]
    rv_blk = jnp.einsum('tjd,ts->tjsd', rprv, eye).reshape(W * W, W * D_K)

    # fused QKV weight / bias
    wqkv = jnp.concatenate([params['wq'], params['wk'], params['wv']], axis=1)
    bqkv = jnp.concatenate([params['bq'], params['bk'], params['bv']], axis=1)

    # ----- tiling over N ------------------------------------------------------
    nt = max(8, min(n_tile, ((N + 7) // 8) * 8))         # multiple of 8
    n_pad = -(-N // nt) * nt
    if n_pad != N:                                       # padded rows: length 0
        emb = jnp.pad(emb, ((0, n_pad - N), (0, 0), (0, 0)))
        lengths = jnp.pad(lengths, ((0, n_pad - N), (0, 0)))
    grid = (n_pad // nt,)

    bf16 = jnp.bfloat16
    weights = [
        rk_blk.astype(bf16), rv_blk.astype(bf16),
        wqkv.astype(bf16), bqkv,
        params['ln1_g'], params['ln1_b'],
        params['wo'].astype(bf16), params['bo'],
        params['ln2_g'], params['ln2_b'],
        params['w1'].astype(bf16), params['b1'],
        params['w2'].astype(bf16), params['b2'],
        params['lnf_g'], params['lnf_b'],
    ]

    def resident(w):   # full-extent block, constant index -> stays in VMEM
        nd = w.ndim
        return pl.BlockSpec(w.shape, lambda i: (0,) * nd)

    in_specs = [
        pl.BlockSpec((nt, W, D_MODEL), lambda i: (i, 0, 0)),   # emb (tiled over N)
        pl.BlockSpec((nt, 1), lambda i: (i, 0)),               # lengths
    ] + [resident(w) for w in weights]
    out_spec = pl.BlockSpec((nt, D_MODEL), lambda i: (i, 0))

    flops_per_row = (
        2 * W * D_MODEL * 3 * D_MODEL                      # fused QKV GEMM
        + NUM_HEADS * 2 * 2 * W * W * D_K                  # q@k^T and a@v
        + NUM_HEADS * 2 * 2 * (W * D_K) * (W * W)          # block-diag rpr GEMMs
        + 2 * W * D_MODEL * D_MODEL                        # output projection
        + 2 * 2 * W * D_MODEL * D_FF                       # FFN
    )
    cost = pl.CostEstimate(
        flops=int(flops_per_row) * int(n_pad),
        transcendentals=int(n_pad) * NUM_HEADS * W * W,
        bytes_accessed=int(emb.size) * 4 + int(lengths.size) * 4
        + int(n_pad) * D_MODEL * 4
        + sum(int(w.size) * int(w.dtype.itemsize) for w in weights),
    )

    pooled = pl.pallas_call(
        char_transformer_kernel,
        out_shape=jax.ShapeDtypeStruct((n_pad, D_MODEL), jnp.float32),
        grid=grid,
        in_specs=in_specs,
        out_specs=out_spec,
        compiler_params=pltpu.CompilerParams(
            dimension_semantics=("parallel",),      # shards N across TCs on v7x
            vmem_limit_bytes=48 * 1024 * 1024,      # fits v5e/v6e/v7x scoped VMEM
        ),
        cost_estimate=cost,
    )(emb, lengths, *weights)

    return pooled[:N].reshape(B, T, D_MODEL)


# ------------------------- deterministic parameter init ----------------------
def init_params(key):
    ks = jax.random.split(key, 16)

    def lin(k, fan_in, shape):
        return jax.random.normal(k, shape, jnp.float32) / jnp.sqrt(float(fan_in))

    embed = jax.random.normal(ks[0], (VSZ, DSZ), jnp.float32) * 0.1
    embed = embed.at[PAD].set(0.0)            # nn.Embedding padding_idx row

    ones = lambda: jnp.ones((1, D_MODEL), jnp.float32)
    zeros_d = lambda: jnp.zeros((1, D_MODEL), jnp.float32)

    return dict(
        embed=embed,
        rpr_key=jax.random.normal(ks[1], (2 * RPR_K + 1, D_K), jnp.float32) * 0.1,
        rpr_value=jax.random.normal(ks[2], (2 * RPR_K + 1, D_K), jnp.float32) * 0.1,
        wp=lin(ks[3], DSZ, (DSZ, D_MODEL)), bp=zeros_d(),
        ln1_g=ones(), ln1_b=zeros_d(),
        wq=lin(ks[4], D_MODEL, (D_MODEL, D_MODEL)), bq=zeros_d(),
        wk=lin(ks[5], D_MODEL, (D_MODEL, D_MODEL)), bk=zeros_d(),
        wv=lin(ks[6], D_MODEL, (D_MODEL, D_MODEL)), bv=zeros_d(),
        wo=lin(ks[7], D_MODEL, (D_MODEL, D_MODEL)), bo=zeros_d(),
        ln2_g=ones(), ln2_b=zeros_d(),
        w1=lin(ks[8], D_MODEL, (D_MODEL, D_FF)), b1=jnp.zeros((1, D_FF), jnp.float32),
        w2=lin(ks[9], D_FF, (D_FF, D_MODEL)), b2=zeros_d(),
        lnf_g=ones(), lnf_b=zeros_d(),
    )


if __name__ == "__main__":
    key = jax.random.PRNGKey(0)
    pkey, ckey, lkey = jax.random.split(key, 3)
    params = init_params(pkey)

    B, T, W = 2, 4, 8
    # char ids in [1, VSZ), then pad the tail of each word so lengths vary
    chars = jax.random.randint(ckey, (B, T, W), 1, VSZ, dtype=jnp.int32)
    lens = jax.random.randint(lkey, (B, T), 1, W + 1, dtype=jnp.int32)
    xch = jnp.where(jnp.arange(W)[None, None, :] < lens[:, :, None], chars, PAD)

    out = char_transformer_embeddings(xch, params)
    jax.block_until_ready(out)
    assert out.shape == (B, T, D_MODEL) and out.dtype == jnp.float32
    print("KERNEL_OK")
</pallas_src>

<mosaic_0001>
module attributes {stable_mosaic.version = 11 : i64} {
  func.func @char_transformer_kernel(%arg0: i32, %arg1: memref<8x8x32xf32, #tpu.memory_space<vmem>>, %arg2: memref<8x1xi32, #tpu.memory_space<vmem>>, %arg3: memref<128x64xbf16, #tpu.memory_space<vmem>>, %arg4: memref<64x128xbf16, #tpu.memory_space<vmem>>, %arg5: memref<32x96xbf16, #tpu.memory_space<vmem>>, %arg6: memref<1x96xf32, #tpu.memory_space<vmem>>, %arg7: memref<1x32xf32, #tpu.memory_space<vmem>>, %arg8: memref<1x32xf32, #tpu.memory_space<vmem>>, %arg9: memref<32x32xbf16, #tpu.memory_space<vmem>>, %arg10: memref<1x32xf32, #tpu.memory_space<vmem>>, %arg11: memref<1x32xf32, #tpu.memory_space<vmem>>, %arg12: memref<1x32xf32, #tpu.memory_space<vmem>>, %arg13: memref<32x128xbf16, #tpu.memory_space<vmem>>, %arg14: memref<1x128xf32, #tpu.memory_space<vmem>>, %arg15: memref<128x32xbf16, #tpu.memory_space<vmem>>, %arg16: memref<1x32xf32, #tpu.memory_space<vmem>>, %arg17: memref<1x32xf32, #tpu.memory_space<vmem>>, %arg18: memref<1x32xf32, #tpu.memory_space<vmem>>, %arg19: memref<8x32xf32, #tpu.memory_space<vmem>>) attributes {dimension_semantics = [#tpu.dimension_semantics<parallel>], iteration_bounds = array<i64: 1>, scalar_prefetch = 0 : i64, scratch_operands = 0 : i64, tpu.core_type = #tpu.core_type<tc>, window_params = [{transform_indices = @transform_0, window_bounds = array<i64: 8, 8, 32>}, {transform_indices = @transform_1, window_bounds = array<i64: 8, 1>}, {pipeline_mode = #tpu.pipeline_mode<synchronous>, transform_indices = @transform_2, window_bounds = array<i64: 128, 64>}, {pipeline_mode = #tpu.pipeline_mode<synchronous>, transform_indices = @transform_3, window_bounds = array<i64: 64, 128>}, {pipeline_mode = #tpu.pipeline_mode<synchronous>, transform_indices = @transform_4, window_bounds = array<i64: 32, 96>}, {pipeline_mode = #tpu.pipeline_mode<synchronous>, transform_indices = @transform_5, window_bounds = array<i64: 1, 96>}, {pipeline_mode = #tpu.pipeline_mode<synchronous>, transform_indices = @transform_6, window_bounds = array<i64: 1, 32>}, {pipeline_mode = #tpu.pipeline_mode<synchronous>, transform_indices = @transform_7, window_bounds = array<i64: 1, 32>}, {pipeline_mode = #tpu.pipeline_mode<synchronous>, transform_indices = @transform_8, window_bounds = array<i64: 32, 32>}, {pipeline_mode = #tpu.pipeline_mode<synchronous>, transform_indices = @transform_9, window_bounds = array<i64: 1, 32>}, {pipeline_mode = #tpu.pipeline_mode<synchronous>, transform_indices = @transform_10, window_bounds = array<i64: 1, 32>}, {pipeline_mode = #tpu.pipeline_mode<synchronous>, transform_indices = @transform_11, window_bounds = array<i64: 1, 32>}, {pipeline_mode = #tpu.pipeline_mode<synchronous>, transform_indices = @transform_12, window_bounds = array<i64: 32, 128>}, {pipeline_mode = #tpu.pipeline_mode<synchronous>, transform_indices = @transform_13, window_bounds = array<i64: 1, 128>}, {pipeline_mode = #tpu.pipeline_mode<synchronous>, transform_indices = @transform_14, window_bounds = array<i64: 128, 32>}, {pipeline_mode = #tpu.pipeline_mode<synchronous>, transform_indices = @transform_15, window_bounds = array<i64: 1, 32>}, {pipeline_mode = #tpu.pipeline_mode<synchronous>, transform_indices = @transform_16, window_bounds = array<i64: 1, 32>}, {pipeline_mode = #tpu.pipeline_mode<synchronous>, transform_indices = @transform_17, window_bounds = array<i64: 1, 32>}, {transform_indices = @transform_18, window_bounds = array<i64: 8, 32>}]} {
    %c0 = arith.constant 0 : index
    %c0_0 = arith.constant 0 : index
    %c0_1 = arith.constant 0 : index
    %0 = vector.load %arg1[%c0, %c0_0, %c0_1] : memref<8x8x32xf32, #tpu.memory_space<vmem>>, vector<8x8x32xf32>
    %1 = vector.shape_cast %0 : vector<8x8x32xf32> to vector<64x32xf32>
    %c0_2 = arith.constant 0 : index
    %c0_3 = arith.constant 0 : index
    %2 = vector.load %arg7[%c0_2, %c0_3] : memref<1x32xf32, #tpu.memory_space<vmem>>, vector<1x32xf32>
    %c0_4 = arith.constant 0 : index
    %c0_5 = arith.constant 0 : index
    %3 = vector.load %arg8[%c0_4, %c0_5] : memref<1x32xf32, #tpu.memory_space<vmem>>, vector<1x32xf32>
    %cst = arith.constant dense<0.000000e+00> : vector<64xf32>
    %4 = vector.multi_reduction <add>, %1, %cst [1] : vector<64x32xf32> to vector<64xf32>
    %5 = vector.shape_cast %4 : vector<64xf32> to vector<64x1xf32>
    %cst_6 = arith.constant 3.200000e+01 : f32
    %6 = vector.broadcast %cst_6 : f32 to vector<64x1xf32>
    %7 = arith.divf %5, %6 : vector<64x1xf32>
    %8 = vector.broadcast %7 : vector<64x1xf32> to vector<64x32xf32>
    %9 = arith.subf %1, %8 : vector<64x32xf32>
    %10 = arith.mulf %9, %9 : vector<64x32xf32>
    %cst_7 = arith.constant dense<0.000000e+00> : vector<64xf32>
    %11 = vector.multi_reduction <add>, %10, %cst_7 [1] : vector<64x32xf32> to vector<64xf32>
    %12 = vector.shape_cast %11 : vector<64xf32> to vector<64x1xf32>
    %cst_8 = arith.constant 3.200000e+01 : f32
    %13 = vector.broadcast %cst_8 : f32 to vector<64x1xf32>
    %14 = arith.divf %12, %13 : vector<64x1xf32>
    %15 = vector.broadcast %7 : vector<64x1xf32> to vector<64x32xf32>
    %16 = arith.subf %1, %15 : vector<64x32xf32>
    %cst_9 = arith.constant 9.99999997E-7 : f32
    %17 = vector.broadcast %cst_9 : f32 to vector<64x1xf32>
    %18 = arith.addf %14, %17 : vector<64x1xf32>
    %19 = math.rsqrt %18 : vector<64x1xf32>
    %20 = vector.broadcast %19 : vector<64x1xf32> to vector<64x32xf32>
    %21 = arith.mulf %16, %20 : vector<64x32xf32>
    %22 = vector.broadcast %2 : vector<1x32xf32> to vector<64x32xf32>
    %23 = arith.mulf %21, %22 : vector<64x32xf32>
    %24 = vector.broadcast %3 : vector<1x32xf32> to vector<64x32xf32>
    %25 = arith.addf %23, %24 : vector<64x32xf32>
    %26 = arith.truncf %25 : vector<64x32xf32> to vector<64x32xbf16>
    %c0_10 = arith.constant 0 : index
    %c0_11 = arith.constant 0 : index
    %27 = vector.load %arg5[%c0_10, %c0_11] : memref<32x96xbf16, #tpu.memory_space<vmem>>, vector<32x96xbf16>
    %cst_12 = arith.constant dense<0.000000e+00> : vector<64x96xf32>
    %28 = tpu.matmul %26, %27, %cst_12 {dimension_numbers = #tpu.dot_dimension_numbers<[1], [0], [0], [1], [0, 0, 1, 1], [], []>} : vector<64x32xbf16>, vector<32x96xbf16>, vector<64x96xf32> -> vector<64x96xf32>
    %c0_13 = arith.constant 0 : index
    %c0_14 = arith.constant 0 : index
    %29 = vector.load %arg6[%c0_13, %c0_14] : memref<1x96xf32, #tpu.memory_space<vmem>>, vector<1x96xf32>
    %30 = vector.broadcast %29 : vector<1x96xf32> to vector<64x96xf32>
    %31 = arith.addf %28, %30 : vector<64x96xf32>
    %32 = vector.extract_strided_slice %31 {offsets = [0, 0], sizes = [64, 32], strides = [1, 1]} : vector<64x96xf32> to vector<64x32xf32>
    %33 = vector.shape_cast %32 : vector<64x32xf32> to vector<8x8x32xf32>
    %34 = vector.extract_strided_slice %33 {offsets = [0, 0, 0], sizes = [8, 8, 16], strides = [1, 1, 1]} : vector<8x8x32xf32> to vector<8x8x16xf32>
    %35 = vector.extract_strided_slice %33 {offsets = [0, 0, 16], sizes = [8, 8, 16], strides = [1, 1, 1]} : vector<8x8x32xf32> to vector<8x8x16xf32>
    %36 = tpu.concatenate %34, %35 in 0 : vector<8x8x16xf32>, vector<8x8x16xf32> -> vector<16x8x16xf32>
    %37 = arith.truncf %36 : vector<16x8x16xf32> to vector<16x8x16xbf16>
    %38 = vector.extract_strided_slice %31 {offsets = [0, 32], sizes = [64, 32], strides = [1, 1]} : vector<64x96xf32> to vector<64x32xf32>
    %39 = vector.shape_cast %38 : vector<64x32xf32> to vector<8x8x32xf32>
    %40 = vector.extract_strided_slice %39 {offsets = [0, 0, 0], sizes = [8, 8, 16], strides = [1, 1, 1]} : vector<8x8x32xf32> to vector<8x8x16xf32>
    %41 = vector.extract_strided_slice %39 {offsets = [0, 0, 16], sizes = [8, 8, 16], strides = [1, 1, 1]} : vector<8x8x32xf32> to vector<8x8x16xf32>
    %42 = tpu.concatenate %40, %41 in 0 : vector<8x8x16xf32>, vector<8x8x16xf32> -> vector<16x8x16xf32>
    %43 = arith.truncf %42 : vector<16x8x16xf32> to vector<16x8x16xbf16>
    %44 = vector.extract_strided_slice %31 {offsets = [0, 64], sizes = [64, 32], strides = [1, 1]} : vector<64x96xf32> to vector<64x32xf32>
    %45 = vector.shape_cast %44 : vector<64x32xf32> to vector<8x8x32xf32>
    %46 = vector.extract_strided_slice %45 {offsets = [0, 0, 0], sizes = [8, 8, 16], strides = [1, 1, 1]} : vector<8x8x32xf32> to vector<8x8x16xf32>
    %47 = vector.extract_strided_slice %45 {offsets = [0, 0, 16], sizes = [8, 8, 16], strides = [1, 1, 1]} : vector<8x8x32xf32> to vector<8x8x16xf32>
    %48 = tpu.concatenate %46, %47 in 0 : vector<8x8x16xf32>, vector<8x8x16xf32> -> vector<16x8x16xf32>
    %49 = arith.truncf %48 : vector<16x8x16xf32> to vector<16x8x16xbf16>
    "tpu.trace_start"() <{level = 10 : i32, message = "bqd,bkd->bqk"}> : () -> ()
    %cst_15 = arith.constant dense<0.000000e+00> : vector<16x8x8xf32>
    %50 = tpu.matmul %37, %43, %cst_15 {dimension_numbers = #tpu.dot_dimension_numbers<[2], [2], [1], [1], [0, 0, 0, 1, 1, 1], [0], [0]>} : vector<16x8x16xbf16>, vector<16x8x16xbf16>, vector<16x8x8xf32> -> vector<16x8x8xf32>
    "tpu.trace_stop"() : () -> ()
    %51 = vector.shape_cast %37 : vector<16x8x16xbf16> to vector<16x128xbf16>
    %c0_16 = arith.constant 0 : index
    %c0_17 = arith.constant 0 : index
    %52 = vector.load %arg3[%c0_16, %c0_17] : memref<128x64xbf16, #tpu.memory_space<vmem>>, vector<128x64xbf16>
    %cst_18 = arith.constant dense<0.000000e+00> : vector<16x64xf32>
    %53 = tpu.matmul %51, %52, %cst_18 {dimension_numbers = #tpu.dot_dimension_numbers<[1], [0], [0], [1], [0, 0, 1, 1], [], []>} : vector<16x128xbf16>, vector<128x64xbf16>, vector<16x64xf32> -> vector<16x64xf32>
    %54 = vector.shape_cast %53 : vector<16x64xf32> to vector<16x8x8xf32>
    %55 = arith.addf %50, %54 : vector<16x8x8xf32>
    %c0_19 = arith.constant 0 : index
    %c0_20 = arith.constant 0 : index
    %56 = vector.load %arg2[%c0_19, %c0_20] : memref<8x1xi32, #tpu.memory_space<vmem>>, vector<8x1xi32>
    %57 = tpu.concatenate %56, %56 in 0 : vector<8x1xi32>, vector<8x1xi32> -> vector<16x1xi32>
    %58 = tpu.iota {dimensions = array<i32: 1>} : vector<16x8xi32>
    %59 = vector.broadcast %57 : vector<16x1xi32> to vector<16x8xi32>
    %60 = arith.cmpi slt, %58, %59 : vector<16x8xi32>
    %61 = vector.shape_cast %60 : vector<16x8xi1> to vector<16x1x8xi1>
    %cst_21 = arith.constant -1.000000e+09 : f32
    %62 = vector.shape_cast %61 : vector<16x1x8xi1> to vector<16x1x8xi1>
    %63 = vector.broadcast %62 : vector<16x1x8xi1> to vector<16x8x8xi1>
    %64 = vector.broadcast %cst_21 : f32 to vector<16x8x8xf32>
    %65 = arith.select %63, %55, %64 : vector<16x8x8xi1>, vector<16x8x8xf32>
    %cst_22 = arith.constant dense<0xFF800000> : vector<16x8xf32>
    %66 = vector.multi_reduction <maximumf>, %65, %cst_22 [2] : vector<16x8x8xf32> to vector<16x8xf32>
    %67 = vector.shape_cast %66 : vector<16x8xf32> to vector<16x8x1xf32>
    %68 = vector.broadcast %67 : vector<16x8x1xf32> to vector<16x8x8xf32>
    %69 = arith.subf %65, %68 : vector<16x8x8xf32>
    %70 = math.exp %69 : vector<16x8x8xf32>
    %cst_23 = arith.constant dense<0.000000e+00> : vector<16x8xf32>
    %71 = vector.multi_reduction <add>, %70, %cst_23 [2] : vector<16x8x8xf32> to vector<16x8xf32>
    %72 = vector.shape_cast %71 : vector<16x8xf32> to vector<16x8x1xf32>
    %73 = tpu.reciprocal %72 {approx = true} : vector<16x8x1xf32> -> vector<16x8x1xf32>
    %74 = vector.broadcast %73 : vector<16x8x1xf32> to vector<16x8x8xf32>
    %75 = arith.mulf %70, %74 : vector<16x8x8xf32>
    %76 = arith.truncf %75 : vector<16x8x8xf32> to vector<16x8x8xbf16>
    "tpu.trace_start"() <{level = 10 : i32, message = "bqk,bkd->bqd"}> : () -> ()
    %cst_24 = arith.constant dense<0.000000e+00> : vector<16x8x16xf32>
    %77 = tpu.matmul %76, %49, %cst_24 {dimension_numbers = #tpu.dot_dimension_numbers<[2], [1], [1], [2], [0, 0, 0, 1, 1, 2], [0], [0]>} : vector<16x8x8xbf16>, vector<16x8x16xbf16>, vector<16x8x16xf32> -> vector<16x8x16xf32>
    "tpu.trace_stop"() : () -> ()
    %78 = vector.shape_cast %76 : vector<16x8x8xbf16> to vector<16x64xbf16>
    %c0_25 = arith.constant 0 : index
    %c0_26 = arith.constant 0 : index
    %79 = vector.load %arg4[%c0_25, %c0_26] : memref<64x128xbf16, #tpu.memory_space<vmem>>, vector<64x128xbf16>
    %cst_27 = arith.constant dense<0.000000e+00> : vector<16x128xf32>
    %80 = tpu.matmul %78, %79, %cst_27 {dimension_numbers = #tpu.dot_dimension_numbers<[1], [0], [0], [1], [0, 0, 1, 1], [], []>} : vector<16x64xbf16>, vector<64x128xbf16>, vector<16x128xf32> -> vector<16x128xf32>
    %81 = vector.shape_cast %80 : vector<16x128xf32> to vector<16x8x16xf32>
    %82 = arith.addf %77, %81 : vector<16x8x16xf32>
    %c0_28 = arith.constant 0 : index
    %c0_29 = arith.constant 0 : index
    %83 = vector.load %arg9[%c0_28, %c0_29] : memref<32x32xbf16, #tpu.memory_space<vmem>>, vector<32x32xbf16>
    %84 = vector.extract_strided_slice %82 {offsets = [0, 0, 0], sizes = [8, 8, 16], strides = [1, 1, 1]} : vector<16x8x16xf32> to vector<8x8x16xf32>
    %85 = vector.shape_cast %84 : vector<8x8x16xf32> to vector<64x16xf32>
    %86 = arith.truncf %85 : vector<64x16xf32> to vector<64x16xbf16>
    %87 = vector.extract_strided_slice %83 {offsets = [0, 0], sizes = [16, 32], strides = [1, 1]} : vector<32x32xbf16> to vector<16x32xbf16>
    %cst_30 = arith.constant dense<0.000000e+00> : vector<64x32xf32>
    %88 = tpu.matmul %86, %87, %cst_30 {dimension_numbers = #tpu.dot_dimension_numbers<[1], [0], [0], [1], [0, 0, 1, 1], [], []>} : vector<64x16xbf16>, vector<16x32xbf16>, vector<64x32xf32> -> vector<64x32xf32>
    %89 = vector.extract_strided_slice %82 {offsets = [8, 0, 0], sizes = [8, 8, 16], strides = [1, 1, 1]} : vector<16x8x16xf32> to vector<8x8x16xf32>
    %90 = vector.shape_cast %89 : vector<8x8x16xf32> to vector<64x16xf32>
    %91 = arith.truncf %90 : vector<64x16xf32> to vector<64x16xbf16>
    %92 = vector.extract_strided_slice %83 {offsets = [16, 0], sizes = [16, 32], strides = [1, 1]} : vector<32x32xbf16> to vector<16x32xbf16>
    %cst_31 = arith.constant dense<0.000000e+00> : vector<64x32xf32>
    %93 = tpu.matmul %91, %92, %cst_31 {dimension_numbers = #tpu.dot_dimension_numbers<[1], [0], [0], [1], [0, 0, 1, 1], [], []>} : vector<64x16xbf16>, vector<16x32xbf16>, vector<64x32xf32> -> vector<64x32xf32>
    %94 = arith.addf %88, %93 : vector<64x32xf32>
    %c0_32 = arith.constant 0 : index
    %c0_33 = arith.constant 0 : index
    %95 = vector.load %arg10[%c0_32, %c0_33] : memref<1x32xf32, #tpu.memory_space<vmem>>, vector<1x32xf32>
    %96 = vector.broadcast %95 : vector<1x32xf32> to vector<64x32xf32>
    %97 = arith.addf %94, %96 : vector<64x32xf32>
    %98 = arith.addf %25, %97 : vector<64x32xf32>
    %c0_34 = arith.constant 0 : index
    %c0_35 = arith.constant 0 : index
    %99 = vector.load %arg11[%c0_34, %c0_35] : memref<1x32xf32, #tpu.memory_space<vmem>>, vector<1x32xf32>
    %c0_36 = arith.constant 0 : index
    %c0_37 = arith.constant 0 : index
    %100 = vector.load %arg12[%c0_36, %c0_37] : memref<1x32xf32, #tpu.memory_space<vmem>>, vector<1x32xf32>
    %cst_38 = arith.constant dense<0.000000e+00> : vector<64xf32>
    %101 = vector.multi_reduction <add>, %98, %cst_38 [1] : vector<64x32xf32> to vector<64xf32>
    %102 = vector.shape_cast %101 : vector<64xf32> to vector<64x1xf32>
    %cst_39 = arith.constant 3.200000e+01 : f32
    %103 = vector.broadcast %cst_39 : f32 to vector<64x1xf32>
    %104 = arith.divf %102, %103 : vector<64x1xf32>
    %105 = vector.broadcast %104 : vector<64x1xf32> to vector<64x32xf32>
    %106 = arith.subf %98, %105 : vector<64x32xf32>
    %107 = arith.mulf %106, %106 : vector<64x32xf32>
    %cst_40 = arith.constant dense<0.000000e+00> : vector<64xf32>
    %108 = vector.multi_reduction <add>, %107, %cst_40 [1] : vector<64x32xf32> to vector<64xf32>
    %109 = vector.shape_cast %108 : vector<64xf32> to vector<64x1xf32>
    %cst_41 = arith.constant 3.200000e+01 : f32
    %110 = vector.broadcast %cst_41 : f32 to vector<64x1xf32>
    %111 = arith.divf %109, %110 : vector<64x1xf32>
    %112 = vector.broadcast %104 : vector<64x1xf32> to vector<64x32xf32>
    %113 = arith.subf %98, %112 : vector<64x32xf32>
    %cst_42 = arith.constant 9.99999997E-7 : f32
    %114 = vector.broadcast %cst_42 : f32 to vector<64x1xf32>
    %115 = arith.addf %111, %114 : vector<64x1xf32>
    %116 = math.rsqrt %115 : vector<64x1xf32>
    %117 = vector.broadcast %116 : vector<64x1xf32> to vector<64x32xf32>
    %118 = arith.mulf %113, %117 : vector<64x32xf32>
    %119 = vector.broadcast %99 : vector<1x32xf32> to vector<64x32xf32>
    %120 = arith.mulf %118, %119 : vector<64x32xf32>
    %121 = vector.broadcast %100 : vector<1x32xf32> to vector<64x32xf32>
    %122 = arith.addf %120, %121 : vector<64x32xf32>
    %123 = arith.truncf %122 : vector<64x32xf32> to vector<64x32xbf16>
    %c0_43 = arith.constant 0 : index
    %c0_44 = arith.constant 0 : index
    %124 = vector.load %arg13[%c0_43, %c0_44] : memref<32x128xbf16, #tpu.memory_space<vmem>>, vector<32x128xbf16>
    %cst_45 = arith.constant dense<0.000000e+00> : vector<64x128xf32>
    %125 = tpu.matmul %123, %124, %cst_45 {dimension_numbers = #tpu.dot_dimension_numbers<[1], [0], [0], [1], [0, 0, 1, 1], [], []>} : vector<64x32xbf16>, vector<32x128xbf16>, vector<64x128xf32> -> vector<64x128xf32>
    %c0_46 = arith.constant 0 : index
    %c0_47 = arith.constant 0 : index
    %126 = vector.load %arg14[%c0_46, %c0_47] : memref<1x128xf32, #tpu.memory_space<vmem>>, vector<1x128xf32>
    %127 = vector.broadcast %126 : vector<1x128xf32> to vector<64x128xf32>
    %128 = arith.addf %125, %127 : vector<64x128xf32>
    %cst_48 = arith.constant 0.000000e+00 : f32
    %129 = vector.broadcast %cst_48 : f32 to vector<64x128xf32>
    %130 = arith.maximumf %128, %129 : vector<64x128xf32>
    %131 = arith.truncf %130 : vector<64x128xf32> to vector<64x128xbf16>
    %c0_49 = arith.constant 0 : index
    %c0_50 = arith.constant 0 : index
    %132 = vector.load %arg15[%c0_49, %c0_50] : memref<128x32xbf16, #tpu.memory_space<vmem>>, vector<128x32xbf16>
    %cst_51 = arith.constant dense<0.000000e+00> : vector<64x32xf32>
    %133 = tpu.matmul %131, %132, %cst_51 {dimension_numbers = #tpu.dot_dimension_numbers<[1], [0], [0], [1], [0, 0, 1, 1], [], []>} : vector<64x128xbf16>, vector<128x32xbf16>, vector<64x32xf32> -> vector<64x32xf32>
    %c0_52 = arith.constant 0 : index
    %c0_53 = arith.constant 0 : index
    %134 = vector.load %arg16[%c0_52, %c0_53] : memref<1x32xf32, #tpu.memory_space<vmem>>, vector<1x32xf32>
    %135 = vector.broadcast %134 : vector<1x32xf32> to vector<64x32xf32>
    %136 = arith.addf %133, %135 : vector<64x32xf32>
    %137 = arith.addf %122, %136 : vector<64x32xf32>
    %c0_54 = arith.constant 0 : index
    %c0_55 = arith.constant 0 : index
    %138 = vector.load %arg17[%c0_54, %c0_55] : memref<1x32xf32, #tpu.memory_space<vmem>>, vector<1x32xf32>
    %c0_56 = arith.constant 0 : index
    %c0_57 = arith.constant 0 : index
    %139 = vector.load %arg18[%c0_56, %c0_57] : memref<1x32xf32, #tpu.memory_space<vmem>>, vector<1x32xf32>
    %cst_58 = arith.constant dense<0.000000e+00> : vector<64xf32>
    %140 = vector.multi_reduction <add>, %137, %cst_58 [1] : vector<64x32xf32> to vector<64xf32>
    %141 = vector.shape_cast %140 : vector<64xf32> to vector<64x1xf32>
    %cst_59 = arith.constant 3.200000e+01 : f32
    %142 = vector.broadcast %cst_59 : f32 to vector<64x1xf32>
    %143 = arith.divf %141, %142 : vector<64x1xf32>
    %144 = vector.broadcast %143 : vector<64x1xf32> to vector<64x32xf32>
    %145 = arith.subf %137, %144 : vector<64x32xf32>
    %146 = arith.mulf %145, %145 : vector<64x32xf32>
    %cst_60 = arith.constant dense<0.000000e+00> : vector<64xf32>
    %147 = vector.multi_reduction <add>, %146, %cst_60 [1] : vector<64x32xf32> to vector<64xf32>
    %148 = vector.shape_cast %147 : vector<64xf32> to vector<64x1xf32>
    %cst_61 = arith.constant 3.200000e+01 : f32
    %149 = vector.broadcast %cst_61 : f32 to vector<64x1xf32>
    %150 = arith.divf %148, %149 : vector<64x1xf32>
    %151 = vector.broadcast %143 : vector<64x1xf32> to vector<64x32xf32>
    %152 = arith.subf %137, %151 : vector<64x32xf32>
    %cst_62 = arith.constant 9.99999997E-7 : f32
    %153 = vector.broadcast %cst_62 : f32 to vector<64x1xf32>
    %154 = arith.addf %150, %153 : vector<64x1xf32>
    %155 = math.rsqrt %154 : vector<64x1xf32>
    %156 = vector.broadcast %155 : vector<64x1xf32> to vector<64x32xf32>
    %157 = arith.mulf %152, %156 : vector<64x32xf32>
    %158 = vector.broadcast %138 : vector<1x32xf32> to vector<64x32xf32>
    %159 = arith.mulf %157, %158 : vector<64x32xf32>
    %160 = vector.broadcast %139 : vector<1x32xf32> to vector<64x32xf32>
    %161 = arith.addf %159, %160 : vector<64x32xf32>
    %162 = vector.shape_cast %161 : vector<64x32xf32> to vector<8x8x32xf32>
    %cst_63 = arith.constant dense<0xFF800000> : vector<8x32xf32>
    %163 = vector.multi_reduction <maximumf>, %162, %cst_63 [1] : vector<8x8x32xf32> to vector<8x32xf32>
    %c0_64 = arith.constant 0 : index
    %c0_65 = arith.constant 0 : index
    %164 = vector.load %arg19[%c0_64, %c0_65] : memref<8x32xf32, #tpu.memory_space<vmem>>, vector<8x32xf32>
    tpu.vector_store %arg19[%c0_64, %c0_65], %163 {strides = array<i32>} : memref<8x32xf32, #tpu.memory_space<vmem>>, vector<8x32xf32>,
    return
  }
  func.func @transform_0(%arg0: i32) -> (i32, i32, i32) {
    %c0_i32 = arith.constant 0 : i32
    %c0_i32_0 = arith.constant 0 : i32
    %c0_i32_1 = arith.constant 0 : i32
    return %arg0, %c0_i32, %c0_i32_0 : i32, i32, i32
  }
  func.func @transform_1(%arg0: i32) -> (i32, i32) {
    %c0_i32 = arith.constant 0 : i32
    %c0_i32_0 = arith.constant 0 : i32
    return %arg0, %c0_i32 : i32, i32
  }
  func.func @transform_2(%arg0: i32) -> (i32, i32) {
    %c0_i32 = arith.constant 0 : i32
    %c0_i32_0 = arith.constant 0 : i32
    %c0_i32_1 = arith.constant 0 : i32
    return %c0_i32, %c0_i32_0 : i32, i32
  }
  func.func @transform_3(%arg0: i32) -> (i32, i32) {
    %c0_i32 = arith.constant 0 : i32
    %c0_i32_0 = arith.constant 0 : i32
    %c0_i32_1 = arith.constant 0 : i32
    return %c0_i32, %c0_i32_0 : i32, i32
  }
  func.func @transform_4(%arg0: i32) -> (i32, i32) {
    %c0_i32 = arith.constant 0 : i32
    %c0_i32_0 = arith.constant 0 : i32
    %c0_i32_1 = arith.constant 0 : i32
    return %c0_i32, %c0_i32_0 : i32, i32
  }
  func.func @transform_5(%arg0: i32) -> (i32, i32) {
    %c0_i32 = arith.constant 0 : i32
    %c0_i32_0 = arith.constant 0 : i32
    %c0_i32_1 = arith.constant 0 : i32
    return %c0_i32, %c0_i32_0 : i32, i32
  }
  func.func @transform_6(%arg0: i32) -> (i32, i32) {
    %c0_i32 = arith.constant 0 : i32
    %c0_i32_0 = arith.constant 0 : i32
    %c0_i32_1 = arith.constant 0 : i32
    return %c0_i32, %c0_i32_0 : i32, i32
  }
  func.func @transform_7(%arg0: i32) -> (i32, i32) {
    %c0_i32 = arith.constant 0 : i32
    %c0_i32_0 = arith.constant 0 : i32
    %c0_i32_1 = arith.constant 0 : i32
    return %c0_i32, %c0_i32_0 : i32, i32
  }
  func.func @transform_8(%arg0: i32) -> (i32, i32) {
    %c0_i32 = arith.constant 0 : i32
    %c0_i32_0 = arith.constant 0 : i32
    %c0_i32_1 = arith.constant 0 : i32
    return %c0_i32, %c0_i32_0 : i32, i32
  }
  func.func @transform_9(%arg0: i32) -> (i32, i32) {
    %c0_i32 = arith.constant 0 : i32
    %c0_i32_0 = arith.constant 0 : i32
    %c0_i32_1 = arith.constant 0 : i32
    return %c0_i32, %c0_i32_0 : i32, i32
  }
  func.func @transform_10(%arg0: i32) -> (i32, i32) {
    %c0_i32 = arith.constant 0 : i32
    %c0_i32_0 = arith.constant 0 : i32
    %c0_i32_1 = arith.constant 0 : i32
    return %c0_i32, %c0_i32_0 : i32, i32
  }
  func.func @transform_11(%arg0: i32) -> (i32, i32) {
    %c0_i32 = arith.constant 0 : i32
    %c0_i32_0 = arith.constant 0 : i32
    %c0_i32_1 = arith.constant 0 : i32
    return %c0_i32, %c0_i32_0 : i32, i32
  }
  func.func @transform_12(%arg0: i32) -> (i32, i32) {
    %c0_i32 = arith.constant 0 : i32
    %c0_i32_0 = arith.constant 0 : i32
    %c0_i32_1 = arith.constant 0 : i32
    return %c0_i32, %c0_i32_0 : i32, i32
  }
  func.func @transform_13(%arg0: i32) -> (i32, i32) {
    %c0_i32 = arith.constant 0 : i32
    %c0_i32_0 = arith.constant 0 : i32
    %c0_i32_1 = arith.constant 0 : i32
    return %c0_i32, %c0_i32_0 : i32, i32
  }
  func.func @transform_14(%arg0: i32) -> (i32, i32) {
    %c0_i32 = arith.constant 0 : i32
    %c0_i32_0 = arith.constant 0 : i32
    %c0_i32_1 = arith.constant 0 : i32
    return %c0_i32, %c0_i32_0 : i32, i32
  }
  func.func @transform_15(%arg0: i32) -> (i32, i32) {
    %c0_i32 = arith.constant 0 : i32
    %c0_i32_0 = arith.constant 0 : i32
    %c0_i32_1 = arith.constant 0 : i32
    return %c0_i32, %c0_i32_0 : i32, i32
  }
  func.func @transform_16(%arg0: i32) -> (i32, i32) {
    %c0_i32 = arith.constant 0 : i32
    %c0_i32_0 = arith.constant 0 : i32
    %c0_i32_1 = arith.constant 0 : i32
    return %c0_i32, %c0_i32_0 : i32, i32
  }
  func.func @transform_17(%arg0: i32) -> (i32, i32) {
    %c0_i32 = arith.constant 0 : i32
    %c0_i32_0 = arith.constant 0 : i32
    %c0_i32_1 = arith.constant 0 : i32
    return %c0_i32, %c0_i32_0 : i32, i32
  }
  func.func @transform_18(%arg0: i32) -> (i32, i32) {
    %c0_i32 = arith.constant 0 : i32
    %c0_i32_0 = arith.constant 0 : i32
    return %arg0, %c0_i32 : i32, i32
  }
}

</mosaic_0001>

<llo_original>
// kernel: tpu_custom_call.1
$region0: #{tpu_custom_call.1}
  #allocation0 [shape = 'u32[]', space=smem, size = 0x4, offset = 0x4, fixed_abs, tag = 'smem constant byte address 0x4 - core index']
  #allocation1 [shape = 'u32[144,128]{1,0:T(1,128)}', space=vmem, size = 0x12000, scoped, tag = 'internal scratch']
  %s0 = inlined_call_operand.vmem [shape: f32[8,8,32], index: 0, kind: input, shape index: {}]
  %s1 = inlined_call_operand.vmem [shape: s32[8,1], index: 1, kind: input, shape index: {}]
  %s2 = inlined_call_operand.vmem [shape: bf16[128,64], index: 2, kind: input, shape index: {}]
  %s3 = inlined_call_operand.vmem [shape: bf16[64,128], index: 3, kind: input, shape index: {}]
  %s4 = inlined_call_operand.vmem [shape: bf16[32,96], index: 4, kind: input, shape index: {}]
  %s5 = inlined_call_operand.vmem [shape: f32[1,96], index: 5, kind: input, shape index: {}]
  %s6 = inlined_call_operand.vmem [shape: f32[1,32], index: 6, kind: input, shape index: {}]
  %s7 = inlined_call_operand.vmem [shape: f32[1,32], index: 7, kind: input, shape index: {}]
  %s8 = inlined_call_operand.vmem [shape: bf16[32,32], index: 8, kind: input, shape index: {}]
  %s9 = inlined_call_operand.vmem [shape: f32[1,32], index: 9, kind: input, shape index: {}]
  %s10 = inlined_call_operand.vmem [shape: f32[1,32], index: 10, kind: input, shape index: {}]
  %s11 = inlined_call_operand.vmem [shape: f32[1,32], index: 11, kind: input, shape index: {}]
  %s12 = inlined_call_operand.vmem [shape: bf16[32,128], index: 12, kind: input, shape index: {}]
  %s13 = inlined_call_operand.vmem [shape: f32[1,128], index: 13, kind: input, shape index: {}]
  %s14 = inlined_call_operand.vmem [shape: bf16[128,32], index: 14, kind: input, shape index: {}]
  %s15 = inlined_call_operand.vmem [shape: f32[1,32], index: 15, kind: input, shape index: {}]
  %s16 = inlined_call_operand.vmem [shape: f32[1,32], index: 16, kind: input, shape index: {}]
  %s17 = inlined_call_operand.vmem [shape: f32[1,32], index: 17, kind: input, shape index: {}]
  %s18 = inlined_call_operand.hbm [shape: f32[8,32], index: 18, kind: output, shape index: {}]
  %s19 = sld [smem:[#allocation0]]
  $region82: #{tpu_custom_call.1} parent=0
    _
  %s21 = ssub.s32 1, %s19
  %s22 = scalar_select 0, %s21, %s19
  $region1: #{tpu_custom_call.1} parent=0
    #allocation2 [shape = 'u8[4096]{0}', space=vmem, size = 0x1000, scoped, tag = 'output window, operand 0, single buffered']
    #allocation3 [shape = 's32[1]{0}', space=sflag, size = 0x4, scoped, tag = 'scoped memory for tpu_custom_call.1']
    %23 = vsyncpa [#allocation3], 0
    // Predicated region
    $region2: #{tpu_custom_call.1} parent=1 // pred_check
      _
    $region3: #{tpu_custom_call.1} parent=1 // pred_check_branch
      %25 = sbr.rel (0) target = $region5
    $region4: #{tpu_custom_call.1} parent=1 // pred_region
      _
    $region5: #{tpu_custom_call.1} parent=1 // pred_fallthru
      _
    // Predicated region
    $region6: #{tpu_custom_call.1} parent=1 // pred_check
      _
    $region7: #{tpu_custom_call.1} parent=1 // pred_check_branch
      %27 = sbr.rel (0) target = $region9
    $region8: #{tpu_custom_call.1} parent=1 // pred_region
      _
    $region9: #{tpu_custom_call.1} parent=1 // pred_fallthru
      _
    // Predicated region
    $region10: #{tpu_custom_call.1} parent=1 // pred_check
      _
    $region11: #{tpu_custom_call.1} parent=1 // pred_check_branch
      %29 = sbr.rel (0) target = $region13
    $region12: #{tpu_custom_call.1} parent=1 // pred_region
      _
    $region13: #{tpu_custom_call.1} parent=1 // pred_fallthru
      _
    // Predicated region
    $region14: #{tpu_custom_call.1} parent=1 // pred_check
      _
    $region15: #{tpu_custom_call.1} parent=1 // pred_check_branch
      %31 = sbr.rel (0) target = $region17
    $region16: #{tpu_custom_call.1} parent=1 // pred_region
      _
    $region17: #{tpu_custom_call.1} parent=1 // pred_fallthru
      _
    // Predicated region
    $region18: #{tpu_custom_call.1} parent=1 // pred_check
      _
    $region19: #{tpu_custom_call.1} parent=1 // pred_check_branch
      %33 = sbr.rel (0) target = $region21
    $region20: #{tpu_custom_call.1} parent=1 // pred_region
      _
    $region21: #{tpu_custom_call.1} parent=1 // pred_fallthru
      _
    // Predicated region
    $region22: #{tpu_custom_call.1} parent=1 // pred_check
      _
    $region23: #{tpu_custom_call.1} parent=1 // pred_check_branch
      %35 = sbr.rel (0) target = $region25
    $region24: #{tpu_custom_call.1} parent=1 // pred_region
      _
    $region25: #{tpu_custom_call.1} parent=1 // pred_fallthru
      _
    // Predicated region
    $region26: #{tpu_custom_call.1} parent=1 // pred_check
      _
    $region27: #{tpu_custom_call.1} parent=1 // pred_check_branch
      %37 = sbr.rel (0) target = $region29
    $region28: #{tpu_custom_call.1} parent=1 // pred_region
      _
    $region29: #{tpu_custom_call.1} parent=1 // pred_fallthru
      _
    // Predicated region
    $region30: #{tpu_custom_call.1} parent=1 // pred_check
      _
    $region31: #{tpu_custom_call.1} parent=1 // pred_check_branch
      %39 = sbr.rel (0) target = $region33
    $region32: #{tpu_custom_call.1} parent=1 // pred_region
      _
    $region33: #{tpu_custom_call.1} parent=1 // pred_fallthru
      _
    // Predicated region
    $region34: #{tpu_custom_call.1} parent=1 // pred_check
      _
    $region35: #{tpu_custom_call.1} parent=1 // pred_check_branch
      %41 = sbr.rel (0) target = $region37
    $region36: #{tpu_custom_call.1} parent=1 // pred_region
      _
    $region37: #{tpu_custom_call.1} parent=1 // pred_fallthru
      _
    // Predicated region
    $region38: #{tpu_custom_call.1} parent=1 // pred_check
      _
    $region39: #{tpu_custom_call.1} parent=1 // pred_check_branch
      %43 = sbr.rel (0) target = $region41
    $region40: #{tpu_custom_call.1} parent=1 // pred_region
      _
    $region41: #{tpu_custom_call.1} parent=1 // pred_fallthru
      _
    // Predicated region
    $region42: #{tpu_custom_call.1} parent=1 // pred_check
      _
    $region43: #{tpu_custom_call.1} parent=1 // pred_check_branch
      %45 = sbr.rel (0) target = $region45
    $region44: #{tpu_custom_call.1} parent=1 // pred_region
      _
    $region45: #{tpu_custom_call.1} parent=1 // pred_fallthru
      _
    // Predicated region
    $region46: #{tpu_custom_call.1} parent=1 // pred_check
      _
    $region47: #{tpu_custom_call.1} parent=1 // pred_check_branch
      %47 = sbr.rel (0) target = $region49
    $region48: #{tpu_custom_call.1} parent=1 // pred_region
      _
    $region49: #{tpu_custom_call.1} parent=1 // pred_fallthru
      _
    // Predicated region
    $region50: #{tpu_custom_call.1} parent=1 // pred_check
      _
    $region51: #{tpu_custom_call.1} parent=1 // pred_check_branch
      %49 = sbr.rel (0) target = $region53
    $region52: #{tpu_custom_call.1} parent=1 // pred_region
      _
    $region53: #{tpu_custom_call.1} parent=1 // pred_fallthru
      _
    // Predicated region
    $region54: #{tpu_custom_call.1} parent=1 // pred_check
      _
    $region55: #{tpu_custom_call.1} parent=1 // pred_check_branch
      %51 = sbr.rel (0) target = $region57
    $region56: #{tpu_custom_call.1} parent=1 // pred_region
      _
    $region57: #{tpu_custom_call.1} parent=1 // pred_fallthru
      _
    // Predicated region
    $region58: #{tpu_custom_call.1} parent=1 // pred_check
      _
    $region59: #{tpu_custom_call.1} parent=1 // pred_check_branch
      %53 = sbr.rel (0) target = $region61
    $region60: #{tpu_custom_call.1} parent=1 // pred_region
      _
    $region61: #{tpu_custom_call.1} parent=1 // pred_fallthru
      _
    // Predicated region
    $region62: #{tpu_custom_call.1} parent=1 // pred_check
      _
    $region63: #{tpu_custom_call.1} parent=1 // pred_check_branch
      %55 = sbr.rel (0) target = $region65
    $region64: #{tpu_custom_call.1} parent=1 // pred_region
      _
    $region65: #{tpu_custom_call.1} parent=1 // pred_fallthru
      _
    // Predicated region
    $region66: #{tpu_custom_call.1} parent=1 // pred_check
      _
    $region67: #{tpu_custom_call.1} parent=1 // pred_check_branch
      %57 = sbr.rel (0) target = $region69
    $region68: #{tpu_custom_call.1} parent=1 // pred_region
      _
    $region69: #{tpu_custom_call.1} parent=1 // pred_fallthru
      _
    // Predicated region
    $region70: #{tpu_custom_call.1} parent=1 // pred_check
      _
    $region71: #{tpu_custom_call.1} parent=1 // pred_check_branch
      %59 = sbr.rel (0) target = $region73
    $region72: #{tpu_custom_call.1} parent=1 // pred_region
      _
    $region73: #{tpu_custom_call.1} parent=1 // pred_fallthru
      _
    %v61 = vld [vmem:[%s0] sm:$0xff]
    %v62 = vld [vmem:[%s0 + $0x8] sm:$0xff]
    %v63 = vld [vmem:[%s0 + $0x10] sm:$0xff]
    %v64 = vld [vmem:[%s0 + $0x18] sm:$0xff]
    %v65 = vld [vmem:[%s0 + $0x20] sm:$0xff]
    %v66 = vld [vmem:[%s0 + $0x28] sm:$0xff]
    %v67 = vld [vmem:[%s0 + $0x30] sm:$0xff]
    %v68 = vld [vmem:[%s0 + $0x38] sm:$0xff]
    %v69 = vld [vmem:[%s6] sm:$0x1]
    %v70 = vld [vmem:[%s7] sm:$0x1]
    %vm71 = vcmask 261120
    %v72 = vsel %vm71, %v61, 0.0
    %73 = vadd.xlane.f32.xlu0 %v72
    %v74 = vpop.xlane.xlu0 %73
    %v75 = vsel %vm71, %v62, 0.0
    %76 = vadd.xlane.f32.xlu0 %v75
    %v77 = vpop.xlane.xlu0 %76
    %v78 = vsel %vm71, %v63, 0.0
    %79 = vadd.xlane.f32.xlu0 %v78
    %v80 = vpop.xlane.xlu0 %79
    %v81 = vsel %vm71, %v64, 0.0
    %82 = vadd.xlane.f32.xlu0 %v81
    %v83 = vpop.xlane.xlu0 %82
    %v84 = vsel %vm71, %v65, 0.0
    %85 = vadd.xlane.f32.xlu0 %v84
    %v86 = vpop.xlane.xlu0 %85
    %v87 = vsel %vm71, %v66, 0.0
    %88 = vadd.xlane.f32.xlu0 %v87
    %v89 = vpop.xlane.xlu0 %88
    %v90 = vsel %vm71, %v67, 0.0
    %91 = vadd.xlane.f32.xlu0 %v90
    %v92 = vpop.xlane.xlu0 %91
    %v93 = vsel %vm71, %v68, 0.0
    %94 = vadd.xlane.f32.xlu0 %v93
    %v95 = vpop.xlane.xlu0 %94
    %v96 = vrcp.pop 32.0
    %v97 = vmul.f32 %v74, %v96
    %v98 = vmul.f32 %v77, %v96
    %v99 = vmul.f32 %v80, %v96
    %v100 = vmul.f32 %v83, %v96
    %v101 = vmul.f32 %v86, %v96
    %v102 = vmul.f32 %v89, %v96
    %v103 = vmul.f32 %v92, %v96
    %v104 = vmul.f32 %v95, %v96
    %v105 = vsub.f32 %v61, %v97
    %v106 = vsub.f32 %v62, %v98
    %v107 = vsub.f32 %v63, %v99
    %v108 = vsub.f32 %v64, %v100
    %v109 = vsub.f32 %v65, %v101
    %v110 = vsub.f32 %v66, %v102
    %v111 = vsub.f32 %v67, %v103
    %v112 = vsub.f32 %v68, %v104
    %v113 = vmul.f32 %v105, %v105
    %v114 = vmul.f32 %v106, %v106
    %v115 = vmul.f32 %v107, %v107
    %v116 = vmul.f32 %v108, %v108
    %v117 = vmul.f32 %v109, %v109
    %v118 = vmul.f32 %v110, %v110
    %v119 = vmul.f32 %v111, %v111
    %v120 = vmul.f32 %v112, %v112
    %v121 = vsel %vm71, %v113, 0.0
    %122 = vadd.xlane.f32.xlu0 %v121
    %v123 = vpop.xlane.xlu0 %122
    %v124 = vsel %vm71, %v114, 0.0
    %125 = vadd.xlane.f32.xlu0 %v124
    %v126 = vpop.xlane.xlu0 %125
    %v127 = vsel %vm71, %v115, 0.0
    %128 = vadd.xlane.f32.xlu0 %v127
    %v129 = vpop.xlane.xlu0 %128
    %v130 = vsel %vm71, %v116, 0.0
    %131 = vadd.xlane.f32.xlu0 %v130
    %v132 = vpop.xlane.xlu0 %131
    %v133 = vsel %vm71, %v117, 0.0
    %134 = vadd.xlane.f32.xlu0 %v133
    %v135 = vpop.xlane.xlu0 %134
    %v136 = vsel %vm71, %v118, 0.0
    %137 = vadd.xlane.f32.xlu0 %v136
    %v138 = vpop.xlane.xlu0 %137
    %v139 = vsel %vm71, %v119, 0.0
    %140 = vadd.xlane.f32.xlu0 %v139
    %v141 = vpop.xlane.xlu0 %140
    %v142 = vsel %vm71, %v120, 0.0
    %143 = vadd.xlane.f32.xlu0 %v142
    %v144 = vpop.xlane.xlu0 %143
    %v145 = vmul.f32 %v123, %v96
    %v146 = vmul.f32 %v126, %v96
    %v147 = vmul.f32 %v129, %v96
    %v148 = vmul.f32 %v132, %v96
    %v149 = vmul.f32 %v135, %v96
    %v150 = vmul.f32 %v138, %v96
    %v151 = vmul.f32 %v141, %v96
    %v152 = vmul.f32 %v144, %v96
    %v153 = vadd.f32 %v145, 1e-06
    %v154 = vadd.f32 %v146, 1e-06
    %v155 = vadd.f32 %v147, 1e-06
    %v156 = vadd.f32 %v148, 1e-06
    %v157 = vadd.f32 %v149, 1e-06
    %v158 = vadd.f32 %v150, 1e-06
    %v159 = vadd.f32 %v151, 1e-06
    %v160 = vadd.f32 %v152, 1e-06
    %v161 = vrsqrt.pop %v153
    %v162 = vrsqrt.pop %v154
    %v163 = vrsqrt.pop %v155
    %v164 = vrsqrt.pop %v156
    %v165 = vrsqrt.pop %v157
    %v166 = vrsqrt.pop %v158
    %v167 = vrsqrt.pop %v159
    %v168 = vrsqrt.pop %v160
    %v169 = vmul.f32 %v105, %v161
    %v170 = vmul.f32 %v106, %v162
    %v171 = vmul.f32 %v107, %v163
    %v172 = vmul.f32 %v108, %v164
    %v173 = vmul.f32 %v109, %v165
    %v174 = vmul.f32 %v110, %v166
    %v175 = vmul.f32 %v111, %v167
    %v176 = vmul.f32 %v112, %v168
    %v178 = vlaneseq
    %v179 = vshrl.u32 %v178, 7
    %v180 = vsub.s32 0, %v179
    %v181 = vrot.slane %v69, %v180
    %v183 = vmul.f32 %v169, %v181
    %v184 = vmul.f32 %v170, %v181
    %v185 = vmul.f32 %v171, %v181
    %v186 = vmul.f32 %v172, %v181
    %v187 = vmul.f32 %v173, %v181
    %v188 = vmul.f32 %v174, %v181
    %v189 = vmul.f32 %v175, %v181
    %v190 = vmul.f32 %v176, %v181
    %v192 = vlaneseq
    %v193 = vshrl.u32 %v192, 7
    %v194 = vsub.s32 0, %v193
    %v195 = vrot.slane %v70, %v194
    %v197 = vadd.f32 %v183, %v195
    %v198 = vadd.f32 %v184, %v195
    %v199 = vadd.f32 %v185, %v195
    %v200 = vadd.f32 %v186, %v195
    %v201 = vadd.f32 %v187, %v195
    %v202 = vadd.f32 %v188, %v195
    %v203 = vadd.f32 %v189, %v195
    %v204 = vadd.f32 %v190, %v195
    %v205 = vpack.c.bf16 %v198, %v197
    %v206 = vpack.c.bf16 %v200, %v199
    %v207 = vpack.c.bf16 %v202, %v201
    %v208 = vpack.c.bf16 %v204, %v203
    %v209 = vld [vmem:[%s4] sm:$0xf]
    %v210 = vld [vmem:[%s4 + $0x4] sm:$0xf]
    %v211 = vld [vmem:[%s4 + $0x8] sm:$0xf]
    %v212 = vld [vmem:[%s4 + $0xc] sm:$0xf]
    %v213 = vld [vmem:[%s5] sm:$0x1]
    %v215 = vlaneseq
    %v216 = vshrl.u32 %v215, 7
    %v217 = vsub.s32 0, %v216
    %v218 = vrot.slane %v213, %v217
    %v224 = vunpack.c.l.b16 %v209
    %v225 = vunpack.c.l.b16 %v210
    %v226 = vunpack.c.l.b16 %v211
    %v227 = vunpack.c.l.b16 %v212
    %v228 = vpack.c.b16 %v225, %v224
    %v229 = vpack.c.b16 %v227, %v226
    %v233 = vsel %vm71, %v205, 0
    %v236 = vsel %vm71, %v206, 0
    %v239 = vsel %vm71, %v207, 0
    %v242 = vsel %vm71, %v208, 0
    %244 = vmatprep.subr.bf16.mxu0 0
    %245 = vmatpush1.bf16.msra.mxu0 0
    %246 = vmatprep.subr.bf16.mxu0 0
    %247 = vmatpush1.bf16.msra.mxu0 0
    %248 = vmatprep.subr.bf16.mxu0 0
    %249 = vmatpush1.bf16.msra.mxu0 0
    %250 = vmatprep.subr.bf16.mxu0 0
    %251 = vmatpush1.bf16.msra.mxu0 0
    %252 = vmatprep.subr.bf16.mxu0 0
    %253 = vmatpush1.bf16.msra.mxu0 0
    %254 = vmatprep.subr.bf16.mxu0 0
    %255 = vmatpush1.bf16.msra.mxu0 0
    %256 = vmatprep.subr.bf16.mxu0 0
    %257 = vmatpush1.bf16.msra.mxu0 %v229
    %258 = vmatprep.subr.bf16.mxu0 0
    %259 = vmatpush1.bf16.msra.mxu0 %v228
    %260 = vmatprep.subr.bf16.mxu0 0
    %261 = vmatpush2.bf16.msra.mxu0 0
    %262 = vmatprep.subr.bf16.mxu0 0
    %263 = vmatpush2.bf16.msra.mxu0 0
    %264 = vmatprep.subr.bf16.mxu0 0
    %265 = vmatpush2.bf16.msra.mxu0 0
    %266 = vmatprep.subr.bf16.mxu0 0
    %267 = vmatpush2.bf16.msra.mxu0 0
    %268 = vmatprep.subr.bf16.mxu0 0
    %269 = vmatpush2.bf16.msra.mxu0 0
    %270 = vmatprep.subr.bf16.mxu0 0
    %271 = vmatpush2.bf16.msra.mxu0 0
    %272 = vmatprep.subr.bf16.mxu0 0
    %273 = vmatpush2.bf16.msra.mxu0 0
    %274 = vmatprep.subr.bf16.mxu0 0
    %275 = vmatpush2.bf16.msra.mxu0 0
    %276 = vmatprep.mubr.bf16.mxu0 0
    %277 = vmatmul.mubr.bf16.gmra.mxu0 %v233
    %v278 = vpop.f32.mrf.mxu0
    %v279 = vadd.f32 %v218, %v278
    %v280 = vpop.f32.mrf.mxu0
    %v281 = vpop.f32.mrf.mxu0
    %v282 = vadd.f32 %v218, %v281
    %v283 = vpop.f32.mrf.mxu0
    %284 = vmatprep.mubr.bf16.mxu0 0
    %285 = vmatmul.mubr.bf16.gmra.mxu0 %v236
    %v286 = vpop.f32.mrf.mxu0
    %v287 = vadd.f32 %v218, %v286
    %v288 = vpop.f32.mrf.mxu0
    %v289 = vpop.f32.mrf.mxu0
    %v290 = vadd.f32 %v218, %v289
    %v291 = vpop.f32.mrf.mxu0
    %292 = vmatprep.mubr.bf16.mxu0 0
    %293 = vmatmul.mubr.bf16.gmra.mxu0 %v239
    %v294 = vpop.f32.mrf.mxu0
    %v295 = vadd.f32 %v218, %v294
    %v296 = vpop.f32.mrf.mxu0
    %v297 = vpop.f32.mrf.mxu0
    %v298 = vadd.f32 %v218, %v297
    %v299 = vpop.f32.mrf.mxu0
    %300 = vmatprep.mubr.bf16.mxu0 0
    %301 = vmatmul.mubr.bf16.gmra.mxu0 %v242
    %v302 = vpop.f32.mrf.mxu0
    %v303 = vadd.f32 %v218, %v302
    %v304 = vpop.f32.mrf.mxu0
    %v305 = vpop.f32.mrf.mxu0
    %v306 = vadd.f32 %v218, %v305
    %v307 = vpop.f32.mrf.mxu0
    %308 = vdwg.mxu0
    %317 = vrot.lane.b32.xlu0 %v279, 112
    %v318 = vpop.permute.xlu0 %317
    %319 = vrot.lane.b32.xlu0 %v282, 112
    %v320 = vpop.permute.xlu0 %319
    %321 = vrot.lane.b32.xlu0 %v287, 112
    %v322 = vpop.permute.xlu0 %321
    %323 = vrot.lane.b32.xlu0 %v290, 112
    %v324 = vpop.permute.xlu0 %323
    %325 = vrot.lane.b32.xlu0 %v295, 112
    %v326 = vpop.permute.xlu0 %325
    %327 = vrot.lane.b32.xlu0 %v298, 112
    %v328 = vpop.permute.xlu0 %327
    %329 = vrot.lane.b32.xlu0 %v303, 112
    %v330 = vpop.permute.xlu0 %329
    %331 = vrot.lane.b32.xlu0 %v306, 112
    %v332 = vpop.permute.xlu0 %331
    %v341 = vpack.c.bf16 %v279, %v279
    %v342 = vpack.c.bf16 %v282, %v282
    %v343 = vpack.c.bf16 %v287, %v287
    %v344 = vpack.c.bf16 %v290, %v290
    %v345 = vpack.c.bf16 %v295, %v295
    %v346 = vpack.c.bf16 %v298, %v298
    %v347 = vpack.c.bf16 %v303, %v303
    %v348 = vpack.c.bf16 %v306, %v306
    %v349 = vpack.c.bf16 %v318, %v318
    %v350 = vpack.c.bf16 %v320, %v320
    %v351 = vpack.c.bf16 %v322, %v322
    %v352 = vpack.c.bf16 %v324, %v324
    %v353 = vpack.c.bf16 %v326, %v326
    %v354 = vpack.c.bf16 %v328, %v328
    %v355 = vpack.c.bf16 %v330, %v330
    %v356 = vpack.c.bf16 %v332, %v332
    %v357 = vcombine.low %v341, %v345
    %v359 = vunpack.c.l.s4 1983009808
    %v360 = vunpack.c.0.s8 %v359
    %v361 = vlaneseq
    %v362 = vshrl.u32 %v361, 7
    %v363 = vsub.s32 %v360, %v362
    %v364 = vrot.slane %v357, %v363
    %v365 = vcombine.low %v343, %v347
    %v367 = vunpack.c.l.s4 1983009808
    %v368 = vunpack.c.0.s8 %v367
    %v369 = vlaneseq
    %v370 = vshrl.u32 %v369, 7
    %v371 = vsub.s32 %v368, %v370
    %v372 = vrot.slane %v365, %v371
    %v373 = vcombine.low %v349, %v353
    %v375 = vunpack.c.l.s4 1983009808
    %v376 = vunpack.c.0.s8 %v375
    %v377 = vlaneseq
    %v378 = vshrl.u32 %v377, 7
    %v379 = vsub.s32 %v376, %v378
    %v380 = vrot.slane %v373, %v379
    %v381 = vcombine.low %v351, %v355
    %v383 = vunpack.c.l.s4 1983009808
    %v384 = vunpack.c.0.s8 %v383
    %v385 = vlaneseq
    %v386 = vshrl.u32 %v385, 7
    %v387 = vsub.s32 %v384, %v386
    %v388 = vrot.slane %v381, %v387
    %v389 = vcombine.low %v364, %v372
    %v390 = vcombine.high %v364, %v372
    %v392 = vunpack.c.l.s4 1934713408
    %v393 = vunpack.c.0.s8 %v392
    %v394 = vlaneseq
    %v395 = vshrl.u32 %v394, 7
    %v396 = vsub.s32 %v393, %v395
    %v397 = vrot.slane %v389, %v396
    %v399 = vunpack.c.l.s4 1934713408
    %v400 = vunpack.c.0.s8 %v399
    %v401 = vlaneseq
    %v402 = vshrl.u32 %v401, 7
    %v403 = vsub.s32 %v400, %v402
    %v404 = vrot.slane %v390, %v403
    %v405 = vcombine.low %v380, %v388
    %v406 = vcombine.high %v380, %v388
    %v408 = vunpack.c.l.s4 1934713408
    %v409 = vunpack.c.0.s8 %v408
    %v410 = vlaneseq
    %v411 = vshrl.u32 %v410, 7
    %v412 = vsub.s32 %v409, %v411
    %v413 = vrot.slane %v405, %v412
    %v415 = vunpack.c.l.s4 1934713408
    %v416 = vunpack.c.0.s8 %v415
    %v417 = vlaneseq
    %v418 = vshrl.u32 %v417, 7
    %v419 = vsub.s32 %v416, %v418
    %v420 = vrot.slane %v406, %v419
    %v421 = vcombine.low %v397, %v413
    %v422 = vcombine.high %v397, %v413
    %v423 = vcombine.low %v404, %v420
    %v424 = vcombine.high %v404, %v420
    %v425 = vcombine.low %v342, %v346
    %v427 = vunpack.c.l.s4 1983009808
    %v428 = vunpack.c.0.s8 %v427
    %v429 = vlaneseq
    %v430 = vshrl.u32 %v429, 7
    %v431 = vsub.s32 %v428, %v430
    %v432 = vrot.slane %v425, %v431
    %v433 = vcombine.low %v344, %v348
    %v435 = vunpack.c.l.s4 1983009808
    %v436 = vunpack.c.0.s8 %v435
    %v437 = vlaneseq
    %v438 = vshrl.u32 %v437, 7
    %v439 = vsub.s32 %v436, %v438
    %v440 = vrot.slane %v433, %v439
    %v441 = vcombine.low %v350, %v354
    %v443 = vunpack.c.l.s4 1983009808
    %v444 = vunpack.c.0.s8 %v443
    %v445 = vlaneseq
    %v446 = vshrl.u32 %v445, 7
    %v447 = vsub.s32 %v444, %v446
    %v448 = vrot.slane %v441, %v447
    %v449 = vcombine.low %v352, %v356
    %v451 = vunpack.c.l.s4 1983009808
    %v452 = vunpack.c.0.s8 %v451
    %v453 = vlaneseq
    %v454 = vshrl.u32 %v453, 7
    %v455 = vsub.s32 %v452, %v454
    %v456 = vrot.slane %v449, %v455
    %v457 = vcombine.low %v432, %v440
    %v458 = vcombine.high %v432, %v440
    %v460 = vunpack.c.l.s4 1934713408
    %v461 = vunpack.c.0.s8 %v460
    %v462 = vlaneseq
    %v463 = vshrl.u32 %v462, 7
    %v464 = vsub.s32 %v461, %v463
    %v465 = vrot.slane %v457, %v464
    %v467 = vunpack.c.l.s4 1934713408
    %v468 = vunpack.c.0.s8 %v467
    %v469 = vlaneseq
    %v470 = vshrl.u32 %v469, 7
    %v471 = vsub.s32 %v468, %v470
    %v472 = vrot.slane %v458, %v471
    %v473 = vcombine.low %v448, %v456
    %v474 = vcombine.high %v448, %v456
    %v476 = vunpack.c.l.s4 1934713408
    %v477 = vunpack.c.0.s8 %v476
    %v478 = vlaneseq
    %v479 = vshrl.u32 %v478, 7
    %v480 = vsub.s32 %v477, %v479
    %v481 = vrot.slane %v473, %v480
    %v483 = vunpack.c.l.s4 1934713408
    %v484 = vunpack.c.0.s8 %v483
    %v485 = vlaneseq
    %v486 = vshrl.u32 %v485, 7
    %v487 = vsub.s32 %v484, %v486
    %v488 = vrot.slane %v474, %v487
    %v489 = vcombine.low %v465, %v481
    %v490 = vcombine.high %v465, %v481
    %v491 = vcombine.low %v472, %v488
    %v492 = vcombine.high %v472, %v488
    %v495 = vpack.i.b16 %v489, %v421
    %v496 = vshrl.u32 %v421, 16
    %v497 = vshrl.u32 %v489, 16
    %v498 = vpack.i.b16 %v497, %v496
    %v501 = vpack.i.b16 %v490, %v422
    %v502 = vshrl.u32 %v422, 16
    %v503 = vshrl.u32 %v490, 16
    %v504 = vpack.i.b16 %v503, %v502
    %v507 = vpack.i.b16 %v491, %v423
    %v508 = vshrl.u32 %v423, 16
    %v509 = vshrl.u32 %v491, 16
    %v510 = vpack.i.b16 %v509, %v508
    %v513 = vpack.i.b16 %v492, %v424
    %v514 = vshrl.u32 %v424, 16
    %v515 = vshrl.u32 %v492, 16
    %v516 = vpack.i.b16 %v515, %v514
    %517 = vrot.lane.b32.xlu0 %v498, 16
    %v518 = vpop.permute.xlu0 %517
    %519 = vrot.lane.b32.xlu0 %v501, 32
    %v520 = vpop.permute.xlu0 %519
    %521 = vrot.lane.b32.xlu0 %v504, 48
    %v522 = vpop.permute.xlu0 %521
    %523 = vrot.lane.b32.xlu0 %v507, 64
    %v524 = vpop.permute.xlu0 %523
    %525 = vrot.lane.b32.xlu0 %v510, 80
    %v526 = vpop.permute.xlu0 %525
    %527 = vrot.lane.b32.xlu0 %v513, 96
    %v528 = vpop.permute.xlu0 %527
    %529 = vrot.lane.b32.xlu0 %v516, 112
    %v530 = vpop.permute.xlu0 %529
    %vm531 = vcmask 130048
    %v534 = vsel %vm531, %v495, %v518
    %v536 = vsel %vm71, %v534, %v520
    %vm537 = vcmask 392192
    %v539 = vsel %vm537, %v536, %v522
    %vm540 = vcmask 523264
    %v542 = vsel %vm540, %v539, %v524
    %vm543 = vcmask 654336
    %v545 = vsel %vm543, %v542, %v526
    %vm546 = vcmask 785408
    %v548 = vsel %vm546, %v545, %v528
    %vm549 = vcmask 916480
    %v551 = vsel %vm549, %v548, %v530
    %v553 = vld [vmem:[%s2] sm:$0xf]
    %v554 = vld [vmem:[%s2 + $0x4] sm:$0xf]
    %v555 = vld [vmem:[%s2 + $0x8] sm:$0xf]
    %v556 = vld [vmem:[%s2 + $0xc] sm:$0xf]
    %v557 = vld [vmem:[%s2 + $0x10] sm:$0xf]
    %v558 = vld [vmem:[%s2 + $0x14] sm:$0xf]
    %v559 = vld [vmem:[%s2 + $0x18] sm:$0xf]
    %v560 = vld [vmem:[%s2 + $0x1c] sm:$0xf]
    %v561 = vld [vmem:[%s2 + $0x20] sm:$0xf]
    %v562 = vld [vmem:[%s2 + $0x24] sm:$0xf]
    %v563 = vld [vmem:[%s2 + $0x28] sm:$0xf]
    %v564 = vld [vmem:[%s2 + $0x2c] sm:$0xf]
    %v565 = vld [vmem:[%s2 + $0x30] sm:$0xf]
    %v566 = vld [vmem:[%s2 + $0x34] sm:$0xf]
    %v567 = vld [vmem:[%s2 + $0x38] sm:$0xf]
    %v568 = vld [vmem:[%s2 + $0x3c] sm:$0xf]
    %v585 = vunpack.c.l.b16 %v553
    %v586 = vunpack.c.l.b16 %v554
    %v587 = vunpack.c.l.b16 %v555
    %v588 = vunpack.c.l.b16 %v556
    %v589 = vunpack.c.l.b16 %v557
    %v590 = vunpack.c.l.b16 %v558
    %v591 = vunpack.c.l.b16 %v559
    %v592 = vunpack.c.l.b16 %v560
    %v593 = vunpack.c.l.b16 %v561
    %v594 = vunpack.c.l.b16 %v562
    %v595 = vunpack.c.l.b16 %v563
    %v596 = vunpack.c.l.b16 %v564
    %v597 = vunpack.c.l.b16 %v565
    %v598 = vunpack.c.l.b16 %v566
    %v599 = vunpack.c.l.b16 %v567
    %v600 = vunpack.c.l.b16 %v568
    %v601 = vpack.c.b16 %v586, %v585
    %v602 = vpack.c.b16 %v588, %v587
    %v603 = vpack.c.b16 %v590, %v589
    %v604 = vpack.c.b16 %v592, %v591
    %v605 = vpack.c.b16 %v594, %v593
    %v606 = vpack.c.b16 %v596, %v595
    %v607 = vpack.c.b16 %v598, %v597
    %v608 = vpack.c.b16 %v600, %v599
    %617 = vmatprep.subr.bf16.mxu0 0
    %618 = vmatpush1.bf16.msra.mxu0 %v608
    %619 = vmatprep.subr.bf16.mxu0 0
    %620 = vmatpush1.bf16.msra.mxu0 %v607
    %621 = vmatprep.subr.bf16.mxu0 0
    %622 = vmatpush1.bf16.msra.mxu0 %v606
    %623 = vmatprep.subr.bf16.mxu0 0
    %624 = vmatpush1.bf16.msra.mxu0 %v605
    %625 = vmatprep.subr.bf16.mxu0 0
    %626 = vmatpush1.bf16.msra.mxu0 %v604
    %627 = vmatprep.subr.bf16.mxu0 0
    %628 = vmatpush1.bf16.msra.mxu0 %v603
    %629 = vmatprep.subr.bf16.mxu0 0
    %630 = vmatpush1.bf16.msra.mxu0 %v602
    %631 = vmatprep.subr.bf16.mxu0 0
    %632 = vmatpush1.bf16.msra.mxu0 %v601
    %633 = vmatprep.subr.bf16.mxu0 0
    %634 = vmatpush2.bf16.msra.mxu0 0
    %635 = vmatprep.subr.bf16.mxu0 0
    %636 = vmatpush2.bf16.msra.mxu0 0
    %637 = vmatprep.subr.bf16.mxu0 0
    %638 = vmatpush2.bf16.msra.mxu0 0
    %639 = vmatprep.subr.bf16.mxu0 0
    %640 = vmatpush2.bf16.msra.mxu0 0
    %641 = vmatprep.subr.bf16.mxu0 0
    %642 = vmatpush2.bf16.msra.mxu0 0
    %643 = vmatprep.subr.bf16.mxu0 0
    %644 = vmatpush2.bf16.msra.mxu0 0
    %645 = vmatprep.subr.bf16.mxu0 0
    %646 = vmatpush2.bf16.msra.mxu0 0
    %647 = vmatprep.subr.bf16.mxu0 0
    %648 = vmatpush2.bf16.msra.mxu0 0
    %649 = vmatprep.mubr.bf16.mxu0 0
    %650 = vmatmul.mubr.bf16.gmra.mxu0 %v551
    %v651 = vpop.f32.mrf.mxu0
    %v652 = vadd.f32 0.0, %v651
    %v653 = vpop.f32.mrf.mxu0
    %v654 = vpop.f32.mrf.mxu0
    %v655 = vadd.f32 0.0, %v654
    %v656 = vpop.f32.mrf.mxu0
    %657 = vdwg.mxu0
    %660 = vrot.lane.b32.xlu0 %v652, 120
    %v661 = vpop.permute.xlu0 %660
    %662 = vrot.lane.b32.xlu0 %v655, 120
    %v663 = vpop.permute.xlu0 %662
    %666 = vrot.lane.b32.xlu0 %v652, 112
    %v667 = vpop.permute.xlu0 %666
    %668 = vrot.lane.b32.xlu0 %v655, 112
    %v669 = vpop.permute.xlu0 %668
    %672 = vrot.lane.b32.xlu0 %v652, 104
    %v673 = vpop.permute.xlu0 %672
    %674 = vrot.lane.b32.xlu0 %v655, 104
    %v675 = vpop.permute.xlu0 %674
    %678 = vrot.lane.b32.xlu0 %v652, 96
    %v679 = vpop.permute.xlu0 %678
    %680 = vrot.lane.b32.xlu0 %v655, 96
    %v681 = vpop.permute.xlu0 %680
    %684 = vrot.lane.b32.xlu0 %v652, 88
    %v685 = vpop.permute.xlu0 %684
    %686 = vrot.lane.b32.xlu0 %v655, 88
    %v687 = vpop.permute.xlu0 %686
    %690 = vrot.lane.b32.xlu0 %v652, 80
    %v691 = vpop.permute.xlu0 %690
    %692 = vrot.lane.b32.xlu0 %v655, 80
    %v693 = vpop.permute.xlu0 %692
    %696 = vrot.lane.b32.xlu0 %v652, 72
    %v697 = vpop.permute.xlu0 %696
    %698 = vrot.lane.b32.xlu0 %v655, 72
    %v699 = vpop.permute.xlu0 %698
    %v702 = vcombine.low %v652, %v667
    %v703 = vcombine.high %v652, %v667
    %v705 = vunpack.c.l.s4 1983009808
    %v706 = vunpack.c.0.s8 %v705
    %v707 = vlaneseq
    %v708 = vshrl.u32 %v707, 7
    %v709 = vsub.s32 %v706, %v708
    %v710 = vrot.slane %v702, %v709
    %v712 = vunpack.c.l.s4 1983009808
    %v713 = vunpack.c.0.s8 %v712
    %v714 = vlaneseq
    %v715 = vshrl.u32 %v714, 7
    %v716 = vsub.s32 %v713, %v715
    %v717 = vrot.slane %v703, %v716
    %v718 = vcombine.low %v661, %v673
    %v719 = vcombine.high %v661, %v673
    %v721 = vunpack.c.l.s4 1983009808
    %v722 = vunpack.c.0.s8 %v721
    %v723 = vlaneseq
    %v724 = vshrl.u32 %v723, 7
    %v725 = vsub.s32 %v722, %v724
    %v726 = vrot.slane %v718, %v725
    %v728 = vunpack.c.l.s4 1983009808
    %v729 = vunpack.c.0.s8 %v728
    %v730 = vlaneseq
    %v731 = vshrl.u32 %v730, 7
    %v732 = vsub.s32 %v729, %v731
    %v733 = vrot.slane %v719, %v732
    %v734 = vcombine.low %v679, %v691
    %v735 = vcombine.high %v679, %v691
    %v737 = vunpack.c.l.s4 1983009808
    %v738 = vunpack.c.0.s8 %v737
    %v739 = vlaneseq
    %v740 = vshrl.u32 %v739, 7
    %v741 = vsub.s32 %v738, %v740
    %v742 = vrot.slane %v734, %v741
    %v744 = vunpack.c.l.s4 1983009808
    %v745 = vunpack.c.0.s8 %v744
    %v746 = vlaneseq
    %v747 = vshrl.u32 %v746, 7
    %v748 = vsub.s32 %v745, %v747
    %v749 = vrot.slane %v735, %v748
    %v750 = vcombine.low %v685, %v697
    %v751 = vcombine.high %v685, %v697
    %v753 = vunpack.c.l.s4 1983009808
    %v754 = vunpack.c.0.s8 %v753
    %v755 = vlaneseq
    %v756 = vshrl.u32 %v755, 7
    %v757 = vsub.s32 %v754, %v756
    %v758 = vrot.slane %v750, %v757
    %v760 = vunpack.c.l.s4 1983009808
    %v761 = vunpack.c.0.s8 %v760
    %v762 = vlaneseq
    %v763 = vshrl.u32 %v762, 7
    %v764 = vsub.s32 %v761, %v763
    %v765 = vrot.slane %v751, %v764
    %v766 = vcombine.low %v710, %v726
    %v767 = vcombine.high %v710, %v726
    %v769 = vunpack.c.l.s4 1934713408
    %v770 = vunpack.c.0.s8 %v769
    %v771 = vlaneseq
    %v772 = vshrl.u32 %v771, 7
    %v773 = vsub.s32 %v770, %v772
    %v774 = vrot.slane %v766, %v773
    %v776 = vunpack.c.l.s4 1934713408
    %v777 = vunpack.c.0.s8 %v776
    %v778 = vlaneseq
    %v779 = vshrl.u32 %v778, 7
    %v780 = vsub.s32 %v777, %v779
    %v781 = vrot.slane %v767, %v780
    %v782 = vcombine.low %v717, %v733
    %v783 = vcombine.high %v717, %v733
    %v785 = vunpack.c.l.s4 1934713408
    %v786 = vunpack.c.0.s8 %v785
    %v787 = vlaneseq
    %v788 = vshrl.u32 %v787, 7
    %v789 = vsub.s32 %v786, %v788
    %v790 = vrot.slane %v782, %v789
    %v792 = vunpack.c.l.s4 1934713408
    %v793 = vunpack.c.0.s8 %v792
    %v794 = vlaneseq
    %v795 = vshrl.u32 %v794, 7
    %v796 = vsub.s32 %v793, %v795
    %v797 = vrot.slane %v783, %v796
    %v798 = vcombine.low %v742, %v758
    %v799 = vcombine.high %v742, %v758
    %v801 = vunpack.c.l.s4 1934713408
    %v802 = vunpack.c.0.s8 %v801
    %v803 = vlaneseq
    %v804 = vshrl.u32 %v803, 7
    %v805 = vsub.s32 %v802, %v804
    %v806 = vrot.slane %v798, %v805
    %v808 = vunpack.c.l.s4 1934713408
    %v809 = vunpack.c.0.s8 %v808
    %v810 = vlaneseq
    %v811 = vshrl.u32 %v810, 7
    %v812 = vsub.s32 %v809, %v811
    %v813 = vrot.slane %v799, %v812
    %v814 = vcombine.low %v749, %v765
    %v815 = vcombine.high %v749, %v765
    %v817 = vunpack.c.l.s4 1934713408
    %v818 = vunpack.c.0.s8 %v817
    %v819 = vlaneseq
    %v820 = vshrl.u32 %v819, 7
    %v821 = vsub.s32 %v818, %v820
    %v822 = vrot.slane %v814, %v821
    %v824 = vunpack.c.l.s4 1934713408
    %v825 = vunpack.c.0.s8 %v824
    %v826 = vlaneseq
    %v827 = vshrl.u32 %v826, 7
    %v828 = vsub.s32 %v825, %v827
    %v829 = vrot.slane %v815, %v828
    %v830 = vcombine.low %v774, %v806
    %v831 = vcombine.high %v774, %v806
    %v832 = vcombine.low %v781, %v813
    %v833 = vcombine.high %v781, %v813
    %v834 = vcombine.low %v790, %v822
    %v835 = vcombine.high %v790, %v822
    %v836 = vcombine.low %v797, %v829
    %v837 = vcombine.high %v797, %v829
    %v838 = vcombine.low %v655, %v669
    %v839 = vcombine.high %v655, %v669
    %v841 = vunpack.c.l.s4 1983009808
    %v842 = vunpack.c.0.s8 %v841
    %v843 = vlaneseq
    %v844 = vshrl.u32 %v843, 7
    %v845 = vsub.s32 %v842, %v844
    %v846 = vrot.slane %v838, %v845
    %v848 = vunpack.c.l.s4 1983009808
    %v849 = vunpack.c.0.s8 %v848
    %v850 = vlaneseq
    %v851 = vshrl.u32 %v850, 7
    %v852 = vsub.s32 %v849, %v851
    %v853 = vrot.slane %v839, %v852
    %v854 = vcombine.low %v663, %v675
    %v855 = vcombine.high %v663, %v675
    %v857 = vunpack.c.l.s4 1983009808
    %v858 = vunpack.c.0.s8 %v857
    %v859 = vlaneseq
    %v860 = vshrl.u32 %v859, 7
    %v861 = vsub.s32 %v858, %v860
    %v862 = vrot.slane %v854, %v861
    %v864 = vunpack.c.l.s4 1983009808
    %v865 = vunpack.c.0.s8 %v864
    %v866 = vlaneseq
    %v867 = vshrl.u32 %v866, 7
    %v868 = vsub.s32 %v865, %v867
    %v869 = vrot.slane %v855, %v868
    %v870 = vcombine.low %v681, %v693
    %v871 = vcombine.high %v681, %v693
    %v873 = vunpack.c.l.s4 1983009808
    %v874 = vunpack.c.0.s8 %v873
    %v875 = vlaneseq
    %v876 = vshrl.u32 %v875, 7
    %v877 = vsub.s32 %v874, %v876
    %v878 = vrot.slane %v870, %v877
    %v880 = vunpack.c.l.s4 1983009808
    %v881 = vunpack.c.0.s8 %v880
    %v882 = vlaneseq
    %v883 = vshrl.u32 %v882, 7
    %v884 = vsub.s32 %v881, %v883
    %v885 = vrot.slane %v871, %v884
    %v886 = vcombine.low %v687, %v699
    %v887 = vcombine.high %v687, %v699
    %v889 = vunpack.c.l.s4 1983009808
    %v890 = vunpack.c.0.s8 %v889
    %v891 = vlaneseq
    %v892 = vshrl.u32 %v891, 7
    %v893 = vsub.s32 %v890, %v892
    %v894 = vrot.slane %v886, %v893
    %v896 = vunpack.c.l.s4 1983009808
    %v897 = vunpack.c.0.s8 %v896
    %v898 = vlaneseq
    %v899 = vshrl.u32 %v898, 7
    %v900 = vsub.s32 %v897, %v899
    %v901 = vrot.slane %v887, %v900
    %v902 = vcombine.low %v846, %v862
    %v903 = vcombine.high %v846, %v862
    %v905 = vunpack.c.l.s4 1934713408
    %v906 = vunpack.c.0.s8 %v905
    %v907 = vlaneseq
    %v908 = vshrl.u32 %v907, 7
    %v909 = vsub.s32 %v906, %v908
    %v910 = vrot.slane %v902, %v909
    %v912 = vunpack.c.l.s4 1934713408
    %v913 = vunpack.c.0.s8 %v912
    %v914 = vlaneseq
    %v915 = vshrl.u32 %v914, 7
    %v916 = vsub.s32 %v913, %v915
    %v917 = vrot.slane %v903, %v916
    %v918 = vcombine.low %v853, %v869
    %v919 = vcombine.high %v853, %v869
    %v921 = vunpack.c.l.s4 1934713408
    %v922 = vunpack.c.0.s8 %v921
    %v923 = vlaneseq
    %v924 = vshrl.u32 %v923, 7
    %v925 = vsub.s32 %v922, %v924
    %v926 = vrot.slane %v918, %v925
    %v928 = vunpack.c.l.s4 1934713408
    %v929 = vunpack.c.0.s8 %v928
    %v930 = vlaneseq
    %v931 = vshrl.u32 %v930, 7
    %v932 = vsub.s32 %v929, %v931
    %v933 = vrot.slane %v919, %v932
    %v934 = vcombine.low %v878, %v894
    %v935 = vcombine.high %v878, %v894
    %v937 = vunpack.c.l.s4 1934713408
    %v938 = vunpack.c.0.s8 %v937
    %v939 = vlaneseq
    %v940 = vshrl.u32 %v939, 7
    %v941 = vsub.s32 %v938, %v940
    %v942 = vrot.slane %v934, %v941
    %v944 = vunpack.c.l.s4 1934713408
    %v945 = vunpack.c.0.s8 %v944
    %v946 = vlaneseq
    %v947 = vshrl.u32 %v946, 7
    %v948 = vsub.s32 %v945, %v947
    %v949 = vrot.slane %v935, %v948
    %v950 = vcombine.low %v885, %v901
    %v951 = vcombine.high %v885, %v901
    %v953 = vunpack.c.l.s4 1934713408
    %v954 = vunpack.c.0.s8 %v953
    %v955 = vlaneseq
    %v956 = vshrl.u32 %v955, 7
    %v957 = vsub.s32 %v954, %v956
    %v958 = vrot.slane %v950, %v957
    %v960 = vunpack.c.l.s4 1934713408
    %v961 = vunpack.c.0.s8 %v960
    %v962 = vlaneseq
    %v963 = vshrl.u32 %v962, 7
    %v964 = vsub.s32 %v961, %v963
    %v965 = vrot.slane %v951, %v964
    %v966 = vcombine.low %v910, %v942
    %v967 = vcombine.high %v910, %v942
    %v968 = vcombine.low %v917, %v949
    %v969 = vcombine.high %v917, %v949
    %v970 = vcombine.low %v926, %v958
    %v971 = vcombine.high %v926, %v958
    %v972 = vcombine.low %v933, %v965
    %v973 = vcombine.high %v933, %v965
    %975 = vrot.lane.b32.xlu0 %v341, 96
    %v976 = vpop.permute.xlu0 %975
    %v978 = vsel %vm531, %v341, 0
    %v981 = vsel %vm531, %v976, 0
    %983 = vmatprep.subr.bf16.mxu0 0
    %984 = vmatpush1.bf16.xpose.msra.mxu0 0
    %985 = vmatprep.subr.bf16.mxu0 0
    %986 = vmatpush1.bf16.xpose.msra.mxu0 0
    %987 = vmatprep.subr.bf16.mxu0 0
    %988 = vmatpush1.bf16.xpose.msra.mxu0 0
    %989 = vmatprep.subr.bf16.mxu0 0
    %990 = vmatpush1.bf16.xpose.msra.mxu0 0
    %991 = vmatprep.subr.bf16.mxu0 0
    %992 = vmatpush1.bf16.xpose.msra.mxu0 0
    %993 = vmatprep.subr.bf16.mxu0 0
    %994 = vmatpush1.bf16.xpose.msra.mxu0 0
    %995 = vmatprep.subr.bf16.mxu0 0
    %996 = vmatpush1.bf16.xpose.msra.mxu0 0
    %997 = vmatprep.subr.bf16.mxu0 0
    %998 = vmatpush1.bf16.xpose.msra.mxu0 %v981
    %999 = vmatprep.subr.bf16.mxu0 0
    %1000 = vmatpush2.bf16.xpose.msra.mxu0 0
    %1001 = vmatprep.subr.bf16.mxu0 0
    %1002 = vmatpush2.bf16.xpose.msra.mxu0 0
    %1003 = vmatprep.subr.bf16.mxu0 0
    %1004 = vmatpush2.bf16.xpose.msra.mxu0 0
    %1005 = vmatprep.subr.bf16.mxu0 0
    %1006 = vmatpush2.bf16.xpose.msra.mxu0 0
    %1007 = vmatprep.subr.bf16.mxu0 0
    %1008 = vmatpush2.bf16.xpose.msra.mxu0 0
    %1009 = vmatprep.subr.bf16.mxu0 0
    %1010 = vmatpush2.bf16.xpose.msra.mxu0 0
    %1011 = vmatprep.subr.bf16.mxu0 0
    %1012 = vmatpush2.bf16.xpose.msra.mxu0 0
    %1013 = vmatprep.subr.bf16.mxu0 0
    %1014 = vmatpush2.bf16.xpose.msra.mxu0 0
    %1015 = vmatprep.mubr.bf16.mxu0 0
    %1016 = vmatmul.mubr.bf16.gmra.mxu0 %v978
    %v1017 = vpop.f32.mrf.mxu0
    %v1018 = vadd.f32 %v830, %v1017
    %v1019 = vpop.f32.mrf.mxu0
    %v1020 = vpop.f32.mrf.mxu0
    %v1021 = vpop.f32.mrf.mxu0
    %1022 = vdwg.mxu0
    %1024 = vrot.lane.b32.xlu0 %v342, 96
    %v1025 = vpop.permute.xlu0 %1024
    %v1027 = vsel %vm531, %v342, 0
    %v1030 = vsel %vm531, %v1025, 0
    %1032 = vmatprep.subr.bf16.mxu0 0
    %1033 = vmatpush1.bf16.xpose.msra.mxu0 0
    %1034 = vmatprep.subr.bf16.mxu0 0
    %1035 = vmatpush1.bf16.xpose.msra.mxu0 0
    %1036 = vmatprep.subr.bf16.mxu0 0
    %1037 = vmatpush1.bf16.xpose.msra.mxu0 0
    %1038 = vmatprep.subr.bf16.mxu0 0
    %1039 = vmatpush1.bf16.xpose.msra.mxu0 0
    %1040 = vmatprep.subr.bf16.mxu0 0
    %1041 = vmatpush1.bf16.xpose.msra.mxu0 0
    %1042 = vmatprep.subr.bf16.mxu0 0
    %1043 = vmatpush1.bf16.xpose.msra.mxu0 0
    %1044 = vmatprep.subr.bf16.mxu0 0
    %1045 = vmatpush1.bf16.xpose.msra.mxu0 0
    %1046 = vmatprep.subr.bf16.mxu0 0
    %1047 = vmatpush1.bf16.xpose.msra.mxu0 %v1030
    %1048 = vmatprep.subr.bf16.mxu0 0
    %1049 = vmatpush2.bf16.xpose.msra.mxu0 0
    %1050 = vmatprep.subr.bf16.mxu0 0
    %1051 = vmatpush2.bf16.xpose.msra.mxu0 0
    %1052 = vmatprep.subr.bf16.mxu0 0
    %1053 = vmatpush2.bf16.xpose.msra.mxu0 0
    %1054 = vmatprep.subr.bf16.mxu0 0
    %1055 = vmatpush2.bf16.xpose.msra.mxu0 0
    %1056 = vmatprep.subr.bf16.mxu0 0
    %1057 = vmatpush2.bf16.xpose.msra.mxu0 0
    %1058 = vmatprep.subr.bf16.mxu0 0
    %1059 = vmatpush2.bf16.xpose.msra.mxu0 0
    %1060 = vmatprep.subr.bf16.mxu0 0
    %1061 = vmatpush2.bf16.xpose.msra.mxu0 0
    %1062 = vmatprep.subr.bf16.mxu0 0
    %1063 = vmatpush2.bf16.xpose.msra.mxu0 0
    %1064 = vmatprep.mubr.bf16.mxu0 0
    %1065 = vmatmul.mubr.bf16.gmra.mxu0 %v1027
    %v1066 = vpop.f32.mrf.mxu0
    %v1067 = vadd.f32 %v831, %v1066
    %v1068 = vpop.f32.mrf.mxu0
    %v1069 = vpop.f32.mrf.mxu0
    %v1070 = vpop.f32.mrf.mxu0
    %1071 = vdwg.mxu0
    %1073 = vrot.lane.b32.xlu0 %v343, 96
    %v1074 = vpop.permute.xlu0 %1073
    %v1076 = vsel %vm531, %v343, 0
    %v1079 = vsel %vm531, %v1074, 0
    %1081 = vmatprep.subr.bf16.mxu0 0
    %1082 = vmatpush1.bf16.xpose.msra.mxu0 0
    %1083 = vmatprep.subr.bf16.mxu0 0
    %1084 = vmatpush1.bf16.xpose.msra.mxu0 0
    %1085 = vmatprep.subr.bf16.mxu0 0
    %1086 = vmatpush1.bf16.xpose.msra.mxu0 0
    %1087 = vmatprep.subr.bf16.mxu0 0
    %1088 = vmatpush1.bf16.xpose.msra.mxu0 0
    %1089 = vmatprep.subr.bf16.mxu0 0
    %1090 = vmatpush1.bf16.xpose.msra.mxu0 0
    %1091 = vmatprep.subr.bf16.mxu0 0
    %1092 = vmatpush1.bf16.xpose.msra.mxu0 0
    %1093 = vmatprep.subr.bf16.mxu0 0
    %1094 = vmatpush1.bf16.xpose.msra.mxu0 0
    %1095 = vmatprep.subr.bf16.mxu0 0
    %1096 = vmatpush1.bf16.xpose.msra.mxu0 %v1079
    %1097 = vmatprep.subr.bf16.mxu0 0
    %1098 = vmatpush2.bf16.xpose.msra.mxu0 0
    %1099 = vmatprep.subr.bf16.mxu0 0
    %1100 = vmatpush2.bf16.xpose.msra.mxu0 0
    %1101 = vmatprep.subr.bf16.mxu0 0
    %1102 = vmatpush2.bf16.xpose.msra.mxu0 0
    %1103 = vmatprep.subr.bf16.mxu0 0
    %1104 = vmatpush2.bf16.xpose.msra.mxu0 0
    %1105 = vmatprep.subr.bf16.mxu0 0
    %1106 = vmatpush2.bf16.xpose.msra.mxu0 0
    %1107 = vmatprep.subr.bf16.mxu0 0
    %1108 = vmatpush2.bf16.xpose.msra.mxu0 0
    %1109 = vmatprep.subr.bf16.mxu0 0
    %1110 = vmatpush2.bf16.xpose.msra.mxu0 0
    %1111 = vmatprep.subr.bf16.mxu0 0
    %1112 = vmatpush2.bf16.xpose.msra.mxu0 0
    %1113 = vmatprep.mubr.bf16.mxu0 0
    %1114 = vmatmul.mubr.bf16.gmra.mxu0 %v1076
    %v1115 = vpop.f32.mrf.mxu0
    %v1116 = vadd.f32 %v832, %v1115
    %v1117 = vpop.f32.mrf.mxu0
    %v1118 = vpop.f32.mrf.mxu0
    %v1119 = vpop.f32.mrf.mxu0
    %1120 = vdwg.mxu0
    %1122 = vrot.lane.b32.xlu0 %v344, 96
    %v1123 = vpop.permute.xlu0 %1122
    %v1125 = vsel %vm531, %v344, 0
    %v1128 = vsel %vm531, %v1123, 0
    %1130 = vmatprep.subr.bf16.mxu0 0
    %1131 = vmatpush1.bf16.xpose.msra.mxu0 0
    %1132 = vmatprep.subr.bf16.mxu0 0
    %1133 = vmatpush1.bf16.xpose.msra.mxu0 0
    %1134 = vmatprep.subr.bf16.mxu0 0
    %1135 = vmatpush1.bf16.xpose.msra.mxu0 0
    %1136 = vmatprep.subr.bf16.mxu0 0
    %1137 = vmatpush1.bf16.xpose.msra.mxu0 0
    %1138 = vmatprep.subr.bf16.mxu0 0
    %1139 = vmatpush1.bf16.xpose.msra.mxu0 0
    %1140 = vmatprep.subr.bf16.mxu0 0
    %1141 = vmatpush1.bf16.xpose.msra.mxu0 0
    %1142 = vmatprep.subr.bf16.mxu0 0
    %1143 = vmatpush1.bf16.xpose.msra.mxu0 0
    %1144 = vmatprep.subr.bf16.mxu0 0
    %1145 = vmatpush1.bf16.xpose.msra.mxu0 %v1128
    %1146 = vmatprep.subr.bf16.mxu0 0
    %1147 = vmatpush2.bf16.xpose.msra.mxu0 0
    %1148 = vmatprep.subr.bf16.mxu0 0
    %1149 = vmatpush2.bf16.xpose.msra.mxu0 0
    %1150 = vmatprep.subr.bf16.mxu0 0
    %1151 = vmatpush2.bf16.xpose.msra.mxu0 0
    %1152 = vmatprep.subr.bf16.mxu0 0
    %1153 = vmatpush2.bf16.xpose.msra.mxu0 0
    %1154 = vmatprep.subr.bf16.mxu0 0
    %1155 = vmatpush2.bf16.xpose.msra.mxu0 0
    %1156 = vmatprep.subr.bf16.mxu0 0
    %1157 = vmatpush2.bf16.xpose.msra.mxu0 0
    %1158 = vmatprep.subr.bf16.mxu0 0
    %1159 = vmatpush2.bf16.xpose.msra.mxu0 0
    %1160 = vmatprep.subr.bf16.mxu0 0
    %1161 = vmatpush2.bf16.xpose.msra.mxu0 0
    %1162 = vmatprep.mubr.bf16.mxu0 0
    %1163 = vmatmul.mubr.bf16.gmra.mxu0 %v1125
    %v1164 = vpop.f32.mrf.mxu0
    %v1165 = vadd.f32 %v833, %v1164
    %v1166 = vpop.f32.mrf.mxu0
    %v1167 = vpop.f32.mrf.mxu0
    %v1168 = vpop.f32.mrf.mxu0
    %1169 = vdwg.mxu0
    %1171 = vrot.lane.b32.xlu0 %v345, 96
    %v1172 = vpop.permute.xlu0 %1171
    %v1174 = vsel %vm531, %v345, 0
    %v1177 = vsel %vm531, %v1172, 0
    %1179 = vmatprep.subr.bf16.mxu0 0
    %1180 = vmatpush1.bf16.xpose.msra.mxu0 0
    %1181 = vmatprep.subr.bf16.mxu0 0
    %1182 = vmatpush1.bf16.xpose.msra.mxu0 0
    %1183 = vmatprep.subr.bf16.mxu0 0
    %1184 = vmatpush1.bf16.xpose.msra.mxu0 0
    %1185 = vmatprep.subr.bf16.mxu0 0
    %1186 = vmatpush1.bf16.xpose.msra.mxu0 0
    %1187 = vmatprep.subr.bf16.mxu0 0
    %1188 = vmatpush1.bf16.xpose.msra.mxu0 0
    %1189 = vmatprep.subr.bf16.mxu0 0
    %1190 = vmatpush1.bf16.xpose.msra.mxu0 0
    %1191 = vmatprep.subr.bf16.mxu0 0
    %1192 = vmatpush1.bf16.xpose.msra.mxu0 0
    %1193 = vmatprep.subr.bf16.mxu0 0
    %1194 = vmatpush1.bf16.xpose.msra.mxu0 %v1177
    %1195 = vmatprep.subr.bf16.mxu0 0
    %1196 = vmatpush2.bf16.xpose.msra.mxu0 0
    %1197 = vmatprep.subr.bf16.mxu0 0
    %1198 = vmatpush2.bf16.xpose.msra.mxu0 0
    %1199 = vmatprep.subr.bf16.mxu0 0
    %1200 = vmatpush2.bf16.xpose.msra.mxu0 0
    %1201 = vmatprep.subr.bf16.mxu0 0
    %1202 = vmatpush2.bf16.xpose.msra.mxu0 0
    %1203 = vmatprep.subr.bf16.mxu0 0
    %1204 = vmatpush2.bf16.xpose.msra.mxu0 0
    %1205 = vmatprep.subr.bf16.mxu0 0
    %1206 = vmatpush2.bf16.xpose.msra.mxu0 0
    %1207 = vmatprep.subr.bf16.mxu0 0
    %1208 = vmatpush2.bf16.xpose.msra.mxu0 0
    %1209 = vmatprep.subr.bf16.mxu0 0
    %1210 = vmatpush2.bf16.xpose.msra.mxu0 0
    %1211 = vmatprep.mubr.bf16.mxu0 0
    %1212 = vmatmul.mubr.bf16.gmra.mxu0 %v1174
    %v1213 = vpop.f32.mrf.mxu0
    %v1214 = vadd.f32 %v834, %v1213
    %v1215 = vpop.f32.mrf.mxu0
    %v1216 = vpop.f32.mrf.mxu0
    %v1217 = vpop.f32.mrf.mxu0
    %1218 = vdwg.mxu0
    %1220 = vrot.lane.b32.xlu0 %v346, 96
    %v1221 = vpop.permute.xlu0 %1220
    %v1223 = vsel %vm531, %v346, 0
    %v1226 = vsel %vm531, %v1221, 0
    %1228 = vmatprep.subr.bf16.mxu0 0
    %1229 = vmatpush1.bf16.xpose.msra.mxu0 0
    %1230 = vmatprep.subr.bf16.mxu0 0
    %1231 = vmatpush1.bf16.xpose.msra.mxu0 0
    %1232 = vmatprep.subr.bf16.mxu0 0
    %1233 = vmatpush1.bf16.xpose.msra.mxu0 0
    %1234 = vmatprep.subr.bf16.mxu0 0
    %1235 = vmatpush1.bf16.xpose.msra.mxu0 0
    %1236 = vmatprep.subr.bf16.mxu0 0
    %1237 = vmatpush1.bf16.xpose.msra.mxu0 0
    %1238 = vmatprep.subr.bf16.mxu0 0
    %1239 = vmatpush1.bf16.xpose.msra.mxu0 0
    %1240 = vmatprep.subr.bf16.mxu0 0
    %1241 = vmatpush1.bf16.xpose.msra.mxu0 0
    %1242 = vmatprep.subr.bf16.mxu0 0
    %1243 = vmatpush1.bf16.xpose.msra.mxu0 %v1226
    %1244 = vmatprep.subr.bf16.mxu0 0
    %1245 = vmatpush2.bf16.xpose.msra.mxu0 0
    %1246 = vmatprep.subr.bf16.mxu0 0
    %1247 = vmatpush2.bf16.xpose.msra.mxu0 0
    %1248 = vmatprep.subr.bf16.mxu0 0
    %1249 = vmatpush2.bf16.xpose.msra.mxu0 0
    %1250 = vmatprep.subr.bf16.mxu0 0
    %1251 = vmatpush2.bf16.xpose.msra.mxu0 0
    %1252 = vmatprep.subr.bf16.mxu0 0
    %1253 = vmatpush2.bf16.xpose.msra.mxu0 0
    %1254 = vmatprep.subr.bf16.mxu0 0
    %1255 = vmatpush2.bf16.xpose.msra.mxu0 0
    %1256 = vmatprep.subr.bf16.mxu0 0
    %1257 = vmatpush2.bf16.xpose.msra.mxu0 0
    %1258 = vmatprep.subr.bf16.mxu0 0
    %1259 = vmatpush2.bf16.xpose.msra.mxu0 0
    %1260 = vmatprep.mubr.bf16.mxu0 0
    %1261 = vmatmul.mubr.bf16.gmra.mxu0 %v1223
    %v1262 = vpop.f32.mrf.mxu0
    %v1263 = vadd.f32 %v835, %v1262
    %v1264 = vpop.f32.mrf.mxu0
    %v1265 = vpop.f32.mrf.mxu0
    %v1266 = vpop.f32.mrf.mxu0
    %1267 = vdwg.mxu0
    %1269 = vrot.lane.b32.xlu0 %v347, 96
    %v1270 = vpop.permute.xlu0 %1269
    %v1272 = vsel %vm531, %v347, 0
    %v1275 = vsel %vm531, %v1270, 0
    %1277 = vmatprep.subr.bf16.mxu0 0
    %1278 = vmatpush1.bf16.xpose.msra.mxu0 0
    %1279 = vmatprep.subr.bf16.mxu0 0
    %1280 = vmatpush1.bf16.xpose.msra.mxu0 0
    %1281 = vmatprep.subr.bf16.mxu0 0
    %1282 = vmatpush1.bf16.xpose.msra.mxu0 0
    %1283 = vmatprep.subr.bf16.mxu0 0
    %1284 = vmatpush1.bf16.xpose.msra.mxu0 0
    %1285 = vmatprep.subr.bf16.mxu0 0
    %1286 = vmatpush1.bf16.xpose.msra.mxu0 0
    %1287 = vmatprep.subr.bf16.mxu0 0
    %1288 = vmatpush1.bf16.xpose.msra.mxu0 0
    %1289 = vmatprep.subr.bf16.mxu0 0
    %1290 = vmatpush1.bf16.xpose.msra.mxu0 0
    %1291 = vmatprep.subr.bf16.mxu0 0
    %1292 = vmatpush1.bf16.xpose.msra.mxu0 %v1275
    %1293 = vmatprep.subr.bf16.mxu0 0
    %1294 = vmatpush2.bf16.xpose.msra.mxu0 0
    %1295 = vmatprep.subr.bf16.mxu0 0
    %1296 = vmatpush2.bf16.xpose.msra.mxu0 0
    %1297 = vmatprep.subr.bf16.mxu0 0
    %1298 = vmatpush2.bf16.xpose.msra.mxu0 0
    %1299 = vmatprep.subr.bf16.mxu0 0
    %1300 = vmatpush2.bf16.xpose.msra.mxu0 0
    %1301 = vmatprep.subr.bf16.mxu0 0
    %1302 = vmatpush2.bf16.xpose.msra.mxu0 0
    %1303 = vmatprep.subr.bf16.mxu0 0
    %1304 = vmatpush2.bf16.xpose.msra.mxu0 0
    %1305 = vmatprep.subr.bf16.mxu0 0
    %1306 = vmatpush2.bf16.xpose.msra.mxu0 0
    %1307 = vmatprep.subr.bf16.mxu0 0
    %1308 = vmatpush2.bf16.xpose.msra.mxu0 0
    %1309 = vmatprep.mubr.bf16.mxu0 0
    %1310 = vmatmul.mubr.bf16.gmra.mxu0 %v1272
    %v1311 = vpop.f32.mrf.mxu0
    %v1312 = vadd.f32 %v836, %v1311
    %v1313 = vpop.f32.mrf.mxu0
    %v1314 = vpop.f32.mrf.mxu0
    %v1315 = vpop.f32.mrf.mxu0
    %1316 = vdwg.mxu0
    %1318 = vrot.lane.b32.xlu0 %v348, 96
    %v1319 = vpop.permute.xlu0 %1318
    %v1321 = vsel %vm531, %v348, 0
    %v1324 = vsel %vm531, %v1319, 0
    %1326 = vmatprep.subr.bf16.mxu0 0
    %1327 = vmatpush1.bf16.xpose.msra.mxu0 0
    %1328 = vmatprep.subr.bf16.mxu0 0
    %1329 = vmatpush1.bf16.xpose.msra.mxu0 0
    %1330 = vmatprep.subr.bf16.mxu0 0
    %1331 = vmatpush1.bf16.xpose.msra.mxu0 0
    %1332 = vmatprep.subr.bf16.mxu0 0
    %1333 = vmatpush1.bf16.xpose.msra.mxu0 0
    %1334 = vmatprep.subr.bf16.mxu0 0
    %1335 = vmatpush1.bf16.xpose.msra.mxu0 0
    %1336 = vmatprep.subr.bf16.mxu0 0
    %1337 = vmatpush1.bf16.xpose.msra.mxu0 0
    %1338 = vmatprep.subr.bf16.mxu0 0
    %1339 = vmatpush1.bf16.xpose.msra.mxu0 0
    %1340 = vmatprep.subr.bf16.mxu0 0
    %1341 = vmatpush1.bf16.xpose.msra.mxu0 %v1324
    %1342 = vmatprep.subr.bf16.mxu0 0
    %1343 = vmatpush2.bf16.xpose.msra.mxu0 0
    %1344 = vmatprep.subr.bf16.mxu0 0
    %1345 = vmatpush2.bf16.xpose.msra.mxu0 0
    %1346 = vmatprep.subr.bf16.mxu0 0
    %1347 = vmatpush2.bf16.xpose.msra.mxu0 0
    %1348 = vmatprep.subr.bf16.mxu0 0
    %1349 = vmatpush2.bf16.xpose.msra.mxu0 0
    %1350 = vmatprep.subr.bf16.mxu0 0
    %1351 = vmatpush2.bf16.xpose.msra.mxu0 0
    %1352 = vmatprep.subr.bf16.mxu0 0
    %1353 = vmatpush2.bf16.xpose.msra.mxu0 0
    %1354 = vmatprep.subr.bf16.mxu0 0
    %1355 = vmatpush2.bf16.xpose.msra.mxu0 0
    %1356 = vmatprep.subr.bf16.mxu0 0
    %1357 = vmatpush2.bf16.xpose.msra.mxu0 0
    %1358 = vmatprep.mubr.bf16.mxu0 0
    %1359 = vmatmul.mubr.bf16.gmra.mxu0 %v1321
    %v1360 = vpop.f32.mrf.mxu0
    %v1361 = vadd.f32 %v837, %v1360
    %v1362 = vpop.f32.mrf.mxu0
    %v1363 = vpop.f32.mrf.mxu0
    %v1364 = vpop.f32.mrf.mxu0
    %1365 = vdwg.mxu0
    %1367 = vrot.lane.b32.xlu0 %v349, 96
    %v1368 = vpop.permute.xlu0 %1367
    %v1370 = vsel %vm531, %v349, 0
    %v1373 = vsel %vm531, %v1368, 0
    %1375 = vmatprep.subr.bf16.mxu0 0
    %1376 = vmatpush1.bf16.xpose.msra.mxu0 0
    %1377 = vmatprep.subr.bf16.mxu0 0
    %1378 = vmatpush1.bf16.xpose.msra.mxu0 0
    %1379 = vmatprep.subr.bf16.mxu0 0
    %1380 = vmatpush1.bf16.xpose.msra.mxu0 0
    %1381 = vmatprep.subr.bf16.mxu0 0
    %1382 = vmatpush1.bf16.xpose.msra.mxu0 0
    %1383 = vmatprep.subr.bf16.mxu0 0
    %1384 = vmatpush1.bf16.xpose.msra.mxu0 0
    %1385 = vmatprep.subr.bf16.mxu0 0
    %1386 = vmatpush1.bf16.xpose.msra.mxu0 0
    %1387 = vmatprep.subr.bf16.mxu0 0
    %1388 = vmatpush1.bf16.xpose.msra.mxu0 0
    %1389 = vmatprep.subr.bf16.mxu0 0
    %1390 = vmatpush1.bf16.xpose.msra.mxu0 %v1373
    %1391 = vmatprep.subr.bf16.mxu0 0
    %1392 = vmatpush2.bf16.xpose.msra.mxu0 0
    %1393 = vmatprep.subr.bf16.mxu0 0
    %1394 = vmatpush2.bf16.xpose.msra.mxu0 0
    %1395 = vmatprep.subr.bf16.mxu0 0
    %1396 = vmatpush2.bf16.xpose.msra.mxu0 0
    %1397 = vmatprep.subr.bf16.mxu0 0
    %1398 = vmatpush2.bf16.xpose.msra.mxu0 0
    %1399 = vmatprep.subr.bf16.mxu0 0
    %1400 = vmatpush2.bf16.xpose.msra.mxu0 0
    %1401 = vmatprep.subr.bf16.mxu0 0
    %1402 = vmatpush2.bf16.xpose.msra.mxu0 0
    %1403 = vmatprep.subr.bf16.mxu0 0
    %1404 = vmatpush2.bf16.xpose.msra.mxu0 0
    %1405 = vmatprep.subr.bf16.mxu0 0
    %1406 = vmatpush2.bf16.xpose.msra.mxu0 0
    %1407 = vmatprep.mubr.bf16.mxu0 0
    %1408 = vmatmul.mubr.bf16.gmra.mxu0 %v1370
    %v1409 = vpop.f32.mrf.mxu0
    %v1410 = vadd.f32 %v966, %v1409
    %v1411 = vpop.f32.mrf.mxu0
    %v1412 = vpop.f32.mrf.mxu0
    %v1413 = vpop.f32.mrf.mxu0
    %1414 = vdwg.mxu0
    %1416 = vrot.lane.b32.xlu0 %v350, 96
    %v1417 = vpop.permute.xlu0 %1416
    %v1419 = vsel %vm531, %v350, 0
    %v1422 = vsel %vm531, %v1417, 0
    %1424 = vmatprep.subr.bf16.mxu0 0
    %1425 = vmatpush1.bf16.xpose.msra.mxu0 0
    %1426 = vmatprep.subr.bf16.mxu0 0
    %1427 = vmatpush1.bf16.xpose.msra.mxu0 0
    %1428 = vmatprep.subr.bf16.mxu0 0
    %1429 = vmatpush1.bf16.xpose.msra.mxu0 0
    %1430 = vmatprep.subr.bf16.mxu0 0
    %1431 = vmatpush1.bf16.xpose.msra.mxu0 0
    %1432 = vmatprep.subr.bf16.mxu0 0
    %1433 = vmatpush1.bf16.xpose.msra.mxu0 0
    %1434 = vmatprep.subr.bf16.mxu0 0
    %1435 = vmatpush1.bf16.xpose.msra.mxu0 0
    %1436 = vmatprep.subr.bf16.mxu0 0
    %1437 = vmatpush1.bf16.xpose.msra.mxu0 0
    %1438 = vmatprep.subr.bf16.mxu0 0
    %1439 = vmatpush1.bf16.xpose.msra.mxu0 %v1422
    %1440 = vmatprep.subr.bf16.mxu0 0
    %1441 = vmatpush2.bf16.xpose.msra.mxu0 0
    %1442 = vmatprep.subr.bf16.mxu0 0
    %1443 = vmatpush2.bf16.xpose.msra.mxu0 0
    %1444 = vmatprep.subr.bf16.mxu0 0
    %1445 = vmatpush2.bf16.xpose.msra.mxu0 0
    %1446 = vmatprep.subr.bf16.mxu0 0
    %1447 = vmatpush2.bf16.xpose.msra.mxu0 0
    %1448 = vmatprep.subr.bf16.mxu0 0
    %1449 = vmatpush2.bf16.xpose.msra.mxu0 0
    %1450 = vmatprep.subr.bf16.mxu0 0
    %1451 = vmatpush2.bf16.xpose.msra.mxu0 0
    %1452 = vmatprep.subr.bf16.mxu0 0
    %1453 = vmatpush2.bf16.xpose.msra.mxu0 0
    %1454 = vmatprep.subr.bf16.mxu0 0
    %1455 = vmatpush2.bf16.xpose.msra.mxu0 0
    %1456 = vmatprep.mubr.bf16.mxu0 0
    %1457 = vmatmul.mubr.bf16.gmra.mxu0 %v1419
    %v1458 = vpop.f32.mrf.mxu0
    %v1459 = vadd.f32 %v967, %v1458
    %v1460 = vpop.f32.mrf.mxu0
    %v1461 = vpop.f32.mrf.mxu0
    %v1462 = vpop.f32.mrf.mxu0
    %1463 = vdwg.mxu0
    %1465 = vrot.lane.b32.xlu0 %v351, 96
    %v1466 = vpop.permute.xlu0 %1465
    %v1468 = vsel %vm531, %v351, 0
    %v1471 = vsel %vm531, %v1466, 0
    %1473 = vmatprep.subr.bf16.mxu0 0
    %1474 = vmatpush1.bf16.xpose.msra.mxu0 0
    %1475 = vmatprep.subr.bf16.mxu0 0
    %1476 = vmatpush1.bf16.xpose.msra.mxu0 0
    %1477 = vmatprep.subr.bf16.mxu0 0
    %1478 = vmatpush1.bf16.xpose.msra.mxu0 0
    %1479 = vmatprep.subr.bf16.mxu0 0
    %1480 = vmatpush1.bf16.xpose.msra.mxu0 0
    %1481 = vmatprep.subr.bf16.mxu0 0
    %1482 = vmatpush1.bf16.xpose.msra.mxu0 0
    %1483 = vmatprep.subr.bf16.mxu0 0
    %1484 = vmatpush1.bf16.xpose.msra.mxu0 0
    %1485 = vmatprep.subr.bf16.mxu0 0
    %1486 = vmatpush1.bf16.xpose.msra.mxu0 0
    %1487 = vmatprep.subr.bf16.mxu0 0
    %1488 = vmatpush1.bf16.xpose.msra.mxu0 %v1471
    %1489 = vmatprep.subr.bf16.mxu0 0
    %1490 = vmatpush2.bf16.xpose.msra.mxu0 0
    %1491 = vmatprep.subr.bf16.mxu0 0
    %1492 = vmatpush2.bf16.xpose.msra.mxu0 0
    %1493 = vmatprep.subr.bf16.mxu0 0
    %1494 = vmatpush2.bf16.xpose.msra.mxu0 0
    %1495 = vmatprep.subr.bf16.mxu0 0
    %1496 = vmatpush2.bf16.xpose.msra.mxu0 0
    %1497 = vmatprep.subr.bf16.mxu0 0
    %1498 = vmatpush2.bf16.xpose.msra.mxu0 0
    %1499 = vmatprep.subr.bf16.mxu0 0
    %1500 = vmatpush2.bf16.xpose.msra.mxu0 0
    %1501 = vmatprep.subr.bf16.mxu0 0
    %1502 = vmatpush2.bf16.xpose.msra.mxu0 0
    %1503 = vmatprep.subr.bf16.mxu0 0
    %1504 = vmatpush2.bf16.xpose.msra.mxu0 0
    %1505 = vmatprep.mubr.bf16.mxu0 0
    %1506 = vmatmul.mubr.bf16.gmra.mxu0 %v1468
    %v1507 = vpop.f32.mrf.mxu0
    %v1508 = vadd.f32 %v968, %v1507
    %v1509 = vpop.f32.mrf.mxu0
    %v1510 = vpop.f32.mrf.mxu0
    %v1511 = vpop.f32.mrf.mxu0
    %1512 = vdwg.mxu0
    %1514 = vrot.lane.b32.xlu0 %v352, 96
    %v1515 = vpop.permute.xlu0 %1514
    %v1517 = vsel %vm531, %v352, 0
    %v1520 = vsel %vm531, %v1515, 0
    %1522 = vmatprep.subr.bf16.mxu0 0
    %1523 = vmatpush1.bf16.xpose.msra.mxu0 0
    %1524 = vmatprep.subr.bf16.mxu0 0
    %1525 = vmatpush1.bf16.xpose.msra.mxu0 0
    %1526 = vmatprep.subr.bf16.mxu0 0
    %1527 = vmatpush1.bf16.xpose.msra.mxu0 0
    %1528 = vmatprep.subr.bf16.mxu0 0
    %1529 = vmatpush1.bf16.xpose.msra.mxu0 0
    %1530 = vmatprep.subr.bf16.mxu0 0
    %1531 = vmatpush1.bf16.xpose.msra.mxu0 0
    %1532 = vmatprep.subr.bf16.mxu0 0
    %1533 = vmatpush1.bf16.xpose.msra.mxu0 0
    %1534 = vmatprep.subr.bf16.mxu0 0
    %1535 = vmatpush1.bf16.xpose.msra.mxu0 0
    %1536 = vmatprep.subr.bf16.mxu0 0
    %1537 = vmatpush1.bf16.xpose.msra.mxu0 %v1520
    %1538 = vmatprep.subr.bf16.mxu0 0
    %1539 = vmatpush2.bf16.xpose.msra.mxu0 0
    %1540 = vmatprep.subr.bf16.mxu0 0
    %1541 = vmatpush2.bf16.xpose.msra.mxu0 0
    %1542 = vmatprep.subr.bf16.mxu0 0
    %1543 = vmatpush2.bf16.xpose.msra.mxu0 0
    %1544 = vmatprep.subr.bf16.mxu0 0
    %1545 = vmatpush2.bf16.xpose.msra.mxu0 0
    %1546 = vmatprep.subr.bf16.mxu0 0
    %1547 = vmatpush2.bf16.xpose.msra.mxu0 0
    %1548 = vmatprep.subr.bf16.mxu0 0
    %1549 = vmatpush2.bf16.xpose.msra.mxu0 0
    %1550 = vmatprep.subr.bf16.mxu0 0
    %1551 = vmatpush2.bf16.xpose.msra.mxu0 0
    %1552 = vmatprep.subr.bf16.mxu0 0
    %1553 = vmatpush2.bf16.xpose.msra.mxu0 0
    %1554 = vmatprep.mubr.bf16.mxu0 0
    %1555 = vmatmul.mubr.bf16.gmra.mxu0 %v1517
    %v1556 = vpop.f32.mrf.mxu0
    %v1557 = vadd.f32 %v969, %v1556
    %v1558 = vpop.f32.mrf.mxu0
    %v1559 = vpop.f32.mrf.mxu0
    %v1560 = vpop.f32.mrf.mxu0
    %1561 = vdwg.mxu0
    %1563 = vrot.lane.b32.xlu0 %v353, 96
    %v1564 = vpop.permute.xlu0 %1563
    %v1566 = vsel %vm531, %v353, 0
    %v1569 = vsel %vm531, %v1564, 0
    %1571 = vmatprep.subr.bf16.mxu0 0
    %1572 = vmatpush1.bf16.xpose.msra.mxu0 0
    %1573 = vmatprep.subr.bf16.mxu0 0
    %1574 = vmatpush1.bf16.xpose.msra.mxu0 0
    %1575 = vmatprep.subr.bf16.mxu0 0
    %1576 = vmatpush1.bf16.xpose.msra.mxu0 0
    %1577 = vmatprep.subr.bf16.mxu0 0
    %1578 = vmatpush1.bf16.xpose.msra.mxu0 0
    %1579 = vmatprep.subr.bf16.mxu0 0
    %1580 = vmatpush1.bf16.xpose.msra.mxu0 0
    %1581 = vmatprep.subr.bf16.mxu0 0
    %1582 = vmatpush1.bf16.xpose.msra.mxu0 0
    %1583 = vmatprep.subr.bf16.mxu0 0
    %1584 = vmatpush1.bf16.xpose.msra.mxu0 0
    %1585 = vmatprep.subr.bf16.mxu0 0
    %1586 = vmatpush1.bf16.xpose.msra.mxu0 %v1569
    %1587 = vmatprep.subr.bf16.mxu0 0
    %1588 = vmatpush2.bf16.xpose.msra.mxu0 0
    %1589 = vmatprep.subr.bf16.mxu0 0
    %1590 = vmatpush2.bf16.xpose.msra.mxu0 0
    %1591 = vmatprep.subr.bf16.mxu0 0
    %1592 = vmatpush2.bf16.xpose.msra.mxu0 0
    %1593 = vmatprep.subr.bf16.mxu0 0
    %1594 = vmatpush2.bf16.xpose.msra.mxu0 0
    %1595 = vmatprep.subr.bf16.mxu0 0
    %1596 = vmatpush2.bf16.xpose.msra.mxu0 0
    %1597 = vmatprep.subr.bf16.mxu0 0
    %1598 = vmatpush2.bf16.xpose.msra.mxu0 0
    %1599 = vmatprep.subr.bf16.mxu0 0
    %1600 = vmatpush2.bf16.xpose.msra.mxu0 0
    %1601 = vmatprep.subr.bf16.mxu0 0
    %1602 = vmatpush2.bf16.xpose.msra.mxu0 0
    %1603 = vmatprep.mubr.bf16.mxu0 0
    %1604 = vmatmul.mubr.bf16.gmra.mxu0 %v1566
    %v1605 = vpop.f32.mrf.mxu0
    %v1606 = vadd.f32 %v970, %v1605
    %v1607 = vpop.f32.mrf.mxu0
    %v1608 = vpop.f32.mrf.mxu0
    %v1609 = vpop.f32.mrf.mxu0
    %1610 = vdwg.mxu0
    %1612 = vrot.lane.b32.xlu0 %v354, 96
    %v1613 = vpop.permute.xlu0 %1612
    %v1615 = vsel %vm531, %v354, 0
    %v1618 = vsel %vm531, %v1613, 0
    %1620 = vmatprep.subr.bf16.mxu0 0
    %1621 = vmatpush1.bf16.xpose.msra.mxu0 0
    %1622 = vmatprep.subr.bf16.mxu0 0
    %1623 = vmatpush1.bf16.xpose.msra.mxu0 0
    %1624 = vmatprep.subr.bf16.mxu0 0
    %1625 = vmatpush1.bf16.xpose.msra.mxu0 0
    %1626 = vmatprep.subr.bf16.mxu0 0
    %1627 = vmatpush1.bf16.xpose.msra.mxu0 0
    %1628 = vmatprep.subr.bf16.mxu0 0
    %1629 = vmatpush1.bf16.xpose.msra.mxu0 0
    %1630 = vmatprep.subr.bf16.mxu0 0
    %1631 = vmatpush1.bf16.xpose.msra.mxu0 0
    %1632 = vmatprep.subr.bf16.mxu0 0
    %1633 = vmatpush1.bf16.xpose.msra.mxu0 0
    %1634 = vmatprep.subr.bf16.mxu0 0
    %1635 = vmatpush1.bf16.xpose.msra.mxu0 %v1618
    %1636 = vmatprep.subr.bf16.mxu0 0
    %1637 = vmatpush2.bf16.xpose.msra.mxu0 0
    %1638 = vmatprep.subr.bf16.mxu0 0
    %1639 = vmatpush2.bf16.xpose.msra.mxu0 0
    %1640 = vmatprep.subr.bf16.mxu0 0
    %1641 = vmatpush2.bf16.xpose.msra.mxu0 0
    %1642 = vmatprep.subr.bf16.mxu0 0
    %1643 = vmatpush2.bf16.xpose.msra.mxu0 0
    %1644 = vmatprep.subr.bf16.mxu0 0
    %1645 = vmatpush2.bf16.xpose.msra.mxu0 0
    %1646 = vmatprep.subr.bf16.mxu0 0
    %1647 = vmatpush2.bf16.xpose.msra.mxu0 0
    %1648 = vmatprep.subr.bf16.mxu0 0
    %1649 = vmatpush2.bf16.xpose.msra.mxu0 0
    %1650 = vmatprep.subr.bf16.mxu0 0
    %1651 = vmatpush2.bf16.xpose.msra.mxu0 0
    %1652 = vmatprep.mubr.bf16.mxu0 0
    %1653 = vmatmul.mubr.bf16.gmra.mxu0 %v1615
    %v1654 = vpop.f32.mrf.mxu0
    %v1655 = vadd.f32 %v971, %v1654
    %v1656 = vpop.f32.mrf.mxu0
    %v1657 = vpop.f32.mrf.mxu0
    %v1658 = vpop.f32.mrf.mxu0
    %1659 = vdwg.mxu0
    %1661 = vrot.lane.b32.xlu0 %v355, 96
    %v1662 = vpop.permute.xlu0 %1661
    %v1664 = vsel %vm531, %v355, 0
    %v1667 = vsel %vm531, %v1662, 0
    %1669 = vmatprep.subr.bf16.mxu0 0
    %1670 = vmatpush1.bf16.xpose.msra.mxu0 0
    %1671 = vmatprep.subr.bf16.mxu0 0
    %1672 = vmatpush1.bf16.xpose.msra.mxu0 0
    %1673 = vmatprep.subr.bf16.mxu0 0
    %1674 = vmatpush1.bf16.xpose.msra.mxu0 0
    %1675 = vmatprep.subr.bf16.mxu0 0
    %1676 = vmatpush1.bf16.xpose.msra.mxu0 0
    %1677 = vmatprep.subr.bf16.mxu0 0
    %1678 = vmatpush1.bf16.xpose.msra.mxu0 0
    %1679 = vmatprep.subr.bf16.mxu0 0
    %1680 = vmatpush1.bf16.xpose.msra.mxu0 0
    %1681 = vmatprep.subr.bf16.mxu0 0
    %1682 = vmatpush1.bf16.xpose.msra.mxu0 0
    %1683 = vmatprep.subr.bf16.mxu0 0
    %1684 = vmatpush1.bf16.xpose.msra.mxu0 %v1667
    %1685 = vmatprep.subr.bf16.mxu0 0
    %1686 = vmatpush2.bf16.xpose.msra.mxu0 0
    %1687 = vmatprep.subr.bf16.mxu0 0
    %1688 = vmatpush2.bf16.xpose.msra.mxu0 0
    %1689 = vmatprep.subr.bf16.mxu0 0
    %1690 = vmatpush2.bf16.xpose.msra.mxu0 0
    %1691 = vmatprep.subr.bf16.mxu0 0
    %1692 = vmatpush2.bf16.xpose.msra.mxu0 0
    %1693 = vmatprep.subr.bf16.mxu0 0
    %1694 = vmatpush2.bf16.xpose.msra.mxu0 0
    %1695 = vmatprep.subr.bf16.mxu0 0
    %1696 = vmatpush2.bf16.xpose.msra.mxu0 0
    %1697 = vmatprep.subr.bf16.mxu0 0
    %1698 = vmatpush2.bf16.xpose.msra.mxu0 0
    %1699 = vmatprep.subr.bf16.mxu0 0
    %1700 = vmatpush2.bf16.xpose.msra.mxu0 0
    %1701 = vmatprep.mubr.bf16.mxu0 0
    %1702 = vmatmul.mubr.bf16.gmra.mxu0 %v1664
    %v1703 = vpop.f32.mrf.mxu0
    %v1704 = vadd.f32 %v972, %v1703
    %v1705 = vpop.f32.mrf.mxu0
    %v1706 = vpop.f32.mrf.mxu0
    %v1707 = vpop.f32.mrf.mxu0
    %1708 = vdwg.mxu0
    %1710 = vrot.lane.b32.xlu0 %v356, 96
    %v1711 = vpop.permute.xlu0 %1710
    %v1713 = vsel %vm531, %v356, 0
    %v1716 = vsel %vm531, %v1711, 0
    %1718 = vmatprep.subr.bf16.mxu0 0
    %1719 = vmatpush1.bf16.xpose.msra.mxu0 0
    %1720 = vmatprep.subr.bf16.mxu0 0
    %1721 = vmatpush1.bf16.xpose.msra.mxu0 0
    %1722 = vmatprep.subr.bf16.mxu0 0
    %1723 = vmatpush1.bf16.xpose.msra.mxu0 0
    %1724 = vmatprep.subr.bf16.mxu0 0
    %1725 = vmatpush1.bf16.xpose.msra.mxu0 0
    %1726 = vmatprep.subr.bf16.mxu0 0
    %1727 = vmatpush1.bf16.xpose.msra.mxu0 0
    %1728 = vmatprep.subr.bf16.mxu0 0
    %1729 = vmatpush1.bf16.xpose.msra.mxu0 0
    %1730 = vmatprep.subr.bf16.mxu0 0
    %1731 = vmatpush1.bf16.xpose.msra.mxu0 0
    %1732 = vmatprep.subr.bf16.mxu0 0
    %1733 = vmatpush1.bf16.xpose.msra.mxu0 %v1716
    %1734 = vmatprep.subr.bf16.mxu0 0
    %1735 = vmatpush2.bf16.xpose.msra.mxu0 0
    %1736 = vmatprep.subr.bf16.mxu0 0
    %1737 = vmatpush2.bf16.xpose.msra.mxu0 0
    %1738 = vmatprep.subr.bf16.mxu0 0
    %1739 = vmatpush2.bf16.xpose.msra.mxu0 0
    %1740 = vmatprep.subr.bf16.mxu0 0
    %1741 = vmatpush2.bf16.xpose.msra.mxu0 0
    %1742 = vmatprep.subr.bf16.mxu0 0
    %1743 = vmatpush2.bf16.xpose.msra.mxu0 0
    %1744 = vmatprep.subr.bf16.mxu0 0
    %1745 = vmatpush2.bf16.xpose.msra.mxu0 0
    %1746 = vmatprep.subr.bf16.mxu0 0
    %1747 = vmatpush2.bf16.xpose.msra.mxu0 0
    %1748 = vmatprep.subr.bf16.mxu0 0
    %1749 = vmatpush2.bf16.xpose.msra.mxu0 0
    %1750 = vmatprep.mubr.bf16.mxu0 0
    %1751 = vmatmul.mubr.bf16.gmra.mxu0 %v1713
    %v1752 = vpop.f32.mrf.mxu0
    %v1753 = vadd.f32 %v973, %v1752
    %v1754 = vpop.f32.mrf.mxu0
    %v1755 = vpop.f32.mrf.mxu0
    %v1756 = vpop.f32.mrf.mxu0
    %1757 = vdwg.mxu0
    %v1758 = vld [vmem:[%s1] sm:$0xff]
    %v1759 = vlaneseq
    %v1760 = vand.u32 %v1759, 127
    %1761 = vset.pattern.permute.xlu0 0
    %1762 = vperm.xlu0 %1761, %v1758
    %v1763 = vpop.permute.xlu0 %1762
    %vm1764 = vcmp.lt.s32.totalorder %v1760, %v1763
    %v1765 = vsel %vm1764, 1, 0
    %v1766 = vcombine.high %v1765, %v1765
    %v1768 = vunpack.c.l.s4 1966171168
    %v1769 = vunpack.c.0.s8 %v1768
    %v1770 = vlaneseq
    %v1771 = vshrl.u32 %v1770, 7
    %v1772 = vsub.s32 %v1769, %v1771
    %v1773 = vrot.slane %v1765, %v1772
    %v1775 = vunpack.c.l.s4 1966171168
    %v1776 = vunpack.c.0.s8 %v1775
    %v1777 = vlaneseq
    %v1778 = vshrl.u32 %v1777, 7
    %v1779 = vsub.s32 %v1776, %v1778
    %v1780 = vrot.slane %v1766, %v1779
    %v1781 = vcombine.high %v1773, %v1773
    %v1782 = vcombine.high %v1780, %v1780
    %v1784 = vunpack.c.l.s4 1966171168
    %v1785 = vunpack.c.0.s8 %v1784
    %v1786 = vlaneseq
    %v1787 = vshrl.u32 %v1786, 7
    %v1788 = vsub.s32 %v1785, %v1787
    %v1789 = vrot.slane %v1773, %v1788
    %v1791 = vunpack.c.l.s4 1966171168
    %v1792 = vunpack.c.0.s8 %v1791
    %v1793 = vlaneseq
    %v1794 = vshrl.u32 %v1793, 7
    %v1795 = vsub.s32 %v1792, %v1794
    %v1796 = vrot.slane %v1780, %v1795
    %v1798 = vunpack.c.l.s4 1966171168
    %v1799 = vunpack.c.0.s8 %v1798
    %v1800 = vlaneseq
    %v1801 = vshrl.u32 %v1800, 7
    %v1802 = vsub.s32 %v1799, %v1801
    %v1803 = vrot.slane %v1781, %v1802
    %v1805 = vunpack.c.l.s4 1966171168
    %v1806 = vunpack.c.0.s8 %v1805
    %v1807 = vlaneseq
    %v1808 = vshrl.u32 %v1807, 7
    %v1809 = vsub.s32 %v1806, %v1808
    %v1810 = vrot.slane %v1782, %v1809
    %v1811 = vcombine.high %v1789, %v1789
    %v1812 = vcombine.high %v1796, %v1796
    %v1813 = vcombine.high %v1803, %v1803
    %v1814 = vcombine.high %v1810, %v1810
    %vm1815 = vcmp.ne.s32.totalorder %v1789, 0
    %vm1816 = vcmp.ne.s32.totalorder %v1803, 0
    %vm1817 = vcmp.ne.s32.totalorder %v1811, 0
    %vm1818 = vcmp.ne.s32.totalorder %v1813, 0
    %vm1819 = vcmp.ne.s32.totalorder %v1796, 0
    %vm1820 = vcmp.ne.s32.totalorder %v1810, 0
    %vm1821 = vcmp.ne.s32.totalorder %v1812, 0
    %vm1822 = vcmp.ne.s32.totalorder %v1814, 0
    %v1823 = vsel %vm1815, 1, 0
    %v1824 = vsel %vm1816, 1, 0
    %v1825 = vsel %vm1817, 1, 0
    %v1826 = vsel %vm1818, 1, 0
    %v1827 = vsel %vm1819, 1, 0
    %v1828 = vsel %vm1820, 1, 0
    %v1829 = vsel %vm1821, 1, 0
    %v1830 = vsel %vm1822, 1, 0
    %v1831 = vlaneseq
    %v1832 = vshrl.u32 %v1831, 7
    %v1833 = vsub.s32 0, %v1832
    %v1834 = vrot.slane %v1823, %v1833
    %v1835 = vlaneseq
    %v1836 = vshrl.u32 %v1835, 7
    %v1837 = vsub.s32 0, %v1836
    %v1838 = vrot.slane %v1824, %v1837
    %v1839 = vlaneseq
    %v1840 = vshrl.u32 %v1839, 7
    %v1841 = vsub.s32 0, %v1840
    %v1842 = vrot.slane %v1825, %v1841
    %v1843 = vlaneseq
    %v1844 = vshrl.u32 %v1843, 7
    %v1845 = vsub.s32 0, %v1844
    %v1846 = vrot.slane %v1826, %v1845
    %v1847 = vlaneseq
    %v1848 = vshrl.u32 %v1847, 7
    %v1849 = vsub.s32 0, %v1848
    %v1850 = vrot.slane %v1827, %v1849
    %v1851 = vlaneseq
    %v1852 = vshrl.u32 %v1851, 7
    %v1853 = vsub.s32 0, %v1852
    %v1854 = vrot.slane %v1828, %v1853
    %v1855 = vlaneseq
    %v1856 = vshrl.u32 %v1855, 7
    %v1857 = vsub.s32 0, %v1856
    %v1858 = vrot.slane %v1829, %v1857
    %v1859 = vlaneseq
    %v1860 = vshrl.u32 %v1859, 7
    %v1861 = vsub.s32 0, %v1860
    %v1862 = vrot.slane %v1830, %v1861
    %vm1863 = vcmp.eq.s32.totalorder %v1834, 1
    %vm1864 = vcmp.eq.s32.totalorder %v1838, 1
    %vm1865 = vcmp.eq.s32.totalorder %v1842, 1
    %vm1866 = vcmp.eq.s32.totalorder %v1846, 1
    %vm1867 = vcmp.eq.s32.totalorder %v1850, 1
    %vm1868 = vcmp.eq.s32.totalorder %v1854, 1
    %vm1869 = vcmp.eq.s32.totalorder %v1858, 1
    %vm1870 = vcmp.eq.s32.totalorder %v1862, 1
    %v1871 = vsel %vm1863, %v1018, -1e+09
    %v1872 = vsel %vm1864, %v1067, -1e+09
    %v1873 = vsel %vm1865, %v1116, -1e+09
    %v1874 = vsel %vm1866, %v1165, -1e+09
    %v1875 = vsel %vm1867, %v1214, -1e+09
    %v1876 = vsel %vm1868, %v1263, -1e+09
    %v1877 = vsel %vm1869, %v1312, -1e+09
    %v1878 = vsel %vm1870, %v1361, -1e+09
    %v1879 = vsel %vm1863, %v1410, -1e+09
    %v1880 = vsel %vm1864, %v1459, -1e+09
    %v1881 = vsel %vm1865, %v1508, -1e+09
    %v1882 = vsel %vm1866, %v1557, -1e+09
    %v1883 = vsel %vm1867, %v1606, -1e+09
    %v1884 = vsel %vm1868, %v1655, -1e+09
    %v1885 = vsel %vm1869, %v1704, -1e+09
    %v1886 = vsel %vm1870, %v1753, -1e+09
    %vm1887 = vcmask 64512
    %v1888 = vsel %vm1887, %v1871, -inf
    %1889 = vmax.xlane.f32.xlu0 %v1888
    %v1890 = vpop.xlane.xlu0 %1889
    %v1891 = vsel %vm1887, %v1872, -inf
    %1892 = vmax.xlane.f32.xlu0 %v1891
    %v1893 = vpop.xlane.xlu0 %1892
    %v1894 = vsel %vm1887, %v1873, -inf
    %1895 = vmax.xlane.f32.xlu0 %v1894
    %v1896 = vpop.xlane.xlu0 %1895
    %v1897 = vsel %vm1887, %v1874, -inf
    %1898 = vmax.xlane.f32.xlu0 %v1897
    %v1899 = vpop.xlane.xlu0 %1898
    %v1900 = vsel %vm1887, %v1875, -inf
    %1901 = vmax.xlane.f32.xlu0 %v1900
    %v1902 = vpop.xlane.xlu0 %1901
    %v1903 = vsel %vm1887, %v1876, -inf
    %1904 = vmax.xlane.f32.xlu0 %v1903
    %v1905 = vpop.xlane.xlu0 %1904
    %v1906 = vsel %vm1887, %v1877, -inf
    %1907 = vmax.xlane.f32.xlu0 %v1906
    %v1908 = vpop.xlane.xlu0 %1907
    %v1909 = vsel %vm1887, %v1878, -inf
    %1910 = vmax.xlane.f32.xlu0 %v1909
    %v1911 = vpop.xlane.xlu0 %1910
    %v1912 = vsel %vm1887, %v1879, -inf
    %1913 = vmax.xlane.f32.xlu0 %v1912
    %v1914 = vpop.xlane.xlu0 %1913
    %v1915 = vsel %vm1887, %v1880, -inf
    %1916 = vmax.xlane.f32.xlu0 %v1915
    %v1917 = vpop.xlane.xlu0 %1916
    %v1918 = vsel %vm1887, %v1881, -inf
    %1919 = vmax.xlane.f32.xlu0 %v1918
    %v1920 = vpop.xlane.xlu0 %1919
    %v1921 = vsel %vm1887, %v1882, -inf
    %1922 = vmax.xlane.f32.xlu0 %v1921
    %v1923 = vpop.xlane.xlu0 %1922
    %v1924 = vsel %vm1887, %v1883, -inf
    %1925 = vmax.xlane.f32.xlu0 %v1924
    %v1926 = vpop.xlane.xlu0 %1925
    %v1927 = vsel %vm1887, %v1884, -inf
    %1928 = vmax.xlane.f32.xlu0 %v1927
    %v1929 = vpop.xlane.xlu0 %1928
    %v1930 = vsel %vm1887, %v1885, -inf
    %1931 = vmax.xlane.f32.xlu0 %v1930
    %v1932 = vpop.xlane.xlu0 %1931
    %v1933 = vsel %vm1887, %v1886, -inf
    %1934 = vmax.xlane.f32.xlu0 %v1933
    %v1935 = vpop.xlane.xlu0 %1934
    %v1936 = vsub.f32 %v1871, %v1890
    %v1937 = vsub.f32 %v1872, %v1893
    %v1938 = vsub.f32 %v1873, %v1896
    %v1939 = vsub.f32 %v1874, %v1899
    %v1940 = vsub.f32 %v1875, %v1902
    %v1941 = vsub.f32 %v1876, %v1905
    %v1942 = vsub.f32 %v1877, %v1908
    %v1943 = vsub.f32 %v1878, %v1911
    %v1944 = vsub.f32 %v1879, %v1914
    %v1945 = vsub.f32 %v1880, %v1917
    %v1946 = vsub.f32 %v1881, %v1920
    %v1947 = vsub.f32 %v1882, %v1923
    %v1948 = vsub.f32 %v1883, %v1926
    %v1949 = vsub.f32 %v1884, %v1929
    %v1950 = vsub.f32 %v1885, %v1932
    %v1951 = vsub.f32 %v1886, %v1935
    %v1952 = vmul.f32 %v1936, 1.442695
    %v1953 = vpow.pop %v1952
    %v1954 = vmul.f32 %v1937, 1.442695
    %v1955 = vpow.pop %v1954
    %v1956 = vmul.f32 %v1938, 1.442695
    %v1957 = vpow.pop %v1956
    %v1958 = vmul.f32 %v1939, 1.442695
    %v1959 = vpow.pop %v1958
    %v1960 = vmul.f32 %v1940, 1.442695
    %v1961 = vpow.pop %v1960
    %v1962 = vmul.f32 %v1941, 1.442695
    %v1963 = vpow.pop %v1962
    %v1964 = vmul.f32 %v1942, 1.442695
    %v1965 = vpow.pop %v1964
    %v1966 = vmul.f32 %v1943, 1.442695
    %v1967 = vpow.pop %v1966
    %v1968 = vmul.f32 %v1944, 1.442695
    %v1969 = vpow.pop %v1968
    %v1970 = vmul.f32 %v1945, 1.442695
    %v1971 = vpow.pop %v1970
    %v1972 = vmul.f32 %v1946, 1.442695
    %v1973 = vpow.pop %v1972
    %v1974 = vmul.f32 %v1947, 1.442695
    %v1975 = vpow.pop %v1974
    %v1976 = vmul.f32 %v1948, 1.442695
    %v1977 = vpow.pop %v1976
    %v1978 = vmul.f32 %v1949, 1.442695
    %v1979 = vpow.pop %v1978
    %v1980 = vmul.f32 %v1950, 1.442695
    %v1981 = vpow.pop %v1980
    %v1982 = vmul.f32 %v1951, 1.442695
    %v1983 = vpow.pop %v1982
    %v1984 = vsel %vm1887, %v1953, 0.0
    %1985 = vadd.xlane.f32.xlu0 %v1984
    %v1986 = vpop.xlane.xlu0 %1985
    %v1987 = vsel %vm1887, %v1955, 0.0
    %1988 = vadd.xlane.f32.xlu0 %v1987
    %v1989 = vpop.xlane.xlu0 %1988
    %v1990 = vsel %vm1887, %v1957, 0.0
    %1991 = vadd.xlane.f32.xlu0 %v1990
    %v1992 = vpop.xlane.xlu0 %1991
    %v1993 = vsel %vm1887, %v1959, 0.0
    %1994 = vadd.xlane.f32.xlu0 %v1993
    %v1995 = vpop.xlane.xlu0 %1994
    %v1996 = vsel %vm1887, %v1961, 0.0
    %1997 = vadd.xlane.f32.xlu0 %v1996
    %v1998 = vpop.xlane.xlu0 %1997
    %v1999 = vsel %vm1887, %v1963, 0.0
    %2000 = vadd.xlane.f32.xlu0 %v1999
    %v2001 = vpop.xlane.xlu0 %2000
    %v2002 = vsel %vm1887, %v1965, 0.0
    %2003 = vadd.xlane.f32.xlu0 %v2002
    %v2004 = vpop.xlane.xlu0 %2003
    %v2005 = vsel %vm1887, %v1967, 0.0
    %2006 = vadd.xlane.f32.xlu0 %v2005
    %v2007 = vpop.xlane.xlu0 %2006
    %v2008 = vsel %vm1887, %v1969, 0.0
    %2009 = vadd.xlane.f32.xlu0 %v2008
    %v2010 = vpop.xlane.xlu0 %2009
    %v2011 = vsel %vm1887, %v1971, 0.0
    %2012 = vadd.xlane.f32.xlu0 %v2011
    %v2013 = vpop.xlane.xlu0 %2012
    %v2014 = vsel %vm1887, %v1973, 0.0
    %2015 = vadd.xlane.f32.xlu0 %v2014
    %v2016 = vpop.xlane.xlu0 %2015
    %v2017 = vsel %vm1887, %v1975, 0.0
    %2018 = vadd.xlane.f32.xlu0 %v2017
    %v2019 = vpop.xlane.xlu0 %2018
    %v2020 = vsel %vm1887, %v1977, 0.0
    %2021 = vadd.xlane.f32.xlu0 %v2020
    %v2022 = vpop.xlane.xlu0 %2021
    %v2023 = vsel %vm1887, %v1979, 0.0
    %2024 = vadd.xlane.f32.xlu0 %v2023
    %v2025 = vpop.xlane.xlu0 %2024
    %v2026 = vsel %vm1887, %v1981, 0.0
    %2027 = vadd.xlane.f32.xlu0 %v2026
    %v2028 = vpop.xlane.xlu0 %2027
    %v2029 = vsel %vm1887, %v1983, 0.0
    %2030 = vadd.xlane.f32.xlu0 %v2029
    %v2031 = vpop.xlane.xlu0 %2030
    %v2032 = vrcp.pop %v1986
    %v2033 = vrcp.pop %v1989
    %v2034 = vrcp.pop %v1992
    %v2035 = vrcp.pop %v1995
    %v2036 = vrcp.pop %v1998
    %v2037 = vrcp.pop %v2001
    %v2038 = vrcp.pop %v2004
    %v2039 = vrcp.pop %v2007
    %v2040 = vrcp.pop %v2010
    %v2041 = vrcp.pop %v2013
    %v2042 = vrcp.pop %v2016
    %v2043 = vrcp.pop %v2019
    %v2044 = vrcp.pop %v2022
    %v2045 = vrcp.pop %v2025
    %v2046 = vrcp.pop %v2028
    %v2047 = vrcp.pop %v2031
    %v2048 = vmul.f32 %v1953, %v2032
    %v2049 = vmul.f32 %v1955, %v2033
    %v2050 = vmul.f32 %v1957, %v2034
    %v2051 = vmul.f32 %v1959, %v2035
    %v2052 = vmul.f32 %v1961, %v2036
    %v2053 = vmul.f32 %v1963, %v2037
    %v2054 = vmul.f32 %v1965, %v2038
    %v2055 = vmul.f32 %v1967, %v2039
    %v2056 = vmul.f32 %v1969, %v2040
    %v2057 = vmul.f32 %v1971, %v2041
    %v2058 = vmul.f32 %v1973, %v2042
    %v2059 = vmul.f32 %v1975, %v2043
    %v2060 = vmul.f32 %v1977, %v2044
    %v2061 = vmul.f32 %v1979, %v2045
    %v2062 = vmul.f32 %v1981, %v2046
    %v2063 = vmul.f32 %v1983, %v2047
    %v2064 = vpack.c.bf16 %v2048, %v2048
    %v2065 = vpack.c.bf16 %v2049, %v2049
    %v2066 = vpack.c.bf16 %v2050, %v2050
    %v2067 = vpack.c.bf16 %v2051, %v2051
    %v2068 = vpack.c.bf16 %v2052, %v2052
    %v2069 = vpack.c.bf16 %v2053, %v2053
    %v2070 = vpack.c.bf16 %v2054, %v2054
    %v2071 = vpack.c.bf16 %v2055, %v2055
    %v2072 = vpack.c.bf16 %v2056, %v2056
    %v2073 = vpack.c.bf16 %v2057, %v2057
    %v2074 = vpack.c.bf16 %v2058, %v2058
    %v2075 = vpack.c.bf16 %v2059, %v2059
    %v2076 = vpack.c.bf16 %v2060, %v2060
    %v2077 = vpack.c.bf16 %v2061, %v2061
    %v2078 = vpack.c.bf16 %v2062, %v2062
    %v2079 = vpack.c.bf16 %v2063, %v2063
    %v2080 = vcombine.low %v2064, %v2068
    %v2082 = vunpack.c.l.s4 1983009808
    %v2083 = vunpack.c.0.s8 %v2082
    %v2084 = vlaneseq
    %v2085 = vshrl.u32 %v2084, 7
    %v2086 = vsub.s32 %v2083, %v2085
    %v2087 = vrot.slane %v2080, %v2086
    %v2088 = vcombine.low %v2066, %v2070
    %v2090 = vunpack.c.l.s4 1983009808
    %v2091 = vunpack.c.0.s8 %v2090
    %v2092 = vlaneseq
    %v2093 = vshrl.u32 %v2092, 7
    %v2094 = vsub.s32 %v2091, %v2093
    %v2095 = vrot.slane %v2088, %v2094
    %v2096 = vcombine.low %v2072, %v2076
    %v2098 = vunpack.c.l.s4 1983009808
    %v2099 = vunpack.c.0.s8 %v2098
    %v2100 = vlaneseq
    %v2101 = vshrl.u32 %v2100, 7
    %v2102 = vsub.s32 %v2099, %v2101
    %v2103 = vrot.slane %v2096, %v2102
    %v2104 = vcombine.low %v2074, %v2078
    %v2106 = vunpack.c.l.s4 1983009808
    %v2107 = vunpack.c.0.s8 %v2106
    %v2108 = vlaneseq
    %v2109 = vshrl.u32 %v2108, 7
    %v2110 = vsub.s32 %v2107, %v2109
    %v2111 = vrot.slane %v2104, %v2110
    %v2112 = vcombine.low %v2087, %v2095
    %v2113 = vcombine.high %v2087, %v2095
    %v2115 = vunpack.c.l.s4 1934713408
    %v2116 = vunpack.c.0.s8 %v2115
    %v2117 = vlaneseq
    %v2118 = vshrl.u32 %v2117, 7
    %v2119 = vsub.s32 %v2116, %v2118
    %v2120 = vrot.slane %v2112, %v2119
    %v2122 = vunpack.c.l.s4 1934713408
    %v2123 = vunpack.c.0.s8 %v2122
    %v2124 = vlaneseq
    %v2125 = vshrl.u32 %v2124, 7
    %v2126 = vsub.s32 %v2123, %v2125
    %v2127 = vrot.slane %v2113, %v2126
    %v2128 = vcombine.low %v2103, %v2111
    %v2129 = vcombine.high %v2103, %v2111
    %v2131 = vunpack.c.l.s4 1934713408
    %v2132 = vunpack.c.0.s8 %v2131
    %v2133 = vlaneseq
    %v2134 = vshrl.u32 %v2133, 7
    %v2135 = vsub.s32 %v2132, %v2134
    %v2136 = vrot.slane %v2128, %v2135
    %v2138 = vunpack.c.l.s4 1934713408
    %v2139 = vunpack.c.0.s8 %v2138
    %v2140 = vlaneseq
    %v2141 = vshrl.u32 %v2140, 7
    %v2142 = vsub.s32 %v2139, %v2141
    %v2143 = vrot.slane %v2129, %v2142
    %v2144 = vcombine.low %v2120, %v2136
    %v2145 = vcombine.high %v2120, %v2136
    %v2146 = vcombine.low %v2127, %v2143
    %v2147 = vcombine.high %v2127, %v2143
    %v2148 = vcombine.low %v2065, %v2069
    %v2150 = vunpack.c.l.s4 1983009808
    %v2151 = vunpack.c.0.s8 %v2150
    %v2152 = vlaneseq
    %v2153 = vshrl.u32 %v2152, 7
    %v2154 = vsub.s32 %v2151, %v2153
    %v2155 = vrot.slane %v2148, %v2154
    %v2156 = vcombine.low %v2067, %v2071
    %v2158 = vunpack.c.l.s4 1983009808
    %v2159 = vunpack.c.0.s8 %v2158
    %v2160 = vlaneseq
    %v2161 = vshrl.u32 %v2160, 7
    %v2162 = vsub.s32 %v2159, %v2161
    %v2163 = vrot.slane %v2156, %v2162
    %v2164 = vcombine.low %v2073, %v2077
    %v2166 = vunpack.c.l.s4 1983009808
    %v2167 = vunpack.c.0.s8 %v2166
    %v2168 = vlaneseq
    %v2169 = vshrl.u32 %v2168, 7
    %v2170 = vsub.s32 %v2167, %v2169
    %v2171 = vrot.slane %v2164, %v2170
    %v2172 = vcombine.low %v2075, %v2079
    %v2174 = vunpack.c.l.s4 1983009808
    %v2175 = vunpack.c.0.s8 %v2174
    %v2176 = vlaneseq
    %v2177 = vshrl.u32 %v2176, 7
    %v2178 = vsub.s32 %v2175, %v2177
    %v2179 = vrot.slane %v2172, %v2178
    %v2180 = vcombine.low %v2155, %v2163
    %v2181 = vcombine.high %v2155, %v2163
    %v2183 = vunpack.c.l.s4 1934713408
    %v2184 = vunpack.c.0.s8 %v2183
    %v2185 = vlaneseq
    %v2186 = vshrl.u32 %v2185, 7
    %v2187 = vsub.s32 %v2184, %v2186
    %v2188 = vrot.slane %v2180, %v2187
    %v2190 = vunpack.c.l.s4 1934713408
    %v2191 = vunpack.c.0.s8 %v2190
    %v2192 = vlaneseq
    %v2193 = vshrl.u32 %v2192, 7
    %v2194 = vsub.s32 %v2191, %v2193
    %v2195 = vrot.slane %v2181, %v2194
    %v2196 = vcombine.low %v2171, %v2179
    %v2197 = vcombine.high %v2171, %v2179
    %v2199 = vunpack.c.l.s4 1934713408
    %v2200 = vunpack.c.0.s8 %v2199
    %v2201 = vlaneseq
    %v2202 = vshrl.u32 %v2201, 7
    %v2203 = vsub.s32 %v2200, %v2202
    %v2204 = vrot.slane %v2196, %v2203
    %v2206 = vunpack.c.l.s4 1934713408
    %v2207 = vunpack.c.0.s8 %v2206
    %v2208 = vlaneseq
    %v2209 = vshrl.u32 %v2208, 7
    %v2210 = vsub.s32 %v2207, %v2209
    %v2211 = vrot.slane %v2197, %v2210
    %v2212 = vcombine.low %v2188, %v2204
    %v2213 = vcombine.high %v2188, %v2204
    %v2214 = vcombine.low %v2195, %v2211
    %v2215 = vcombine.high %v2195, %v2211
    %v2218 = vpack.i.b16 %v2212, %v2144
    %v2219 = vshrl.u32 %v2144, 16
    %v2220 = vshrl.u32 %v2212, 16
    %v2221 = vpack.i.b16 %v2220, %v2219
    %v2224 = vpack.i.b16 %v2213, %v2145
    %v2225 = vshrl.u32 %v2145, 16
    %v2226 = vshrl.u32 %v2213, 16
    %v2227 = vpack.i.b16 %v2226, %v2225
    %v2230 = vpack.i.b16 %v2214, %v2146
    %v2231 = vshrl.u32 %v2146, 16
    %v2232 = vshrl.u32 %v2214, 16
    %v2233 = vpack.i.b16 %v2232, %v2231
    %v2236 = vpack.i.b16 %v2215, %v2147
    %v2237 = vshrl.u32 %v2147, 16
    %v2238 = vshrl.u32 %v2215, 16
    %v2239 = vpack.i.b16 %v2238, %v2237
    %2240 = vrot.lane.b32.xlu0 %v2221, 8
    %v2241 = vpop.permute.xlu0 %2240
    %2242 = vrot.lane.b32.xlu0 %v2224, 16
    %v2243 = vpop.permute.xlu0 %2242
    %2244 = vrot.lane.b32.xlu0 %v2227, 24
    %v2245 = vpop.permute.xlu0 %2244
    %2246 = vrot.lane.b32.xlu0 %v2230, 32
    %v2247 = vpop.permute.xlu0 %2246
    %2248 = vrot.lane.b32.xlu0 %v2233, 40
    %v2249 = vpop.permute.xlu0 %2248
    %2250 = vrot.lane.b32.xlu0 %v2236, 48
    %v2251 = vpop.permute.xlu0 %2250
    %2252 = vrot.lane.b32.xlu0 %v2239, 56
    %v2253 = vpop.permute.xlu0 %2252
    %v2256 = vsel %vm1887, %v2218, %v2241
    %v2258 = vsel %vm531, %v2256, %v2243
    %vm2259 = vcmask 195584
    %v2261 = vsel %vm2259, %v2258, %v2245
    %v2263 = vsel %vm71, %v2261, %v2247
    %vm2264 = vcmask 326656
    %v2266 = vsel %vm2264, %v2263, %v2249
    %v2268 = vsel %vm537, %v2266, %v2251
    %vm2269 = vcmask 457728
    %v2271 = vsel %vm2269, %v2268, %v2253
    %v2272 = vld [vmem:[%s3] sm:$0xf]
    %v2273 = vld [vmem:[%s3 + $0x4] sm:$0xf]
    %v2274 = vld [vmem:[%s3 + $0x8] sm:$0xf]
    %v2275 = vld [vmem:[%s3 + $0xc] sm:$0xf]
    %v2276 = vld [vmem:[%s3 + $0x10] sm:$0xf]
    %v2277 = vld [vmem:[%s3 + $0x14] sm:$0xf]
    %v2278 = vld [vmem:[%s3 + $0x18] sm:$0xf]
    %v2279 = vld [vmem:[%s3 + $0x1c] sm:$0xf]
    %v2288 = vunpack.c.l.b16 %v2272
    %v2289 = vunpack.c.l.b16 %v2273
    %v2290 = vunpack.c.l.b16 %v2274
    %v2291 = vunpack.c.l.b16 %v2275
    %v2292 = vunpack.c.l.b16 %v2276
    %v2293 = vunpack.c.l.b16 %v2277
    %v2294 = vunpack.c.l.b16 %v2278
    %v2295 = vunpack.c.l.b16 %v2279
    %v2296 = vpack.c.b16 %v2289, %v2288
    %v2297 = vpack.c.b16 %v2291, %v2290
    %v2298 = vpack.c.b16 %v2293, %v2292
    %v2299 = vpack.c.b16 %v2295, %v2294
    %v2304 = vsel %vm540, %v2271, 0
    %2306 = vmatprep.subr.bf16.mxu0 0
    %2307 = vmatpush1.bf16.msra.mxu0 0
    %2308 = vmatprep.subr.bf16.mxu0 0
    %2309 = vmatpush1.bf16.msra.mxu0 0
    %2310 = vmatprep.subr.bf16.mxu0 0
    %2311 = vmatpush1.bf16.msra.mxu0 0
    %2312 = vmatprep.subr.bf16.mxu0 0
    %2313 = vmatpush1.bf16.msra.mxu0 0
    %2314 = vmatprep.subr.bf16.mxu0 0
    %2315 = vmatpush1.bf16.msra.mxu0 %v2299
    %2316 = vmatprep.subr.bf16.mxu0 0
    %2317 = vmatpush1.bf16.msra.mxu0 %v2298
    %2318 = vmatprep.subr.bf16.mxu0 0
    %2319 = vmatpush1.bf16.msra.mxu0 %v2297
    %2320 = vmatprep.subr.bf16.mxu0 0
    %2321 = vmatpush1.bf16.msra.mxu0 %v2296
    %2322 = vmatprep.subr.bf16.mxu0 0
    %2323 = vmatpush2.bf16.msra.mxu0 0
    %2324 = vmatprep.subr.bf16.mxu0 0
    %2325 = vmatpush2.bf16.msra.mxu0 0
    %2326 = vmatprep.subr.bf16.mxu0 0
    %2327 = vmatpush2.bf16.msra.mxu0 0
    %2328 = vmatprep.subr.bf16.mxu0 0
    %2329 = vmatpush2.bf16.msra.mxu0 0
    %2330 = vmatprep.subr.bf16.mxu0 0
    %2331 = vmatpush2.bf16.msra.mxu0 0
    %2332 = vmatprep.subr.bf16.mxu0 0
    %2333 = vmatpush2.bf16.msra.mxu0 0
    %2334 = vmatprep.subr.bf16.mxu0 0
    %2335 = vmatpush2.bf16.msra.mxu0 0
    %2336 = vmatprep.subr.bf16.mxu0 0
    %2337 = vmatpush2.bf16.msra.mxu0 0
    %2338 = vmatprep.mubr.bf16.mxu0 0
    %2339 = vmatmul.mubr.bf16.gmra.mxu0 %v2304
    %v2340 = vpop.f32.mrf.mxu0
    %v2341 = vadd.f32 0.0, %v2340
    %v2342 = vpop.f32.mrf.mxu0
    %v2343 = vpop.f32.mrf.mxu0
    %v2344 = vadd.f32 0.0, %v2343
    %v2345 = vpop.f32.mrf.mxu0
    %2346 = vdwg.mxu0
    %2349 = vrot.lane.b32.xlu0 %v2341, 112
    %v2350 = vpop.permute.xlu0 %2349
    %2351 = vrot.lane.b32.xlu0 %v2344, 112
    %v2352 = vpop.permute.xlu0 %2351
    %2355 = vrot.lane.b32.xlu0 %v2341, 96
    %v2356 = vpop.permute.xlu0 %2355
    %2357 = vrot.lane.b32.xlu0 %v2344, 96
    %v2358 = vpop.permute.xlu0 %2357
    %2361 = vrot.lane.b32.xlu0 %v2341, 80
    %v2362 = vpop.permute.xlu0 %2361
    %2363 = vrot.lane.b32.xlu0 %v2344, 80
    %v2364 = vpop.permute.xlu0 %2363
    %2367 = vrot.lane.b32.xlu0 %v2341, 64
    %v2368 = vpop.permute.xlu0 %2367
    %2369 = vrot.lane.b32.xlu0 %v2344, 64
    %v2370 = vpop.permute.xlu0 %2369
    %2373 = vrot.lane.b32.xlu0 %v2341, 48
    %v2374 = vpop.permute.xlu0 %2373
    %2375 = vrot.lane.b32.xlu0 %v2344, 48
    %v2376 = vpop.permute.xlu0 %2375
    %2379 = vrot.lane.b32.xlu0 %v2341, 32
    %v2380 = vpop.permute.xlu0 %2379
    %2381 = vrot.lane.b32.xlu0 %v2344, 32
    %v2382 = vpop.permute.xlu0 %2381
    %2385 = vrot.lane.b32.xlu0 %v2341, 16
    %v2386 = vpop.permute.xlu0 %2385
    %2387 = vrot.lane.b32.xlu0 %v2344, 16
    %v2388 = vpop.permute.xlu0 %2387
    %v2391 = vcombine.low %v2341, %v2356
    %v2392 = vcombine.high %v2341, %v2356
    %v2394 = vunpack.c.l.s4 1983009808
    %v2395 = vunpack.c.0.s8 %v2394
    %v2396 = vlaneseq
    %v2397 = vshrl.u32 %v2396, 7
    %v2398 = vsub.s32 %v2395, %v2397
    %v2399 = vrot.slane %v2391, %v2398
    %v2401 = vunpack.c.l.s4 1983009808
    %v2402 = vunpack.c.0.s8 %v2401
    %v2403 = vlaneseq
    %v2404 = vshrl.u32 %v2403, 7
    %v2405 = vsub.s32 %v2402, %v2404
    %v2406 = vrot.slane %v2392, %v2405
    %v2407 = vcombine.low %v2350, %v2362
    %v2408 = vcombine.high %v2350, %v2362
    %v2410 = vunpack.c.l.s4 1983009808
    %v2411 = vunpack.c.0.s8 %v2410
    %v2412 = vlaneseq
    %v2413 = vshrl.u32 %v2412, 7
    %v2414 = vsub.s32 %v2411, %v2413
    %v2415 = vrot.slane %v2407, %v2414
    %v2417 = vunpack.c.l.s4 1983009808
    %v2418 = vunpack.c.0.s8 %v2417
    %v2419 = vlaneseq
    %v2420 = vshrl.u32 %v2419, 7
    %v2421 = vsub.s32 %v2418, %v2420
    %v2422 = vrot.slane %v2408, %v2421
    %v2423 = vcombine.low %v2368, %v2380
    %v2424 = vcombine.high %v2368, %v2380
    %v2426 = vunpack.c.l.s4 1983009808
    %v2427 = vunpack.c.0.s8 %v2426
    %v2428 = vlaneseq
    %v2429 = vshrl.u32 %v2428, 7
    %v2430 = vsub.s32 %v2427, %v2429
    %v2431 = vrot.slane %v2423, %v2430
    %v2433 = vunpack.c.l.s4 1983009808
    %v2434 = vunpack.c.0.s8 %v2433
    %v2435 = vlaneseq
    %v2436 = vshrl.u32 %v2435, 7
    %v2437 = vsub.s32 %v2434, %v2436
    %v2438 = vrot.slane %v2424, %v2437
    %v2439 = vcombine.low %v2374, %v2386
    %v2440 = vcombine.high %v2374, %v2386
    %v2442 = vunpack.c.l.s4 1983009808
    %v2443 = vunpack.c.0.s8 %v2442
    %v2444 = vlaneseq
    %v2445 = vshrl.u32 %v2444, 7
    %v2446 = vsub.s32 %v2443, %v2445
    %v2447 = vrot.slane %v2439, %v2446
    %v2449 = vunpack.c.l.s4 1983009808
    %v2450 = vunpack.c.0.s8 %v2449
    %v2451 = vlaneseq
    %v2452 = vshrl.u32 %v2451, 7
    %v2453 = vsub.s32 %v2450, %v2452
    %v2454 = vrot.slane %v2440, %v2453
    %v2455 = vcombine.low %v2399, %v2415
    %v2456 = vcombine.high %v2399, %v2415
    %v2458 = vunpack.c.l.s4 1934713408
    %v2459 = vunpack.c.0.s8 %v2458
    %v2460 = vlaneseq
    %v2461 = vshrl.u32 %v2460, 7
    %v2462 = vsub.s32 %v2459, %v2461
    %v2463 = vrot.slane %v2455, %v2462
    %v2465 = vunpack.c.l.s4 1934713408
    %v2466 = vunpack.c.0.s8 %v2465
    %v2467 = vlaneseq
    %v2468 = vshrl.u32 %v2467, 7
    %v2469 = vsub.s32 %v2466, %v2468
    %v2470 = vrot.slane %v2456, %v2469
    %v2471 = vcombine.low %v2406, %v2422
    %v2472 = vcombine.high %v2406, %v2422
    %v2474 = vunpack.c.l.s4 1934713408
    %v2475 = vunpack.c.0.s8 %v2474
    %v2476 = vlaneseq
    %v2477 = vshrl.u32 %v2476, 7
    %v2478 = vsub.s32 %v2475, %v2477
    %v2479 = vrot.slane %v2471, %v2478
    %v2481 = vunpack.c.l.s4 1934713408
    %v2482 = vunpack.c.0.s8 %v2481
    %v2483 = vlaneseq
    %v2484 = vshrl.u32 %v2483, 7
    %v2485 = vsub.s32 %v2482, %v2484
    %v2486 = vrot.slane %v2472, %v2485
    %v2487 = vcombine.low %v2431, %v2447
    %v2488 = vcombine.high %v2431, %v2447
    %v2490 = vunpack.c.l.s4 1934713408
    %v2491 = vunpack.c.0.s8 %v2490
    %v2492 = vlaneseq
    %v2493 = vshrl.u32 %v2492, 7
    %v2494 = vsub.s32 %v2491, %v2493
    %v2495 = vrot.slane %v2487, %v2494
    %v2497 = vunpack.c.l.s4 1934713408
    %v2498 = vunpack.c.0.s8 %v2497
    %v2499 = vlaneseq
    %v2500 = vshrl.u32 %v2499, 7
    %v2501 = vsub.s32 %v2498, %v2500
    %v2502 = vrot.slane %v2488, %v2501
    %v2503 = vcombine.low %v2438, %v2454
    %v2504 = vcombine.high %v2438, %v2454
    %v2506 = vunpack.c.l.s4 1934713408
    %v2507 = vunpack.c.0.s8 %v2506
    %v2508 = vlaneseq
    %v2509 = vshrl.u32 %v2508, 7
    %v2510 = vsub.s32 %v2507, %v2509
    %v2511 = vrot.slane %v2503, %v2510
    %v2513 = vunpack.c.l.s4 1934713408
    %v2514 = vunpack.c.0.s8 %v2513
    %v2515 = vlaneseq
    %v2516 = vshrl.u32 %v2515, 7
    %v2517 = vsub.s32 %v2514, %v2516
    %v2518 = vrot.slane %v2504, %v2517
    %v2519 = vcombine.low %v2463, %v2495
    %v2520 = vcombine.high %v2463, %v2495
    %v2521 = vcombine.low %v2470, %v2502
    %v2522 = vcombine.high %v2470, %v2502
    %v2523 = vcombine.low %v2479, %v2511
    %v2524 = vcombine.high %v2479, %v2511
    %v2525 = vcombine.low %v2486, %v2518
    %v2526 = vcombine.high %v2486, %v2518
    %v2527 = vcombine.low %v2344, %v2358
    %v2528 = vcombine.high %v2344, %v2358
    %v2530 = vunpack.c.l.s4 1983009808
    %v2531 = vunpack.c.0.s8 %v2530
    %v2532 = vlaneseq
    %v2533 = vshrl.u32 %v2532, 7
    %v2534 = vsub.s32 %v2531, %v2533
    %v2535 = vrot.slane %v2527, %v2534
    %v2537 = vunpack.c.l.s4 1983009808
    %v2538 = vunpack.c.0.s8 %v2537
    %v2539 = vlaneseq
    %v2540 = vshrl.u32 %v2539, 7
    %v2541 = vsub.s32 %v2538, %v2540
    %v2542 = vrot.slane %v2528, %v2541
    %v2543 = vcombine.low %v2352, %v2364
    %v2544 = vcombine.high %v2352, %v2364
    %v2546 = vunpack.c.l.s4 1983009808
    %v2547 = vunpack.c.0.s8 %v2546
    %v2548 = vlaneseq
    %v2549 = vshrl.u32 %v2548, 7
    %v2550 = vsub.s32 %v2547, %v2549
    %v2551 = vrot.slane %v2543, %v2550
    %v2553 = vunpack.c.l.s4 1983009808
    %v2554 = vunpack.c.0.s8 %v2553
    %v2555 = vlaneseq
    %v2556 = vshrl.u32 %v2555, 7
    %v2557 = vsub.s32 %v2554, %v2556
    %v2558 = vrot.slane %v2544, %v2557
    %v2559 = vcombine.low %v2370, %v2382
    %v2560 = vcombine.high %v2370, %v2382
    %v2562 = vunpack.c.l.s4 1983009808
    %v2563 = vunpack.c.0.s8 %v2562
    %v2564 = vlaneseq
    %v2565 = vshrl.u32 %v2564, 7
    %v2566 = vsub.s32 %v2563, %v2565
    %v2567 = vrot.slane %v2559, %v2566
    %v2569 = vunpack.c.l.s4 1983009808
    %v2570 = vunpack.c.0.s8 %v2569
    %v2571 = vlaneseq
    %v2572 = vshrl.u32 %v2571, 7
    %v2573 = vsub.s32 %v2570, %v2572
    %v2574 = vrot.slane %v2560, %v2573
    %v2575 = vcombine.low %v2376, %v2388
    %v2576 = vcombine.high %v2376, %v2388
    %v2578 = vunpack.c.l.s4 1983009808
    %v2579 = vunpack.c.0.s8 %v2578
    %v2580 = vlaneseq
    %v2581 = vshrl.u32 %v2580, 7
    %v2582 = vsub.s32 %v2579, %v2581
    %v2583 = vrot.slane %v2575, %v2582
    %v2585 = vunpack.c.l.s4 1983009808
    %v2586 = vunpack.c.0.s8 %v2585
    %v2587 = vlaneseq
    %v2588 = vshrl.u32 %v2587, 7
    %v2589 = vsub.s32 %v2586, %v2588
    %v2590 = vrot.slane %v2576, %v2589
    %v2591 = vcombine.low %v2535, %v2551
    %v2592 = vcombine.high %v2535, %v2551
    %v2594 = vunpack.c.l.s4 1934713408
    %v2595 = vunpack.c.0.s8 %v2594
    %v2596 = vlaneseq
    %v2597 = vshrl.u32 %v2596, 7
    %v2598 = vsub.s32 %v2595, %v2597
    %v2599 = vrot.slane %v2591, %v2598
    %v2601 = vunpack.c.l.s4 1934713408
    %v2602 = vunpack.c.0.s8 %v2601
    %v2603 = vlaneseq
    %v2604 = vshrl.u32 %v2603, 7
    %v2605 = vsub.s32 %v2602, %v2604
    %v2606 = vrot.slane %v2592, %v2605
    %v2607 = vcombine.low %v2542, %v2558
    %v2608 = vcombine.high %v2542, %v2558
    %v2610 = vunpack.c.l.s4 1934713408
    %v2611 = vunpack.c.0.s8 %v2610
    %v2612 = vlaneseq
    %v2613 = vshrl.u32 %v2612, 7
    %v2614 = vsub.s32 %v2611, %v2613
    %v2615 = vrot.slane %v2607, %v2614
    %v2617 = vunpack.c.l.s4 1934713408
    %v2618 = vunpack.c.0.s8 %v2617
    %v2619 = vlaneseq
    %v2620 = vshrl.u32 %v2619, 7
    %v2621 = vsub.s32 %v2618, %v2620
    %v2622 = vrot.slane %v2608, %v2621
    %v2623 = vcombine.low %v2567, %v2583
    %v2624 = vcombine.high %v2567, %v2583
    %v2626 = vunpack.c.l.s4 1934713408
    %v2627 = vunpack.c.0.s8 %v2626
    %v2628 = vlaneseq
    %v2629 = vshrl.u32 %v2628, 7
    %v2630 = vsub.s32 %v2627, %v2629
    %v2631 = vrot.slane %v2623, %v2630
    %v2633 = vunpack.c.l.s4 1934713408
    %v2634 = vunpack.c.0.s8 %v2633
    %v2635 = vlaneseq
    %v2636 = vshrl.u32 %v2635, 7
    %v2637 = vsub.s32 %v2634, %v2636
    %v2638 = vrot.slane %v2624, %v2637
    %v2639 = vcombine.low %v2574, %v2590
    %v2640 = vcombine.high %v2574, %v2590
    %v2642 = vunpack.c.l.s4 1934713408
    %v2643 = vunpack.c.0.s8 %v2642
    %v2644 = vlaneseq
    %v2645 = vshrl.u32 %v2644, 7
    %v2646 = vsub.s32 %v2643, %v2645
    %v2647 = vrot.slane %v2639, %v2646
    %v2649 = vunpack.c.l.s4 1934713408
    %v2650 = vunpack.c.0.s8 %v2649
    %v2651 = vlaneseq
    %v2652 = vshrl.u32 %v2651, 7
    %v2653 = vsub.s32 %v2650, %v2652
    %v2654 = vrot.slane %v2640, %v2653
    %v2655 = vcombine.low %v2599, %v2631
    %v2656 = vcombine.high %v2599, %v2631
    %v2657 = vcombine.low %v2606, %v2638
    %v2658 = vcombine.high %v2606, %v2638
    %v2659 = vcombine.low %v2615, %v2647
    %v2660 = vcombine.high %v2615, %v2647
    %v2661 = vcombine.low %v2622, %v2654
    %v2662 = vcombine.high %v2622, %v2654
    %2663 = vrot.lane.b32.xlu0 %v341, 64
    %v2664 = vpop.permute.xlu0 %2663
    %v2666 = vsel %vm1887, %v2064, 0
    %vm2668 = vcmask 1043456
    %v2670 = vsel %vm2668, %v2664, 0
    %2672 = vmatprep.subr.bf16.mxu0 0
    %2673 = vmatpush1.bf16.msra.mxu0 0
    %2674 = vmatprep.subr.bf16.mxu0 0
    %2675 = vmatpush1.bf16.msra.mxu0 0
    %2676 = vmatprep.subr.bf16.mxu0 0
    %2677 = vmatpush1.bf16.msra.mxu0 0
    %2678 = vmatprep.subr.bf16.mxu0 0
    %2679 = vmatpush1.bf16.msra.mxu0 0
    %2680 = vmatprep.subr.bf16.mxu0 0
    %2681 = vmatpush1.bf16.msra.mxu0 0
    %2682 = vmatprep.subr.bf16.mxu0 0
    %2683 = vmatpush1.bf16.msra.mxu0 0
    %2684 = vmatprep.subr.bf16.mxu0 0
    %2685 = vmatpush1.bf16.msra.mxu0 0
    %2686 = vmatprep.subr.bf16.mxu0 0
    %2687 = vmatpush1.bf16.msra.mxu0 %v2670
    %2688 = vmatprep.subr.bf16.mxu0 0
    %2689 = vmatpush2.bf16.msra.mxu0 0
    %2690 = vmatprep.subr.bf16.mxu0 0
    %2691 = vmatpush2.bf16.msra.mxu0 0
    %2692 = vmatprep.subr.bf16.mxu0 0
    %2693 = vmatpush2.bf16.msra.mxu0 0
    %2694 = vmatprep.subr.bf16.mxu0 0
    %2695 = vmatpush2.bf16.msra.mxu0 0
    %2696 = vmatprep.subr.bf16.mxu0 0
    %2697 = vmatpush2.bf16.msra.mxu0 0
    %2698 = vmatprep.subr.bf16.mxu0 0
    %2699 = vmatpush2.bf16.msra.mxu0 0
    %2700 = vmatprep.subr.bf16.mxu0 0
    %2701 = vmatpush2.bf16.msra.mxu0 0
    %2702 = vmatprep.subr.bf16.mxu0 0
    %2703 = vmatpush2.bf16.msra.mxu0 0
    %2704 = vmatprep.mubr.bf16.mxu0 0
    %2705 = vmatmul.mubr.bf16.gmra.mxu0 %v2666
    %v2706 = vpop.f32.mrf.mxu0
    %v2707 = vadd.f32 %v2519, %v2706
    %v2708 = vpop.f32.mrf.mxu0
    %v2709 = vpop.f32.mrf.mxu0
    %v2710 = vpop.f32.mrf.mxu0
    %2711 = vdwg.mxu0
    %2712 = vrot.lane.b32.xlu0 %v342, 64
    %v2713 = vpop.permute.xlu0 %2712
    %v2715 = vsel %vm1887, %v2065, 0
    %v2718 = vsel %vm2668, %v2713, 0
    %2720 = vmatprep.subr.bf16.mxu0 0
    %2721 = vmatpush1.bf16.msra.mxu0 0
    %2722 = vmatprep.subr.bf16.mxu0 0
    %2723 = vmatpush1.bf16.msra.mxu0 0
    %2724 = vmatprep.subr.bf16.mxu0 0
    %2725 = vmatpush1.bf16.msra.mxu0 0
    %2726 = vmatprep.subr.bf16.mxu0 0
    %2727 = vmatpush1.bf16.msra.mxu0 0
    %2728 = vmatprep.subr.bf16.mxu0 0
    %2729 = vmatpush1.bf16.msra.mxu0 0
    %2730 = vmatprep.subr.bf16.mxu0 0
    %2731 = vmatpush1.bf16.msra.mxu0 0
    %2732 = vmatprep.subr.bf16.mxu0 0
    %2733 = vmatpush1.bf16.msra.mxu0 0
    %2734 = vmatprep.subr.bf16.mxu0 0
    %2735 = vmatpush1.bf16.msra.mxu0 %v2718
    %2736 = vmatprep.subr.bf16.mxu0 0
    %2737 = vmatpush2.bf16.msra.mxu0 0
    %2738 = vmatprep.subr.bf16.mxu0 0
    %2739 = vmatpush2.bf16.msra.mxu0 0
    %2740 = vmatprep.subr.bf16.mxu0 0
    %2741 = vmatpush2.bf16.msra.mxu0 0
    %2742 = vmatprep.subr.bf16.mxu0 0
    %2743 = vmatpush2.bf16.msra.mxu0 0
    %2744 = vmatprep.subr.bf16.mxu0 0
    %2745 = vmatpush2.bf16.msra.mxu0 0
    %2746 = vmatprep.subr.bf16.mxu0 0
    %2747 = vmatpush2.bf16.msra.mxu0 0
    %2748 = vmatprep.subr.bf16.mxu0 0
    %2749 = vmatpush2.bf16.msra.mxu0 0
    %2750 = vmatprep.subr.bf16.mxu0 0
    %2751 = vmatpush2.bf16.msra.mxu0 0
    %2752 = vmatprep.mubr.bf16.mxu0 0
    %2753 = vmatmul.mubr.bf16.gmra.mxu0 %v2715
    %v2754 = vpop.f32.mrf.mxu0
    %v2755 = vadd.f32 %v2520, %v2754
    %v2756 = vpop.f32.mrf.mxu0
    %v2757 = vpop.f32.mrf.mxu0
    %v2758 = vpop.f32.mrf.mxu0
    %2759 = vdwg.mxu0
    %2760 = vrot.lane.b32.xlu0 %v343, 64
    %v2761 = vpop.permute.xlu0 %2760
    %v2763 = vsel %vm1887, %v2066, 0
    %v2766 = vsel %vm2668, %v2761, 0
    %2768 = vmatprep.subr.bf16.mxu0 0
    %2769 = vmatpush1.bf16.msra.mxu0 0
    %2770 = vmatprep.subr.bf16.mxu0 0
    %2771 = vmatpush1.bf16.msra.mxu0 0
    %2772 = vmatprep.subr.bf16.mxu0 0
    %2773 = vmatpush1.bf16.msra.mxu0 0
    %2774 = vmatprep.subr.bf16.mxu0 0
    %2775 = vmatpush1.bf16.msra.mxu0 0
    %2776 = vmatprep.subr.bf16.mxu0 0
    %2777 = vmatpush1.bf16.msra.mxu0 0
    %2778 = vmatprep.subr.bf16.mxu0 0
    %2779 = vmatpush1.bf16.msra.mxu0 0
    %2780 = vmatprep.subr.bf16.mxu0 0
    %2781 = vmatpush1.bf16.msra.mxu0 0
    %2782 = vmatprep.subr.bf16.mxu0 0
    %2783 = vmatpush1.bf16.msra.mxu0 %v2766
    %2784 = vmatprep.subr.bf16.mxu0 0
    %2785 = vmatpush2.bf16.msra.mxu0 0
    %2786 = vmatprep.subr.bf16.mxu0 0
    %2787 = vmatpush2.bf16.msra.mxu0 0
    %2788 = vmatprep.subr.bf16.mxu0 0
    %2789 = vmatpush2.bf16.msra.mxu0 0
    %2790 = vmatprep.subr.bf16.mxu0 0
    %2791 = vmatpush2.bf16.msra.mxu0 0
    %2792 = vmatprep.subr.bf16.mxu0 0
    %2793 = vmatpush2.bf16.msra.mxu0 0
    %2794 = vmatprep.subr.bf16.mxu0 0
    %2795 = vmatpush2.bf16.msra.mxu0 0
    %2796 = vmatprep.subr.bf16.mxu0 0
    %2797 = vmatpush2.bf16.msra.mxu0 0
    %2798 = vmatprep.subr.bf16.mxu0 0
    %2799 = vmatpush2.bf16.msra.mxu0 0
    %2800 = vmatprep.mubr.bf16.mxu0 0
    %2801 = vmatmul.mubr.bf16.gmra.mxu0 %v2763
    %v2802 = vpop.f32.mrf.mxu0
    %v2803 = vadd.f32 %v2521, %v2802
    %v2804 = vpop.f32.mrf.mxu0
    %v2805 = vpop.f32.mrf.mxu0
    %v2806 = vpop.f32.mrf.mxu0
    %2807 = vdwg.mxu0
    %2808 = vrot.lane.b32.xlu0 %v344, 64
    %v2809 = vpop.permute.xlu0 %2808
    %v2811 = vsel %vm1887, %v2067, 0
    %v2814 = vsel %vm2668, %v2809, 0
    %2816 = vmatprep.subr.bf16.mxu0 0
    %2817 = vmatpush1.bf16.msra.mxu0 0
    %2818 = vmatprep.subr.bf16.mxu0 0
    %2819 = vmatpush1.bf16.msra.mxu0 0
    %2820 = vmatprep.subr.bf16.mxu0 0
    %2821 = vmatpush1.bf16.msra.mxu0 0
    %2822 = vmatprep.subr.bf16.mxu0 0
    %2823 = vmatpush1.bf16.msra.mxu0 0
    %2824 = vmatprep.subr.bf16.mxu0 0
    %2825 = vmatpush1.bf16.msra.mxu0 0
    %2826 = vmatprep.subr.bf16.mxu0 0
    %2827 = vmatpush1.bf16.msra.mxu0 0
    %2828 = vmatprep.subr.bf16.mxu0 0
    %2829 = vmatpush1.bf16.msra.mxu0 0
    %2830 = vmatprep.subr.bf16.mxu0 0
    %2831 = vmatpush1.bf16.msra.mxu0 %v2814
    %2832 = vmatprep.subr.bf16.mxu0 0
    %2833 = vmatpush2.bf16.msra.mxu0 0
    %2834 = vmatprep.subr.bf16.mxu0 0
    %2835 = vmatpush2.bf16.msra.mxu0 0
    %2836 = vmatprep.subr.bf16.mxu0 0
    %2837 = vmatpush2.bf16.msra.mxu0 0
    %2838 = vmatprep.subr.bf16.mxu0 0
    %2839 = vmatpush2.bf16.msra.mxu0 0
    %2840 = vmatprep.subr.bf16.mxu0 0
    %2841 = vmatpush2.bf16.msra.mxu0 0
    %2842 = vmatprep.subr.bf16.mxu0 0
    %2843 = vmatpush2.bf16.msra.mxu0 0
    %2844 = vmatprep.subr.bf16.mxu0 0
    %2845 = vmatpush2.bf16.msra.mxu0 0
    %2846 = vmatprep.subr.bf16.mxu0 0
    %2847 = vmatpush2.bf16.msra.mxu0 0
    %2848 = vmatprep.mubr.bf16.mxu0 0
    %2849 = vmatmul.mubr.bf16.gmra.mxu0 %v2811
    %v2850 = vpop.f32.mrf.mxu0
    %v2851 = vadd.f32 %v2522, %v2850
    %v2852 = vpop.f32.mrf.mxu0
    %v2853 = vpop.f32.mrf.mxu0
    %v2854 = vpop.f32.mrf.mxu0
    %2855 = vdwg.mxu0
    %2856 = vrot.lane.b32.xlu0 %v345, 64
    %v2857 = vpop.permute.xlu0 %2856
    %v2859 = vsel %vm1887, %v2068, 0
    %v2862 = vsel %vm2668, %v2857, 0
    %2864 = vmatprep.subr.bf16.mxu0 0
    %2865 = vmatpush1.bf16.msra.mxu0 0
    %2866 = vmatprep.subr.bf16.mxu0 0
    %2867 = vmatpush1.bf16.msra.mxu0 0
    %2868 = vmatprep.subr.bf16.mxu0 0
    %2869 = vmatpush1.bf16.msra.mxu0 0
    %2870 = vmatprep.subr.bf16.mxu0 0
    %2871 = vmatpush1.bf16.msra.mxu0 0
    %2872 = vmatprep.subr.bf16.mxu0 0
    %2873 = vmatpush1.bf16.msra.mxu0 0
    %2874 = vmatprep.subr.bf16.mxu0 0
    %2875 = vmatpush1.bf16.msra.mxu0 0
    %2876 = vmatprep.subr.bf16.mxu0 0
    %2877 = vmatpush1.bf16.msra.mxu0 0
    %2878 = vmatprep.subr.bf16.mxu0 0
    %2879 = vmatpush1.bf16.msra.mxu0 %v2862
    %2880 = vmatprep.subr.bf16.mxu0 0
    %2881 = vmatpush2.bf16.msra.mxu0 0
    %2882 = vmatprep.subr.bf16.mxu0 0
    %2883 = vmatpush2.bf16.msra.mxu0 0
    %2884 = vmatprep.subr.bf16.mxu0 0
    %2885 = vmatpush2.bf16.msra.mxu0 0
    %2886 = vmatprep.subr.bf16.mxu0 0
    %2887 = vmatpush2.bf16.msra.mxu0 0
    %2888 = vmatprep.subr.bf16.mxu0 0
    %2889 = vmatpush2.bf16.msra.mxu0 0
    %2890 = vmatprep.subr.bf16.mxu0 0
    %2891 = vmatpush2.bf16.msra.mxu0 0
    %2892 = vmatprep.subr.bf16.mxu0 0
    %2893 = vmatpush2.bf16.msra.mxu0 0
    %2894 = vmatprep.subr.bf16.mxu0 0
    %2895 = vmatpush2.bf16.msra.mxu0 0
    %2896 = vmatprep.mubr.bf16.mxu0 0
    %2897 = vmatmul.mubr.bf16.gmra.mxu0 %v2859
    %v2898 = vpop.f32.mrf.mxu0
    %v2899 = vadd.f32 %v2523, %v2898
    %v2900 = vpop.f32.mrf.mxu0
    %v2901 = vpop.f32.mrf.mxu0
    %v2902 = vpop.f32.mrf.mxu0
    %2903 = vdwg.mxu0
    %2904 = vrot.lane.b32.xlu0 %v346, 64
    %v2905 = vpop.permute.xlu0 %2904
    %v2907 = vsel %vm1887, %v2069, 0
    %v2910 = vsel %vm2668, %v2905, 0
    %2912 = vmatprep.subr.bf16.mxu0 0
    %2913 = vmatpush1.bf16.msra.mxu0 0
    %2914 = vmatprep.subr.bf16.mxu0 0
    %2915 = vmatpush1.bf16.msra.mxu0 0
    %2916 = vmatprep.subr.bf16.mxu0 0
    %2917 = vmatpush1.bf16.msra.mxu0 0
    %2918 = vmatprep.subr.bf16.mxu0 0
    %2919 = vmatpush1.bf16.msra.mxu0 0
    %2920 = vmatprep.subr.bf16.mxu0 0
    %2921 = vmatpush1.bf16.msra.mxu0 0
    %2922 = vmatprep.subr.bf16.mxu0 0
    %2923 = vmatpush1.bf16.msra.mxu0 0
    %2924 = vmatprep.subr.bf16.mxu0 0
    %2925 = vmatpush1.bf16.msra.mxu0 0
    %2926 = vmatprep.subr.bf16.mxu0 0
    %2927 = vmatpush1.bf16.msra.mxu0 %v2910
    %2928 = vmatprep.subr.bf16.mxu0 0
    %2929 = vmatpush2.bf16.msra.mxu0 0
    %2930 = vmatprep.subr.bf16.mxu0 0
    %2931 = vmatpush2.bf16.msra.mxu0 0
    %2932 = vmatprep.subr.bf16.mxu0 0
    %2933 = vmatpush2.bf16.msra.mxu0 0
    %2934 = vmatprep.subr.bf16.mxu0 0
    %2935 = vmatpush2.bf16.msra.mxu0 0
    %2936 = vmatprep.subr.bf16.mxu0 0
    %2937 = vmatpush2.bf16.msra.mxu0 0
    %2938 = vmatprep.subr.bf16.mxu0 0
    %2939 = vmatpush2.bf16.msra.mxu0 0
    %2940 = vmatprep.subr.bf16.mxu0 0
    %2941 = vmatpush2.bf16.msra.mxu0 0
    %2942 = vmatprep.subr.bf16.mxu0 0
    %2943 = vmatpush2.bf16.msra.mxu0 0
    %2944 = vmatprep.mubr.bf16.mxu0 0
    %2945 = vmatmul.mubr.bf16.gmra.mxu0 %v2907
    %v2946 = vpop.f32.mrf.mxu0
    %v2947 = vadd.f32 %v2524, %v2946
    %v2948 = vpop.f32.mrf.mxu0
    %v2949 = vpop.f32.mrf.mxu0
    %v2950 = vpop.f32.mrf.mxu0
    %2951 = vdwg.mxu0
    %2952 = vrot.lane.b32.xlu0 %v347, 64
    %v2953 = vpop.permute.xlu0 %2952
    %v2955 = vsel %vm1887, %v2070, 0
    %v2958 = vsel %vm2668, %v2953, 0
    %2960 = vmatprep.subr.bf16.mxu0 0
    %2961 = vmatpush1.bf16.msra.mxu0 0
    %2962 = vmatprep.subr.bf16.mxu0 0
    %2963 = vmatpush1.bf16.msra.mxu0 0
    %2964 = vmatprep.subr.bf16.mxu0 0
    %2965 = vmatpush1.bf16.msra.mxu0 0
    %2966 = vmatprep.subr.bf16.mxu0 0
    %2967 = vmatpush1.bf16.msra.mxu0 0
    %2968 = vmatprep.subr.bf16.mxu0 0
    %2969 = vmatpush1.bf16.msra.mxu0 0
    %2970 = vmatprep.subr.bf16.mxu0 0
    %2971 = vmatpush1.bf16.msra.mxu0 0
    %2972 = vmatprep.subr.bf16.mxu0 0
    %2973 = vmatpush1.bf16.msra.mxu0 0
    %2974 = vmatprep.subr.bf16.mxu0 0
    %2975 = vmatpush1.bf16.msra.mxu0 %v2958
    %2976 = vmatprep.subr.bf16.mxu0 0
    %2977 = vmatpush2.bf16.msra.mxu0 0
    %2978 = vmatprep.subr.bf16.mxu0 0
    %2979 = vmatpush2.bf16.msra.mxu0 0
    %2980 = vmatprep.subr.bf16.mxu0 0
    %2981 = vmatpush2.bf16.msra.mxu0 0
    %2982 = vmatprep.subr.bf16.mxu0 0
    %2983 = vmatpush2.bf16.msra.mxu0 0
    %2984 = vmatprep.subr.bf16.mxu0 0
    %2985 = vmatpush2.bf16.msra.mxu0 0
    %2986 = vmatprep.subr.bf16.mxu0 0
    %2987 = vmatpush2.bf16.msra.mxu0 0
    %2988 = vmatprep.subr.bf16.mxu0 0
    %2989 = vmatpush2.bf16.msra.mxu0 0
    %2990 = vmatprep.subr.bf16.mxu0 0
    %2991 = vmatpush2.bf16.msra.mxu0 0
    %2992 = vmatprep.mubr.bf16.mxu0 0
    %2993 = vmatmul.mubr.bf16.gmra.mxu0 %v2955
    %v2994 = vpop.f32.mrf.mxu0
    %v2995 = vadd.f32 %v2525, %v2994
    %v2996 = vpop.f32.mrf.mxu0
    %v2997 = vpop.f32.mrf.mxu0
    %v2998 = vpop.f32.mrf.mxu0
    %2999 = vdwg.mxu0
    %3000 = vrot.lane.b32.xlu0 %v348, 64
    %v3001 = vpop.permute.xlu0 %3000
    %v3003 = vsel %vm1887, %v2071, 0
    %v3006 = vsel %vm2668, %v3001, 0
    %3008 = vmatprep.subr.bf16.mxu0 0
    %3009 = vmatpush1.bf16.msra.mxu0 0
    %3010 = vmatprep.subr.bf16.mxu0 0
    %3011 = vmatpush1.bf16.msra.mxu0 0
    %3012 = vmatprep.subr.bf16.mxu0 0
    %3013 = vmatpush1.bf16.msra.mxu0 0
    %3014 = vmatprep.subr.bf16.mxu0 0
    %3015 = vmatpush1.bf16.msra.mxu0 0
    %3016 = vmatprep.subr.bf16.mxu0 0
    %3017 = vmatpush1.bf16.msra.mxu0 0
    %3018 = vmatprep.subr.bf16.mxu0 0
    %3019 = vmatpush1.bf16.msra.mxu0 0
    %3020 = vmatprep.subr.bf16.mxu0 0
    %3021 = vmatpush1.bf16.msra.mxu0 0
    %3022 = vmatprep.subr.bf16.mxu0 0
    %3023 = vmatpush1.bf16.msra.mxu0 %v3006
    %3024 = vmatprep.subr.bf16.mxu0 0
    %3025 = vmatpush2.bf16.msra.mxu0 0
    %3026 = vmatprep.subr.bf16.mxu0 0
    %3027 = vmatpush2.bf16.msra.mxu0 0
    %3028 = vmatprep.subr.bf16.mxu0 0
    %3029 = vmatpush2.bf16.msra.mxu0 0
    %3030 = vmatprep.subr.bf16.mxu0 0
    %3031 = vmatpush2.bf16.msra.mxu0 0
    %3032 = vmatprep.subr.bf16.mxu0 0
    %3033 = vmatpush2.bf16.msra.mxu0 0
    %3034 = vmatprep.subr.bf16.mxu0 0
    %3035 = vmatpush2.bf16.msra.mxu0 0
    %3036 = vmatprep.subr.bf16.mxu0 0
    %3037 = vmatpush2.bf16.msra.mxu0 0
    %3038 = vmatprep.subr.bf16.mxu0 0
    %3039 = vmatpush2.bf16.msra.mxu0 0
    %3040 = vmatprep.mubr.bf16.mxu0 0
    %3041 = vmatmul.mubr.bf16.gmra.mxu0 %v3003
    %v3042 = vpop.f32.mrf.mxu0
    %v3043 = vadd.f32 %v2526, %v3042
    %v3044 = vpop.f32.mrf.mxu0
    %v3045 = vpop.f32.mrf.mxu0
    %v3046 = vpop.f32.mrf.mxu0
    %3047 = vdwg.mxu0
    %3048 = vrot.lane.b32.xlu0 %v349, 64
    %v3049 = vpop.permute.xlu0 %3048
    %v3051 = vsel %vm1887, %v2072, 0
    %v3054 = vsel %vm2668, %v3049, 0
    %3056 = vmatprep.subr.bf16.mxu0 0
    %3057 = vmatpush1.bf16.msra.mxu0 0
    %3058 = vmatprep.subr.bf16.mxu0 0
    %3059 = vmatpush1.bf16.msra.mxu0 0
    %3060 = vmatprep.subr.bf16.mxu0 0
    %3061 = vmatpush1.bf16.msra.mxu0 0
    %3062 = vmatprep.subr.bf16.mxu0 0
    %3063 = vmatpush1.bf16.msra.mxu0 0
    %3064 = vmatprep.subr.bf16.mxu0 0
    %3065 = vmatpush1.bf16.msra.mxu0 0
    %3066 = vmatprep.subr.bf16.mxu0 0
    %3067 = vmatpush1.bf16.msra.mxu0 0
    %3068 = vmatprep.subr.bf16.mxu0 0
    %3069 = vmatpush1.bf16.msra.mxu0 0
    %3070 = vmatprep.subr.bf16.mxu0 0
    %3071 = vmatpush1.bf16.msra.mxu0 %v3054
    %3072 = vmatprep.subr.bf16.mxu0 0
    %3073 = vmatpush2.bf16.msra.mxu0 0
    %3074 = vmatprep.subr.bf16.mxu0 0
    %3075 = vmatpush2.bf16.msra.mxu0 0
    %3076 = vmatprep.subr.bf16.mxu0 0
    %3077 = vmatpush2.bf16.msra.mxu0 0
    %3078 = vmatprep.subr.bf16.mxu0 0
    %3079 = vmatpush2.bf16.msra.mxu0 0
    %3080 = vmatprep.subr.bf16.mxu0 0
    %3081 = vmatpush2.bf16.msra.mxu0 0
    %3082 = vmatprep.subr.bf16.mxu0 0
    %3083 = vmatpush2.bf16.msra.mxu0 0
    %3084 = vmatprep.subr.bf16.mxu0 0
    %3085 = vmatpush2.bf16.msra.mxu0 0
    %3086 = vmatprep.subr.bf16.mxu0 0
    %3087 = vmatpush2.bf16.msra.mxu0 0
    %3088 = vmatprep.mubr.bf16.mxu0 0
    %3089 = vmatmul.mubr.bf16.gmra.mxu0 %v3051
    %v3090 = vpop.f32.mrf.mxu0
    %v3091 = vadd.f32 %v2655, %v3090
    %v3092 = vpop.f32.mrf.mxu0
    %v3093 = vpop.f32.mrf.mxu0
    %v3094 = vpop.f32.mrf.mxu0
    %3095 = vdwg.mxu0
    %3096 = vrot.lane.b32.xlu0 %v350, 64
    %v3097 = vpop.permute.xlu0 %3096
    %v3099 = vsel %vm1887, %v2073, 0
    %v3102 = vsel %vm2668, %v3097, 0
    %3104 = vmatprep.subr.bf16.mxu0 0
    %3105 = vmatpush1.bf16.msra.mxu0 0
    %3106 = vmatprep.subr.bf16.mxu0 0
    %3107 = vmatpush1.bf16.msra.mxu0 0
    %3108 = vmatprep.subr.bf16.mxu0 0
    %3109 = vmatpush1.bf16.msra.mxu0 0
    %3110 = vmatprep.subr.bf16.mxu0 0
    %3111 = vmatpush1.bf16.msra.mxu0 0
    %3112 = vmatprep.subr.bf16.mxu0 0
    %3113 = vmatpush1.bf16.msra.mxu0 0
    %3114 = vmatprep.subr.bf16.mxu0 0
    %3115 = vmatpush1.bf16.msra.mxu0 0
    %3116 = vmatprep.subr.bf16.mxu0 0
    %3117 = vmatpush1.bf16.msra.mxu0 0
    %3118 = vmatprep.subr.bf16.mxu0 0
    %3119 = vmatpush1.bf16.msra.mxu0 %v3102
    %3120 = vmatprep.subr.bf16.mxu0 0
    %3121 = vmatpush2.bf16.msra.mxu0 0
    %3122 = vmatprep.subr.bf16.mxu0 0
    %3123 = vmatpush2.bf16.msra.mxu0 0
    %3124 = vmatprep.subr.bf16.mxu0 0
    %3125 = vmatpush2.bf16.msra.mxu0 0
    %3126 = vmatprep.subr.bf16.mxu0 0
    %3127 = vmatpush2.bf16.msra.mxu0 0
    %3128 = vmatprep.subr.bf16.mxu0 0
    %3129 = vmatpush2.bf16.msra.mxu0 0
    %3130 = vmatprep.subr.bf16.mxu0 0
    %3131 = vmatpush2.bf16.msra.mxu0 0
    %3132 = vmatprep.subr.bf16.mxu0 0
    %3133 = vmatpush2.bf16.msra.mxu0 0
    %3134 = vmatprep.subr.bf16.mxu0 0
    %3135 = vmatpush2.bf16.msra.mxu0 0
    %3136 = vmatprep.mubr.bf16.mxu0 0
    %3137 = vmatmul.mubr.bf16.gmra.mxu0 %v3099
    %v3138 = vpop.f32.mrf.mxu0
    %v3139 = vadd.f32 %v2656, %v3138
    %v3140 = vpop.f32.mrf.mxu0
    %v3141 = vpop.f32.mrf.mxu0
    %v3142 = vpop.f32.mrf.mxu0
    %3143 = vdwg.mxu0
    %3144 = vrot.lane.b32.xlu0 %v351, 64
    %v3145 = vpop.permute.xlu0 %3144
    %v3147 = vsel %vm1887, %v2074, 0
    %v3150 = vsel %vm2668, %v3145, 0
    %3152 = vmatprep.subr.bf16.mxu0 0
    %3153 = vmatpush1.bf16.msra.mxu0 0
    %3154 = vmatprep.subr.bf16.mxu0 0
    %3155 = vmatpush1.bf16.msra.mxu0 0
    %3156 = vmatprep.subr.bf16.mxu0 0
    %3157 = vmatpush1.bf16.msra.mxu0 0
    %3158 = vmatprep.subr.bf16.mxu0 0
    %3159 = vmatpush1.bf16.msra.mxu0 0
    %3160 = vmatprep.subr.bf16.mxu0 0
    %3161 = vmatpush1.bf16.msra.mxu0 0
    %3162 = vmatprep.subr.bf16.mxu0 0
    %3163 = vmatpush1.bf16.msra.mxu0 0
    %3164 = vmatprep.subr.bf16.mxu0 0
    %3165 = vmatpush1.bf16.msra.mxu0 0
    %3166 = vmatprep.subr.bf16.mxu0 0
    %3167 = vmatpush1.bf16.msra.mxu0 %v3150
    %3168 = vmatprep.subr.bf16.mxu0 0
    %3169 = vmatpush2.bf16.msra.mxu0 0
    %3170 = vmatprep.subr.bf16.mxu0 0
    %3171 = vmatpush2.bf16.msra.mxu0 0
    %3172 = vmatprep.subr.bf16.mxu0 0
    %3173 = vmatpush2.bf16.msra.mxu0 0
    %3174 = vmatprep.subr.bf16.mxu0 0
    %3175 = vmatpush2.bf16.msra.mxu0 0
    %3176 = vmatprep.subr.bf16.mxu0 0
    %3177 = vmatpush2.bf16.msra.mxu0 0
    %3178 = vmatprep.subr.bf16.mxu0 0
    %3179 = vmatpush2.bf16.msra.mxu0 0
    %3180 = vmatprep.subr.bf16.mxu0 0
    %3181 = vmatpush2.bf16.msra.mxu0 0
    %3182 = vmatprep.subr.bf16.mxu0 0
    %3183 = vmatpush2.bf16.msra.mxu0 0
    %3184 = vmatprep.mubr.bf16.mxu0 0
    %3185 = vmatmul.mubr.bf16.gmra.mxu0 %v3147
    %v3186 = vpop.f32.mrf.mxu0
    %v3187 = vadd.f32 %v2657, %v3186
    %v3188 = vpop.f32.mrf.mxu0
    %v3189 = vpop.f32.mrf.mxu0
    %v3190 = vpop.f32.mrf.mxu0
    %3191 = vdwg.mxu0
    %3192 = vrot.lane.b32.xlu0 %v352, 64
    %v3193 = vpop.permute.xlu0 %3192
    %v3195 = vsel %vm1887, %v2075, 0
    %v3198 = vsel %vm2668, %v3193, 0
    %3200 = vmatprep.subr.bf16.mxu0 0
    %3201 = vmatpush1.bf16.msra.mxu0 0
    %3202 = vmatprep.subr.bf16.mxu0 0
    %3203 = vmatpush1.bf16.msra.mxu0 0
    %3204 = vmatprep.subr.bf16.mxu0 0
    %3205 = vmatpush1.bf16.msra.mxu0 0
    %3206 = vmatprep.subr.bf16.mxu0 0
    %3207 = vmatpush1.bf16.msra.mxu0 0
    %3208 = vmatprep.subr.bf16.mxu0 0
    %3209 = vmatpush1.bf16.msra.mxu0 0
    %3210 = vmatprep.subr.bf16.mxu0 0
    %3211 = vmatpush1.bf16.msra.mxu0 0
    %3212 = vmatprep.subr.bf16.mxu0 0
    %3213 = vmatpush1.bf16.msra.mxu0 0
    %3214 = vmatprep.subr.bf16.mxu0 0
    %3215 = vmatpush1.bf16.msra.mxu0 %v3198
    %3216 = vmatprep.subr.bf16.mxu0 0
    %3217 = vmatpush2.bf16.msra.mxu0 0
    %3218 = vmatprep.subr.bf16.mxu0 0
    %3219 = vmatpush2.bf16.msra.mxu0 0
    %3220 = vmatprep.subr.bf16.mxu0 0
    %3221 = vmatpush2.bf16.msra.mxu0 0
    %3222 = vmatprep.subr.bf16.mxu0 0
    %3223 = vmatpush2.bf16.msra.mxu0 0
    %3224 = vmatprep.subr.bf16.mxu0 0
    %3225 = vmatpush2.bf16.msra.mxu0 0
    %3226 = vmatprep.subr.bf16.mxu0 0
    %3227 = vmatpush2.bf16.msra.mxu0 0
    %3228 = vmatprep.subr.bf16.mxu0 0
    %3229 = vmatpush2.bf16.msra.mxu0 0
    %3230 = vmatprep.subr.bf16.mxu0 0
    %3231 = vmatpush2.bf16.msra.mxu0 0
    %3232 = vmatprep.mubr.bf16.mxu0 0
    %3233 = vmatmul.mubr.bf16.gmra.mxu0 %v3195
    %v3234 = vpop.f32.mrf.mxu0
    %v3235 = vadd.f32 %v2658, %v3234
    %v3236 = vpop.f32.mrf.mxu0
    %v3237 = vpop.f32.mrf.mxu0
    %v3238 = vpop.f32.mrf.mxu0
    %3239 = vdwg.mxu0
    %3240 = vrot.lane.b32.xlu0 %v353, 64
    %v3241 = vpop.permute.xlu0 %3240
    %v3243 = vsel %vm1887, %v2076, 0
    %v3246 = vsel %vm2668, %v3241, 0
    %3248 = vmatprep.subr.bf16.mxu0 0
    %3249 = vmatpush1.bf16.msra.mxu0 0
    %3250 = vmatprep.subr.bf16.mxu0 0
    %3251 = vmatpush1.bf16.msra.mxu0 0
    %3252 = vmatprep.subr.bf16.mxu0 0
    %3253 = vmatpush1.bf16.msra.mxu0 0
    %3254 = vmatprep.subr.bf16.mxu0 0
    %3255 = vmatpush1.bf16.msra.mxu0 0
    %3256 = vmatprep.subr.bf16.mxu0 0
    %3257 = vmatpush1.bf16.msra.mxu0 0
    %3258 = vmatprep.subr.bf16.mxu0 0
    %3259 = vmatpush1.bf16.msra.mxu0 0
    %3260 = vmatprep.subr.bf16.mxu0 0
    %3261 = vmatpush1.bf16.msra.mxu0 0
    %3262 = vmatprep.subr.bf16.mxu0 0
    %3263 = vmatpush1.bf16.msra.mxu0 %v3246
    %3264 = vmatprep.subr.bf16.mxu0 0
    %3265 = vmatpush2.bf16.msra.mxu0 0
    %3266 = vmatprep.subr.bf16.mxu0 0
    %3267 = vmatpush2.bf16.msra.mxu0 0
    %3268 = vmatprep.subr.bf16.mxu0 0
    %3269 = vmatpush2.bf16.msra.mxu0 0
    %3270 = vmatprep.subr.bf16.mxu0 0
    %3271 = vmatpush2.bf16.msra.mxu0 0
    %3272 = vmatprep.subr.bf16.mxu0 0
    %3273 = vmatpush2.bf16.msra.mxu0 0
    %3274 = vmatprep.subr.bf16.mxu0 0
    %3275 = vmatpush2.bf16.msra.mxu0 0
    %3276 = vmatprep.subr.bf16.mxu0 0
    %3277 = vmatpush2.bf16.msra.mxu0 0
    %3278 = vmatprep.subr.bf16.mxu0 0
    %3279 = vmatpush2.bf16.msra.mxu0 0
    %3280 = vmatprep.mubr.bf16.mxu0 0
    %3281 = vmatmul.mubr.bf16.gmra.mxu0 %v3243
    %v3282 = vpop.f32.mrf.mxu0
    %v3283 = vadd.f32 %v2659, %v3282
    %v3284 = vpop.f32.mrf.mxu0
    %v3285 = vpop.f32.mrf.mxu0
    %v3286 = vpop.f32.mrf.mxu0
    %3287 = vdwg.mxu0
    %3288 = vrot.lane.b32.xlu0 %v354, 64
    %v3289 = vpop.permute.xlu0 %3288
    %v3291 = vsel %vm1887, %v2077, 0
    %v3294 = vsel %vm2668, %v3289, 0
    %3296 = vmatprep.subr.bf16.mxu0 0
    %3297 = vmatpush1.bf16.msra.mxu0 0
    %3298 = vmatprep.subr.bf16.mxu0 0
    %3299 = vmatpush1.bf16.msra.mxu0 0
    %3300 = vmatprep.subr.bf16.mxu0 0
    %3301 = vmatpush1.bf16.msra.mxu0 0
    %3302 = vmatprep.subr.bf16.mxu0 0
    %3303 = vmatpush1.bf16.msra.mxu0 0
    %3304 = vmatprep.subr.bf16.mxu0 0
    %3305 = vmatpush1.bf16.msra.mxu0 0
    %3306 = vmatprep.subr.bf16.mxu0 0
    %3307 = vmatpush1.bf16.msra.mxu0 0
    %3308 = vmatprep.subr.bf16.mxu0 0
    %3309 = vmatpush1.bf16.msra.mxu0 0
    %3310 = vmatprep.subr.bf16.mxu0 0
    %3311 = vmatpush1.bf16.msra.mxu0 %v3294
    %3312 = vmatprep.subr.bf16.mxu0 0
    %3313 = vmatpush2.bf16.msra.mxu0 0
    %3314 = vmatprep.subr.bf16.mxu0 0
    %3315 = vmatpush2.bf16.msra.mxu0 0
    %3316 = vmatprep.subr.bf16.mxu0 0
    %3317 = vmatpush2.bf16.msra.mxu0 0
    %3318 = vmatprep.subr.bf16.mxu0 0
    %3319 = vmatpush2.bf16.msra.mxu0 0
    %3320 = vmatprep.subr.bf16.mxu0 0
    %3321 = vmatpush2.bf16.msra.mxu0 0
    %3322 = vmatprep.subr.bf16.mxu0 0
    %3323 = vmatpush2.bf16.msra.mxu0 0
    %3324 = vmatprep.subr.bf16.mxu0 0
    %3325 = vmatpush2.bf16.msra.mxu0 0
    %3326 = vmatprep.subr.bf16.mxu0 0
    %3327 = vmatpush2.bf16.msra.mxu0 0
    %3328 = vmatprep.mubr.bf16.mxu0 0
    %3329 = vmatmul.mubr.bf16.gmra.mxu0 %v3291
    %v3330 = vpop.f32.mrf.mxu0
    %v3331 = vadd.f32 %v2660, %v3330
    %v3332 = vpop.f32.mrf.mxu0
    %v3333 = vpop.f32.mrf.mxu0
    %v3334 = vpop.f32.mrf.mxu0
    %3335 = vdwg.mxu0
    %3336 = vrot.lane.b32.xlu0 %v355, 64
    %v3337 = vpop.permute.xlu0 %3336
    %v3339 = vsel %vm1887, %v2078, 0
    %v3342 = vsel %vm2668, %v3337, 0
    %3344 = vmatprep.subr.bf16.mxu0 0
    %3345 = vmatpush1.bf16.msra.mxu0 0
    %3346 = vmatprep.subr.bf16.mxu0 0
    %3347 = vmatpush1.bf16.msra.mxu0 0
    %3348 = vmatprep.subr.bf16.mxu0 0
    %3349 = vmatpush1.bf16.msra.mxu0 0
    %3350 = vmatprep.subr.bf16.mxu0 0
    %3351 = vmatpush1.bf16.msra.mxu0 0
    %3352 = vmatprep.subr.bf16.mxu0 0
    %3353 = vmatpush1.bf16.msra.mxu0 0
    %3354 = vmatprep.subr.bf16.mxu0 0
    %3355 = vmatpush1.bf16.msra.mxu0 0
    %3356 = vmatprep.subr.bf16.mxu0 0
    %3357 = vmatpush1.bf16.msra.mxu0 0
    %3358 = vmatprep.subr.bf16.mxu0 0
    %3359 = vmatpush1.bf16.msra.mxu0 %v3342
    %3360 = vmatprep.subr.bf16.mxu0 0
    %3361 = vmatpush2.bf16.msra.mxu0 0
    %3362 = vmatprep.subr.bf16.mxu0 0
    %3363 = vmatpush2.bf16.msra.mxu0 0
    %3364 = vmatprep.subr.bf16.mxu0 0
    %3365 = vmatpush2.bf16.msra.mxu0 0
    %3366 = vmatprep.subr.bf16.mxu0 0
    %3367 = vmatpush2.bf16.msra.mxu0 0
    %3368 = vmatprep.subr.bf16.mxu0 0
    %3369 = vmatpush2.bf16.msra.mxu0 0
    %3370 = vmatprep.subr.bf16.mxu0 0
    %3371 = vmatpush2.bf16.msra.mxu0 0
    %3372 = vmatprep.subr.bf16.mxu0 0
    %3373 = vmatpush2.bf16.msra.mxu0 0
    %3374 = vmatprep.subr.bf16.mxu0 0
    %3375 = vmatpush2.bf16.msra.mxu0 0
    %3376 = vmatprep.mubr.bf16.mxu0 0
    %3377 = vmatmul.mubr.bf16.gmra.mxu0 %v3339
    %v3378 = vpop.f32.mrf.mxu0
    %v3379 = vadd.f32 %v2661, %v3378
    %v3380 = vpop.f32.mrf.mxu0
    %v3381 = vpop.f32.mrf.mxu0
    %v3382 = vpop.f32.mrf.mxu0
    %3383 = vdwg.mxu0
    %3384 = vrot.lane.b32.xlu0 %v356, 64
    %v3385 = vpop.permute.xlu0 %3384
    %v3387 = vsel %vm1887, %v2079, 0
    %v3390 = vsel %vm2668, %v3385, 0
    %3392 = vmatprep.subr.bf16.mxu0 0
    %3393 = vmatpush1.bf16.msra.mxu0 0
    %3394 = vmatprep.subr.bf16.mxu0 0
    %3395 = vmatpush1.bf16.msra.mxu0 0
    %3396 = vmatprep.subr.bf16.mxu0 0
    %3397 = vmatpush1.bf16.msra.mxu0 0
    %3398 = vmatprep.subr.bf16.mxu0 0
    %3399 = vmatpush1.bf16.msra.mxu0 0
    %3400 = vmatprep.subr.bf16.mxu0 0
    %3401 = vmatpush1.bf16.msra.mxu0 0
    %3402 = vmatprep.subr.bf16.mxu0 0
    %3403 = vmatpush1.bf16.msra.mxu0 0
    %3404 = vmatprep.subr.bf16.mxu0 0
    %3405 = vmatpush1.bf16.msra.mxu0 0
    %3406 = vmatprep.subr.bf16.mxu0 0
    %3407 = vmatpush1.bf16.msra.mxu0 %v3390
    %3408 = vmatprep.subr.bf16.mxu0 0
    %3409 = vmatpush2.bf16.msra.mxu0 0
    %3410 = vmatprep.subr.bf16.mxu0 0
    %3411 = vmatpush2.bf16.msra.mxu0 0
    %3412 = vmatprep.subr.bf16.mxu0 0
    %3413 = vmatpush2.bf16.msra.mxu0 0
    %3414 = vmatprep.subr.bf16.mxu0 0
    %3415 = vmatpush2.bf16.msra.mxu0 0
    %3416 = vmatprep.subr.bf16.mxu0 0
    %3417 = vmatpush2.bf16.msra.mxu0 0
    %3418 = vmatprep.subr.bf16.mxu0 0
    %3419 = vmatpush2.bf16.msra.mxu0 0
    %3420 = vmatprep.subr.bf16.mxu0 0
    %3421 = vmatpush2.bf16.msra.mxu0 0
    %3422 = vmatprep.subr.bf16.mxu0 0
    %3423 = vmatpush2.bf16.msra.mxu0 0
    %3424 = vmatprep.mubr.bf16.mxu0 0
    %3425 = vmatmul.mubr.bf16.gmra.mxu0 %v3387
    %v3426 = vpop.f32.mrf.mxu0
    %v3427 = vadd.f32 %v2662, %v3426
    %v3428 = vpop.f32.mrf.mxu0
    %v3429 = vpop.f32.mrf.mxu0
    %v3430 = vpop.f32.mrf.mxu0
    %3431 = vdwg.mxu0
    %v3432 = vld [vmem:[%s8] sm:$0xf]
    %v3433 = vld [vmem:[%s8 + $0x4] sm:$0xf]
    %v3434 = vld [vmem:[%s8 + $0x8] sm:$0xf]
    %v3435 = vld [vmem:[%s8 + $0xc] sm:$0xf]
    %v3436 = vpack.c.bf16 %v2755, %v2707
    %v3437 = vpack.c.bf16 %v2851, %v2803
    %v3438 = vpack.c.bf16 %v2947, %v2899
    %v3439 = vpack.c.bf16 %v3043, %v2995
    %v3440 = vpack.c.bf16 %v3139, %v3091
    %v3441 = vpack.c.bf16 %v3235, %v3187
    %v3442 = vpack.c.bf16 %v3331, %v3283
    %v3443 = vpack.c.bf16 %v3427, %v3379
    %v3446 = vunpack.c.l.b16 %v3434
    %v3447 = vunpack.c.l.b16 %v3435
    %v3448 = vpack.c.b16 %v3447, %v3446
    %v3451 = vsel %vm531, %v3440, 0
    %v3454 = vsel %vm531, %v3441, 0
    %v3457 = vsel %vm531, %v3442, 0
    %v3460 = vsel %vm531, %v3443, 0
    %3462 = vmatprep.subr.bf16.mxu0 0
    %3463 = vmatpush1.bf16.msra.mxu0 0
    %3464 = vmatprep.subr.bf16.mxu0 0
    %3465 = vmatpush1.bf16.msra.mxu0 0
    %3466 = vmatprep.subr.bf16.mxu0 0
    %3467 = vmatpush1.bf16.msra.mxu0 0
    %3468 = vmatprep.subr.bf16.mxu0 0
    %3469 = vmatpush1.bf16.msra.mxu0 0
    %3470 = vmatprep.subr.bf16.mxu0 0
    %3471 = vmatpush1.bf16.msra.mxu0 0
    %3472 = vmatprep.subr.bf16.mxu0 0
    %3473 = vmatpush1.bf16.msra.mxu0 0
    %3474 = vmatprep.subr.bf16.mxu0 0
    %3475 = vmatpush1.bf16.msra.mxu0 0
    %3476 = vmatprep.subr.bf16.mxu0 0
    %3477 = vmatpush1.bf16.msra.mxu0 %v3448
    %3478 = vmatprep.subr.bf16.mxu0 0
    %3479 = vmatpush2.bf16.msra.mxu0 0
    %3480 = vmatprep.subr.bf16.mxu0 0
    %3481 = vmatpush2.bf16.msra.mxu0 0
    %3482 = vmatprep.subr.bf16.mxu0 0
    %3483 = vmatpush2.bf16.msra.mxu0 0
    %3484 = vmatprep.subr.bf16.mxu0 0
    %3485 = vmatpush2.bf16.msra.mxu0 0
    %3486 = vmatprep.subr.bf16.mxu0 0
    %3487 = vmatpush2.bf16.msra.mxu0 0
    %3488 = vmatprep.subr.bf16.mxu0 0
    %3489 = vmatpush2.bf16.msra.mxu0 0
    %3490 = vmatprep.subr.bf16.mxu0 0
    %3491 = vmatpush2.bf16.msra.mxu0 0
    %3492 = vmatprep.subr.bf16.mxu0 0
    %3493 = vmatpush2.bf16.msra.mxu0 0
    %3494 = vmatprep.mubr.bf16.mxu0 0
    %3495 = vmatmul.mubr.bf16.gmra.mxu0 %v3451
    %v3496 = vpop.f32.mrf.mxu0
    %v3497 = vadd.f32 0.0, %v3496
    %v3498 = vpop.f32.mrf.mxu0
    %v3499 = vpop.f32.mrf.mxu0
    %v3500 = vadd.f32 0.0, %v3499
    %v3501 = vpop.f32.mrf.mxu0
    %3502 = vmatprep.mubr.bf16.mxu0 0
    %3503 = vmatmul.mubr.bf16.gmra.mxu0 %v3454
    %v3504 = vpop.f32.mrf.mxu0
    %v3505 = vadd.f32 0.0, %v3504
    %v3506 = vpop.f32.mrf.mxu0
    %v3507 = vpop.f32.mrf.mxu0
    %v3508 = vadd.f32 0.0, %v3507
    %v3509 = vpop.f32.mrf.mxu0
    %3510 = vmatprep.mubr.bf16.mxu0 0
    %3511 = vmatmul.mubr.bf16.gmra.mxu0 %v3457
    %v3512 = vpop.f32.mrf.mxu0
    %v3513 = vadd.f32 0.0, %v3512
    %v3514 = vpop.f32.mrf.mxu0
    %v3515 = vpop.f32.mrf.mxu0
    %v3516 = vadd.f32 0.0, %v3515
    %v3517 = vpop.f32.mrf.mxu0
    %3518 = vmatprep.mubr.bf16.mxu0 0
    %3519 = vmatmul.mubr.bf16.gmra.mxu0 %v3460
    %v3520 = vpop.f32.mrf.mxu0
    %v3521 = vadd.f32 0.0, %v3520
    %v3522 = vpop.f32.mrf.mxu0
    %v3523 = vpop.f32.mrf.mxu0
    %v3524 = vadd.f32 0.0, %v3523
    %v3525 = vpop.f32.mrf.mxu0
    %3526 = vdwg.mxu0
    %v3529 = vunpack.c.l.b16 %v3432
    %v3530 = vunpack.c.l.b16 %v3433
    %v3531 = vpack.c.b16 %v3530, %v3529
    %v3534 = vsel %vm531, %v3436, 0
    %v3537 = vsel %vm531, %v3437, 0
    %v3540 = vsel %vm531, %v3438, 0
    %v3543 = vsel %vm531, %v3439, 0
    %3545 = vmatprep.subr.bf16.mxu0 0
    %3546 = vmatpush1.bf16.msra.mxu0 0
    %3547 = vmatprep.subr.bf16.mxu0 0
    %3548 = vmatpush1.bf16.msra.mxu0 0
    %3549 = vmatprep.subr.bf16.mxu0 0
    %3550 = vmatpush1.bf16.msra.mxu0 0
    %3551 = vmatprep.subr.bf16.mxu0 0
    %3552 = vmatpush1.bf16.msra.mxu0 0
    %3553 = vmatprep.subr.bf16.mxu0 0
    %3554 = vmatpush1.bf16.msra.mxu0 0
    %3555 = vmatprep.subr.bf16.mxu0 0
    %3556 = vmatpush1.bf16.msra.mxu0 0
    %3557 = vmatprep.subr.bf16.mxu0 0
    %3558 = vmatpush1.bf16.msra.mxu0 0
    %3559 = vmatprep.subr.bf16.mxu0 0
    %3560 = vmatpush1.bf16.msra.mxu0 %v3531
    %3561 = vmatprep.subr.bf16.mxu0 0
    %3562 = vmatpush2.bf16.msra.mxu0 0
    %3563 = vmatprep.subr.bf16.mxu0 0
    %3564 = vmatpush2.bf16.msra.mxu0 0
    %3565 = vmatprep.subr.bf16.mxu0 0
    %3566 = vmatpush2.bf16.msra.mxu0 0
    %3567 = vmatprep.subr.bf16.mxu0 0
    %3568 = vmatpush2.bf16.msra.mxu0 0
    %3569 = vmatprep.subr.bf16.mxu0 0
    %3570 = vmatpush2.bf16.msra.mxu0 0
    %3571 = vmatprep.subr.bf16.mxu0 0
    %3572 = vmatpush2.bf16.msra.mxu0 0
    %3573 = vmatprep.subr.bf16.mxu0 0
    %3574 = vmatpush2.bf16.msra.mxu0 0
    %3575 = vmatprep.subr.bf16.mxu0 0
    %3576 = vmatpush2.bf16.msra.mxu0 0
    %3577 = vmatprep.mubr.bf16.mxu0 0
    %3578 = vmatmul.mubr.bf16.gmra.mxu0 %v3534
    %v3579 = vpop.f32.mrf.mxu0
    %v3580 = vadd.f32 %v3497, %v3579
    %v3581 = vpop.f32.mrf.mxu0
    %v3582 = vpop.f32.mrf.mxu0
    %v3583 = vadd.f32 %v3500, %v3582
    %v3584 = vpop.f32.mrf.mxu0
    %3585 = vmatprep.mubr.bf16.mxu0 0
    %3586 = vmatmul.mubr.bf16.gmra.mxu0 %v3537
    %v3587 = vpop.f32.mrf.mxu0
    %v3588 = vadd.f32 %v3505, %v3587
    %v3589 = vpop.f32.mrf.mxu0
    %v3590 = vpop.f32.mrf.mxu0
    %v3591 = vadd.f32 %v3508, %v3590
    %v3592 = vpop.f32.mrf.mxu0
    %3593 = vmatprep.mubr.bf16.mxu0 0
    %3594 = vmatmul.mubr.bf16.gmra.mxu0 %v3540
    %v3595 = vpop.f32.mrf.mxu0
    %v3596 = vadd.f32 %v3513, %v3595
    %v3597 = vpop.f32.mrf.mxu0
    %v3598 = vpop.f32.mrf.mxu0
    %v3599 = vadd.f32 %v3516, %v3598
    %v3600 = vpop.f32.mrf.mxu0
    %3601 = vmatprep.mubr.bf16.mxu0 0
    %3602 = vmatmul.mubr.bf16.gmra.mxu0 %v3543
    %v3603 = vpop.f32.mrf.mxu0
    %v3604 = vadd.f32 %v3521, %v3603
    %v3605 = vpop.f32.mrf.mxu0
    %v3606 = vpop.f32.mrf.mxu0
    %v3607 = vadd.f32 %v3524, %v3606
    %v3608 = vpop.f32.mrf.mxu0
    %3609 = vdwg.mxu0
    %v3610 = vld [vmem:[%s9] sm:$0x1]
    %v3612 = vlaneseq
    %v3613 = vshrl.u32 %v3612, 7
    %v3614 = vsub.s32 0, %v3613
    %v3615 = vrot.slane %v3610, %v3614
    %v3617 = vadd.f32 %v3580, %v3615
    %v3618 = vadd.f32 %v3583, %v3615
    %v3619 = vadd.f32 %v3588, %v3615
    %v3620 = vadd.f32 %v3591, %v3615
    %v3621 = vadd.f32 %v3596, %v3615
    %v3622 = vadd.f32 %v3599, %v3615
    %v3623 = vadd.f32 %v3604, %v3615
    %v3624 = vadd.f32 %v3607, %v3615
    %v3625 = vadd.f32 %v197, %v3617
    %v3626 = vadd.f32 %v198, %v3618
    %v3627 = vadd.f32 %v199, %v3619
    %v3628 = vadd.f32 %v200, %v3620
    %v3629 = vadd.f32 %v201, %v3621
    %v3630 = vadd.f32 %v202, %v3622
    %v3631 = vadd.f32 %v203, %v3623
    %v3632 = vadd.f32 %v204, %v3624
    %v3633 = vld [vmem:[%s10] sm:$0x1]
    %v3634 = vld [vmem:[%s11] sm:$0x1]
    %v3635 = vsel %vm71, %v3625, 0.0
    %3636 = vadd.xlane.f32.xlu0 %v3635
    %v3637 = vpop.xlane.xlu0 %3636
    %v3638 = vsel %vm71, %v3626, 0.0
    %3639 = vadd.xlane.f32.xlu0 %v3638
    %v3640 = vpop.xlane.xlu0 %3639
    %v3641 = vsel %vm71, %v3627, 0.0
    %3642 = vadd.xlane.f32.xlu0 %v3641
    %v3643 = vpop.xlane.xlu0 %3642
    %v3644 = vsel %vm71, %v3628, 0.0
    %3645 = vadd.xlane.f32.xlu0 %v3644
    %v3646 = vpop.xlane.xlu0 %3645
    %v3647 = vsel %vm71, %v3629, 0.0
    %3648 = vadd.xlane.f32.xlu0 %v3647
    %v3649 = vpop.xlane.xlu0 %3648
    %v3650 = vsel %vm71, %v3630, 0.0
    %3651 = vadd.xlane.f32.xlu0 %v3650
    %v3652 = vpop.xlane.xlu0 %3651
    %v3653 = vsel %vm71, %v3631, 0.0
    %3654 = vadd.xlane.f32.xlu0 %v3653
    %v3655 = vpop.xlane.xlu0 %3654
    %v3656 = vsel %vm71, %v3632, 0.0
    %3657 = vadd.xlane.f32.xlu0 %v3656
    %v3658 = vpop.xlane.xlu0 %3657
    %v3659 = vmul.f32 %v3637, %v96
    %v3660 = vmul.f32 %v3640, %v96
    %v3661 = vmul.f32 %v3643, %v96
    %v3662 = vmul.f32 %v3646, %v96
    %v3663 = vmul.f32 %v3649, %v96
    %v3664 = vmul.f32 %v3652, %v96
    %v3665 = vmul.f32 %v3655, %v96
    %v3666 = vmul.f32 %v3658, %v96
    %v3667 = vsub.f32 %v3625, %v3659
    %v3668 = vsub.f32 %v3626, %v3660
    %v3669 = vsub.f32 %v3627, %v3661
    %v3670 = vsub.f32 %v3628, %v3662
    %v3671 = vsub.f32 %v3629, %v3663
    %v3672 = vsub.f32 %v3630, %v3664
    %v3673 = vsub.f32 %v3631, %v3665
    %v3674 = vsub.f32 %v3632, %v3666
    %v3675 = vmul.f32 %v3667, %v3667
    %v3676 = vmul.f32 %v3668, %v3668
    %v3677 = vmul.f32 %v3669, %v3669
    %v3678 = vmul.f32 %v3670, %v3670
    %v3679 = vmul.f32 %v3671, %v3671
    %v3680 = vmul.f32 %v3672, %v3672
    %v3681 = vmul.f32 %v3673, %v3673
    %v3682 = vmul.f32 %v3674, %v3674
    %v3683 = vsel %vm71, %v3675, 0.0
    %3684 = vadd.xlane.f32.xlu0 %v3683
    %v3685 = vpop.xlane.xlu0 %3684
    %v3686 = vsel %vm71, %v3676, 0.0
    %3687 = vadd.xlane.f32.xlu0 %v3686
    %v3688 = vpop.xlane.xlu0 %3687
    %v3689 = vsel %vm71, %v3677, 0.0
    %3690 = vadd.xlane.f32.xlu0 %v3689
    %v3691 = vpop.xlane.xlu0 %3690
    %v3692 = vsel %vm71, %v3678, 0.0
    %3693 = vadd.xlane.f32.xlu0 %v3692
    %v3694 = vpop.xlane.xlu0 %3693
    %v3695 = vsel %vm71, %v3679, 0.0
    %3696 = vadd.xlane.f32.xlu0 %v3695
    %v3697 = vpop.xlane.xlu0 %3696
    %v3698 = vsel %vm71, %v3680, 0.0
    %3699 = vadd.xlane.f32.xlu0 %v3698
    %v3700 = vpop.xlane.xlu0 %3699
    %v3701 = vsel %vm71, %v3681, 0.0
    %3702 = vadd.xlane.f32.xlu0 %v3701
    %v3703 = vpop.xlane.xlu0 %3702
    %v3704 = vsel %vm71, %v3682, 0.0
    %3705 = vadd.xlane.f32.xlu0 %v3704
    %v3706 = vpop.xlane.xlu0 %3705
    %v3707 = vmul.f32 %v3685, %v96
    %v3708 = vmul.f32 %v3688, %v96
    %v3709 = vmul.f32 %v3691, %v96
    %v3710 = vmul.f32 %v3694, %v96
    %v3711 = vmul.f32 %v3697, %v96
    %v3712 = vmul.f32 %v3700, %v96
    %v3713 = vmul.f32 %v3703, %v96
    %v3714 = vmul.f32 %v3706, %v96
    %v3715 = vadd.f32 %v3707, 1e-06
    %v3716 = vadd.f32 %v3708, 1e-06
    %v3717 = vadd.f32 %v3709, 1e-06
    %v3718 = vadd.f32 %v3710, 1e-06
    %v3719 = vadd.f32 %v3711, 1e-06
    %v3720 = vadd.f32 %v3712, 1e-06
    %v3721 = vadd.f32 %v3713, 1e-06
    %v3722 = vadd.f32 %v3714, 1e-06
    %v3723 = vrsqrt.pop %v3715
    %v3724 = vrsqrt.pop %v3716
    %v3725 = vrsqrt.pop %v3717
    %v3726 = vrsqrt.pop %v3718
    %v3727 = vrsqrt.pop %v3719
    %v3728 = vrsqrt.pop %v3720
    %v3729 = vrsqrt.pop %v3721
    %v3730 = vrsqrt.pop %v3722
    %v3731 = vmul.f32 %v3667, %v3723
    %v3732 = vmul.f32 %v3668, %v3724
    %v3733 = vmul.f32 %v3669, %v3725
    %v3734 = vmul.f32 %v3670, %v3726
    %v3735 = vmul.f32 %v3671, %v3727
    %v3736 = vmul.f32 %v3672, %v3728
    %v3737 = vmul.f32 %v3673, %v3729
    %v3738 = vmul.f32 %v3674, %v3730
    %v3740 = vlaneseq
    %v3741 = vshrl.u32 %v3740, 7
    %v3742 = vsub.s32 0, %v3741
    %v3743 = vrot.slane %v3633, %v3742
    %v3745 = vmul.f32 %v3731, %v3743
    %v3746 = vmul.f32 %v3732, %v3743
    %v3747 = vmul.f32 %v3733, %v3743
    %v3748 = vmul.f32 %v3734, %v3743
    %v3749 = vmul.f32 %v3735, %v3743
    %v3750 = vmul.f32 %v3736, %v3743
    %v3751 = vmul.f32 %v3737, %v3743
    %v3752 = vmul.f32 %v3738, %v3743
    %v3754 = vlaneseq
    %v3755 = vshrl.u32 %v3754, 7
    %v3756 = vsub.s32 0, %v3755
    %v3757 = vrot.slane %v3634, %v3756
    %v3759 = vadd.f32 %v3745, %v3757
    %v3760 = vadd.f32 %v3746, %v3757
    %v3761 = vadd.f32 %v3747, %v3757
    %v3762 = vadd.f32 %v3748, %v3757
    %v3763 = vadd.f32 %v3749, %v3757
    %v3764 = vadd.f32 %v3750, %v3757
    %v3765 = vadd.f32 %v3751, %v3757
    %v3766 = vadd.f32 %v3752, %v3757
    %v3767 = vpack.c.bf16 %v3760, %v3759
    %v3768 = vpack.c.bf16 %v3762, %v3761
    %v3769 = vpack.c.bf16 %v3764, %v3763
    %v3770 = vpack.c.bf16 %v3766, %v3765
    %v3771 = vld [vmem:[%s12] sm:$0xf]
    %v3772 = vld [vmem:[%s12 + $0x4] sm:$0xf]
    %v3773 = vld [vmem:[%s12 + $0x8] sm:$0xf]
    %v3774 = vld [vmem:[%s12 + $0xc] sm:$0xf]
    %v3775 = vld [vmem:[%s13] sm:$0x1]
    %v3777 = vlaneseq
    %v3778 = vshrl.u32 %v3777, 7
    %v3779 = vsub.s32 0, %v3778
    %v3780 = vrot.slane %v3775, %v3779
    %v3786 = vunpack.c.l.b16 %v3771
    %v3787 = vunpack.c.l.b16 %v3772
    %v3788 = vunpack.c.l.b16 %v3773
    %v3789 = vunpack.c.l.b16 %v3774
    %v3790 = vpack.c.b16 %v3787, %v3786
    %v3791 = vpack.c.b16 %v3789, %v3788
    %v3795 = vsel %vm71, %v3767, 0
    %v3798 = vsel %vm71, %v3768, 0
    %v3801 = vsel %vm71, %v3769, 0
    %v3804 = vsel %vm71, %v3770, 0
    %3806 = vmatprep.subr.bf16.mxu0 0
    %3807 = vmatpush1.bf16.msra.mxu0 0
    %3808 = vmatprep.subr.bf16.mxu0 0
    %3809 = vmatpush1.bf16.msra.mxu0 0
    %3810 = vmatprep.subr.bf16.mxu0 0
    %3811 = vmatpush1.bf16.msra.mxu0 0
    %3812 = vmatprep.subr.bf16.mxu0 0
    %3813 = vmatpush1.bf16.msra.mxu0 0
    %3814 = vmatprep.subr.bf16.mxu0 0
    %3815 = vmatpush1.bf16.msra.mxu0 0
    %3816 = vmatprep.subr.bf16.mxu0 0
    %3817 = vmatpush1.bf16.msra.mxu0 0
    %3818 = vmatprep.subr.bf16.mxu0 0
    %3819 = vmatpush1.bf16.msra.mxu0 %v3791
    %3820 = vmatprep.subr.bf16.mxu0 0
    %3821 = vmatpush1.bf16.msra.mxu0 %v3790
    %3822 = vmatprep.subr.bf16.mxu0 0
    %3823 = vmatpush2.bf16.msra.mxu0 0
    %3824 = vmatprep.subr.bf16.mxu0 0
    %3825 = vmatpush2.bf16.msra.mxu0 0
    %3826 = vmatprep.subr.bf16.mxu0 0
    %3827 = vmatpush2.bf16.msra.mxu0 0
    %3828 = vmatprep.subr.bf16.mxu0 0
    %3829 = vmatpush2.bf16.msra.mxu0 0
    %3830 = vmatprep.subr.bf16.mxu0 0
    %3831 = vmatpush2.bf16.msra.mxu0 0
    %3832 = vmatprep.subr.bf16.mxu0 0
    %3833 = vmatpush2.bf16.msra.mxu0 0
    %3834 = vmatprep.subr.bf16.mxu0 0
    %3835 = vmatpush2.bf16.msra.mxu0 0
    %3836 = vmatprep.subr.bf16.mxu0 0
    %3837 = vmatpush2.bf16.msra.mxu0 0
    %3838 = vmatprep.mubr.bf16.mxu0 0
    %3839 = vmatmul.mubr.bf16.gmra.mxu0 %v3795
    %v3840 = vpop.f32.mrf.mxu0
    %v3841 = vadd.f32 %v3780, %v3840
    %v3842 = vpop.f32.mrf.mxu0
    %v3843 = vpop.f32.mrf.mxu0
    %v3844 = vadd.f32 %v3780, %v3843
    %v3845 = vpop.f32.mrf.mxu0
    %3846 = vmatprep.mubr.bf16.mxu0 0
    %3847 = vmatmul.mubr.bf16.gmra.mxu0 %v3798
    %v3848 = vpop.f32.mrf.mxu0
    %v3849 = vadd.f32 %v3780, %v3848
    %v3850 = vpop.f32.mrf.mxu0
    %v3851 = vpop.f32.mrf.mxu0
    %v3852 = vadd.f32 %v3780, %v3851
    %v3853 = vpop.f32.mrf.mxu0
    %3854 = vmatprep.mubr.bf16.mxu0 0
    %3855 = vmatmul.mubr.bf16.gmra.mxu0 %v3801
    %v3856 = vpop.f32.mrf.mxu0
    %v3857 = vadd.f32 %v3780, %v3856
    %v3858 = vpop.f32.mrf.mxu0
    %v3859 = vpop.f32.mrf.mxu0
    %v3860 = vadd.f32 %v3780, %v3859
    %v3861 = vpop.f32.mrf.mxu0
    %3862 = vmatprep.mubr.bf16.mxu0 0
    %3863 = vmatmul.mubr.bf16.gmra.mxu0 %v3804
    %v3864 = vpop.f32.mrf.mxu0
    %v3865 = vadd.f32 %v3780, %v3864
    %v3866 = vpop.f32.mrf.mxu0
    %v3867 = vpop.f32.mrf.mxu0
    %v3868 = vadd.f32 %v3780, %v3867
    %v3869 = vpop.f32.mrf.mxu0
    %3870 = vdwg.mxu0
    %v3871 = vmax.f32 %v3841, 0.0
    %v3872 = vmax.f32 %v3844, 0.0
    %v3873 = vmax.f32 %v3849, 0.0
    %v3874 = vmax.f32 %v3852, 0.0
    %v3875 = vmax.f32 %v3857, 0.0
    %v3876 = vmax.f32 %v3860, 0.0
    %v3877 = vmax.f32 %v3865, 0.0
    %v3878 = vmax.f32 %v3868, 0.0
    %v3879 = vpack.c.bf16 %v3872, %v3871
    %v3880 = vpack.c.bf16 %v3874, %v3873
    %v3881 = vpack.c.bf16 %v3876, %v3875
    %v3882 = vpack.c.bf16 %v3878, %v3877
    %v3883 = vld [vmem:[%s14] sm:$0xf]
    %v3884 = vld [vmem:[%s14 + $0x4] sm:$0xf]
    %v3885 = vld [vmem:[%s14 + $0x8] sm:$0xf]
    %v3886 = vld [vmem:[%s14 + $0xc] sm:$0xf]
    %v3887 = vld [vmem:[%s14 + $0x10] sm:$0xf]
    %v3888 = vld [vmem:[%s14 + $0x14] sm:$0xf]
    %v3889 = vld [vmem:[%s14 + $0x18] sm:$0xf]
    %v3890 = vld [vmem:[%s14 + $0x1c] sm:$0xf]
    %v3891 = vld [vmem:[%s14 + $0x20] sm:$0xf]
    %v3892 = vld [vmem:[%s14 + $0x24] sm:$0xf]
    %v3893 = vld [vmem:[%s14 + $0x28] sm:$0xf]
    %v3894 = vld [vmem:[%s14 + $0x2c] sm:$0xf]
    %v3895 = vld [vmem:[%s14 + $0x30] sm:$0xf]
    %v3896 = vld [vmem:[%s14 + $0x34] sm:$0xf]
    %v3897 = vld [vmem:[%s14 + $0x38] sm:$0xf]
    %v3898 = vld [vmem:[%s14 + $0x3c] sm:$0xf]
    %v3899 = vld [vmem:[%s15] sm:$0x1]
    %v3901 = vlaneseq
    %v3902 = vshrl.u32 %v3901, 7
    %v3903 = vsub.s32 0, %v3902
    %v3904 = vrot.slane %v3899, %v3903
    %v3922 = vunpack.c.l.b16 %v3883
    %v3923 = vunpack.c.l.b16 %v3884
    %v3924 = vunpack.c.l.b16 %v3885
    %v3925 = vunpack.c.l.b16 %v3886
    %v3926 = vunpack.c.l.b16 %v3887
    %v3927 = vunpack.c.l.b16 %v3888
    %v3928 = vunpack.c.l.b16 %v3889
    %v3929 = vunpack.c.l.b16 %v3890
    %v3930 = vunpack.c.l.b16 %v3891
    %v3931 = vunpack.c.l.b16 %v3892
    %v3932 = vunpack.c.l.b16 %v3893
    %v3933 = vunpack.c.l.b16 %v3894
    %v3934 = vunpack.c.l.b16 %v3895
    %v3935 = vunpack.c.l.b16 %v3896
    %v3936 = vunpack.c.l.b16 %v3897
    %v3937 = vunpack.c.l.b16 %v3898
    %v3938 = vpack.c.b16 %v3923, %v3922
    %v3939 = vpack.c.b16 %v3925, %v3924
    %v3940 = vpack.c.b16 %v3927, %v3926
    %v3941 = vpack.c.b16 %v3929, %v3928
    %v3942 = vpack.c.b16 %v3931, %v3930
    %v3943 = vpack.c.b16 %v3933, %v3932
    %v3944 = vpack.c.b16 %v3935, %v3934
    %v3945 = vpack.c.b16 %v3937, %v3936
    %3954 = vmatprep.subr.bf16.mxu0 0
    %3955 = vmatpush1.bf16.msra.mxu0 %v3945
    %3956 = vmatprep.subr.bf16.mxu0 0
    %3957 = vmatpush1.bf16.msra.mxu0 %v3944
    %3958 = vmatprep.subr.bf16.mxu0 0
    %3959 = vmatpush1.bf16.msra.mxu0 %v3943
    %3960 = vmatprep.subr.bf16.mxu0 0
    %3961 = vmatpush1.bf16.msra.mxu0 %v3942
    %3962 = vmatprep.subr.bf16.mxu0 0
    %3963 = vmatpush1.bf16.msra.mxu0 %v3941
    %3964 = vmatprep.subr.bf16.mxu0 0
    %3965 = vmatpush1.bf16.msra.mxu0 %v3940
    %3966 = vmatprep.subr.bf16.mxu0 0
    %3967 = vmatpush1.bf16.msra.mxu0 %v3939
    %3968 = vmatprep.subr.bf16.mxu0 0
    %3969 = vmatpush1.bf16.msra.mxu0 %v3938
    %3970 = vmatprep.subr.bf16.mxu0 0
    %3971 = vmatpush2.bf16.msra.mxu0 0
    %3972 = vmatprep.subr.bf16.mxu0 0
    %3973 = vmatpush2.bf16.msra.mxu0 0
    %3974 = vmatprep.subr.bf16.mxu0 0
    %3975 = vmatpush2.bf16.msra.mxu0 0
    %3976 = vmatprep.subr.bf16.mxu0 0
    %3977 = vmatpush2.bf16.msra.mxu0 0
    %3978 = vmatprep.subr.bf16.mxu0 0
    %3979 = vmatpush2.bf16.msra.mxu0 0
    %3980 = vmatprep.subr.bf16.mxu0 0
    %3981 = vmatpush2.bf16.msra.mxu0 0
    %3982 = vmatprep.subr.bf16.mxu0 0
    %3983 = vmatpush2.bf16.msra.mxu0 0
    %3984 = vmatprep.subr.bf16.mxu0 0
    %3985 = vmatpush2.bf16.msra.mxu0 0
    %3986 = vmatprep.mubr.bf16.mxu0 0
    %3987 = vmatmul.mubr.bf16.gmra.mxu0 %v3879
    %v3988 = vpop.f32.mrf.mxu0
    %v3989 = vadd.f32 %v3904, %v3988
    %v3990 = vpop.f32.mrf.mxu0
    %v3991 = vpop.f32.mrf.mxu0
    %v3992 = vadd.f32 %v3904, %v3991
    %v3993 = vpop.f32.mrf.mxu0
    %3994 = vmatprep.mubr.bf16.mxu0 0
    %3995 = vmatmul.mubr.bf16.gmra.mxu0 %v3880
    %v3996 = vpop.f32.mrf.mxu0
    %v3997 = vadd.f32 %v3904, %v3996
    %v3998 = vpop.f32.mrf.mxu0
    %v3999 = vpop.f32.mrf.mxu0
    %v4000 = vadd.f32 %v3904, %v3999
    %v4001 = vpop.f32.mrf.mxu0
    %4002 = vmatprep.mubr.bf16.mxu0 0
    %4003 = vmatmul.mubr.bf16.gmra.mxu0 %v3881
    %v4004 = vpop.f32.mrf.mxu0
    %v4005 = vadd.f32 %v3904, %v4004
    %v4006 = vpop.f32.mrf.mxu0
    %v4007 = vpop.f32.mrf.mxu0
    %v4008 = vadd.f32 %v3904, %v4007
    %v4009 = vpop.f32.mrf.mxu0
    %4010 = vmatprep.mubr.bf16.mxu0 0
    %4011 = vmatmul.mubr.bf16.gmra.mxu0 %v3882
    %v4012 = vpop.f32.mrf.mxu0
    %v4013 = vadd.f32 %v3904, %v4012
    %v4014 = vpop.f32.mrf.mxu0
    %v4015 = vpop.f32.mrf.mxu0
    %v4016 = vadd.f32 %v3904, %v4015
    %v4017 = vpop.f32.mrf.mxu0
    %4018 = vdwg.mxu0
    %v4019 = vadd.f32 %v3759, %v3989
    %v4020 = vadd.f32 %v3760, %v3992
    %v4021 = vadd.f32 %v3761, %v3997
    %v4022 = vadd.f32 %v3762, %v4000
    %v4023 = vadd.f32 %v3763, %v4005
    %v4024 = vadd.f32 %v3764, %v4008
    %v4025 = vadd.f32 %v3765, %v4013
    %v4026 = vadd.f32 %v3766, %v4016
    %v4027 = vld [vmem:[%s16] sm:$0x1]
    %v4028 = vld [vmem:[%s17] sm:$0x1]
    %v4029 = vsel %vm71, %v4019, 0.0
    %4030 = vadd.xlane.f32.xlu0 %v4029
    %v4031 = vpop.xlane.xlu0 %4030
    %v4032 = vsel %vm71, %v4020, 0.0
    %4033 = vadd.xlane.f32.xlu0 %v4032
    %v4034 = vpop.xlane.xlu0 %4033
    %v4035 = vsel %vm71, %v4021, 0.0
    %4036 = vadd.xlane.f32.xlu0 %v4035
    %v4037 = vpop.xlane.xlu0 %4036
    %v4038 = vsel %vm71, %v4022, 0.0
    %4039 = vadd.xlane.f32.xlu0 %v4038
    %v4040 = vpop.xlane.xlu0 %4039
    %v4041 = vsel %vm71, %v4023, 0.0
    %4042 = vadd.xlane.f32.xlu0 %v4041
    %v4043 = vpop.xlane.xlu0 %4042
    %v4044 = vsel %vm71, %v4024, 0.0
    %4045 = vadd.xlane.f32.xlu0 %v4044
    %v4046 = vpop.xlane.xlu0 %4045
    %v4047 = vsel %vm71, %v4025, 0.0
    %4048 = vadd.xlane.f32.xlu0 %v4047
    %v4049 = vpop.xlane.xlu0 %4048
    %v4050 = vsel %vm71, %v4026, 0.0
    %4051 = vadd.xlane.f32.xlu0 %v4050
    %v4052 = vpop.xlane.xlu0 %4051
    %v4053 = vmul.f32 %v4031, %v96
    %v4054 = vmul.f32 %v4034, %v96
    %v4055 = vmul.f32 %v4037, %v96
    %v4056 = vmul.f32 %v4040, %v96
    %v4057 = vmul.f32 %v4043, %v96
    %v4058 = vmul.f32 %v4046, %v96
    %v4059 = vmul.f32 %v4049, %v96
    %v4060 = vmul.f32 %v4052, %v96
    %v4061 = vsub.f32 %v4019, %v4053
    %v4062 = vsub.f32 %v4020, %v4054
    %v4063 = vsub.f32 %v4021, %v4055
    %v4064 = vsub.f32 %v4022, %v4056
    %v4065 = vsub.f32 %v4023, %v4057
    %v4066 = vsub.f32 %v4024, %v4058
    %v4067 = vsub.f32 %v4025, %v4059
    %v4068 = vsub.f32 %v4026, %v4060
    %v4069 = vmul.f32 %v4061, %v4061
    %v4070 = vmul.f32 %v4062, %v4062
    %v4071 = vmul.f32 %v4063, %v4063
    %v4072 = vmul.f32 %v4064, %v4064
    %v4073 = vmul.f32 %v4065, %v4065
    %v4074 = vmul.f32 %v4066, %v4066
    %v4075 = vmul.f32 %v4067, %v4067
    %v4076 = vmul.f32 %v4068, %v4068
    %v4077 = vsel %vm71, %v4069, 0.0
    %4078 = vadd.xlane.f32.xlu0 %v4077
    %v4079 = vpop.xlane.xlu0 %4078
    %v4080 = vsel %vm71, %v4070, 0.0
    %4081 = vadd.xlane.f32.xlu0 %v4080
    %v4082 = vpop.xlane.xlu0 %4081
    %v4083 = vsel %vm71, %v4071, 0.0
    %4084 = vadd.xlane.f32.xlu0 %v4083
    %v4085 = vpop.xlane.xlu0 %4084
    %v4086 = vsel %vm71, %v4072, 0.0
    %4087 = vadd.xlane.f32.xlu0 %v4086
    %v4088 = vpop.xlane.xlu0 %4087
    %v4089 = vsel %vm71, %v4073, 0.0
    %4090 = vadd.xlane.f32.xlu0 %v4089
    %v4091 = vpop.xlane.xlu0 %4090
    %v4092 = vsel %vm71, %v4074, 0.0
    %4093 = vadd.xlane.f32.xlu0 %v4092
    %v4094 = vpop.xlane.xlu0 %4093
    %v4095 = vsel %vm71, %v4075, 0.0
    %4096 = vadd.xlane.f32.xlu0 %v4095
    %v4097 = vpop.xlane.xlu0 %4096
    %v4098 = vsel %vm71, %v4076, 0.0
    %4099 = vadd.xlane.f32.xlu0 %v4098
    %v4100 = vpop.xlane.xlu0 %4099
    %v4101 = vmul.f32 %v4079, %v96
    %v4102 = vmul.f32 %v4082, %v96
    %v4103 = vmul.f32 %v4085, %v96
    %v4104 = vmul.f32 %v4088, %v96
    %v4105 = vmul.f32 %v4091, %v96
    %v4106 = vmul.f32 %v4094, %v96
    %v4107 = vmul.f32 %v4097, %v96
    %v4108 = vmul.f32 %v4100, %v96
    %v4109 = vadd.f32 %v4101, 1e-06
    %v4110 = vadd.f32 %v4102, 1e-06
    %v4111 = vadd.f32 %v4103, 1e-06
    %v4112 = vadd.f32 %v4104, 1e-06
    %v4113 = vadd.f32 %v4105, 1e-06
    %v4114 = vadd.f32 %v4106, 1e-06
    %v4115 = vadd.f32 %v4107, 1e-06
    %v4116 = vadd.f32 %v4108, 1e-06
    %v4117 = vrsqrt.pop %v4109
    %v4118 = vrsqrt.pop %v4110
    %v4119 = vrsqrt.pop %v4111
    %v4120 = vrsqrt.pop %v4112
    %v4121 = vrsqrt.pop %v4113
    %v4122 = vrsqrt.pop %v4114
    %v4123 = vrsqrt.pop %v4115
    %v4124 = vrsqrt.pop %v4116
    %v4125 = vmul.f32 %v4061, %v4117
    %v4126 = vmul.f32 %v4062, %v4118
    %v4127 = vmul.f32 %v4063, %v4119
    %v4128 = vmul.f32 %v4064, %v4120
    %v4129 = vmul.f32 %v4065, %v4121
    %v4130 = vmul.f32 %v4066, %v4122
    %v4131 = vmul.f32 %v4067, %v4123
    %v4132 = vmul.f32 %v4068, %v4124
    %v4134 = vlaneseq
    %v4135 = vshrl.u32 %v4134, 7
    %v4136 = vsub.s32 0, %v4135
    %v4137 = vrot.slane %v4027, %v4136
    %v4139 = vmul.f32 %v4125, %v4137
    %v4140 = vmul.f32 %v4126, %v4137
    %v4141 = vmul.f32 %v4127, %v4137
    %v4142 = vmul.f32 %v4128, %v4137
    %v4143 = vmul.f32 %v4129, %v4137
    %v4144 = vmul.f32 %v4130, %v4137
    %v4145 = vmul.f32 %v4131, %v4137
    %v4146 = vmul.f32 %v4132, %v4137
    %v4148 = vlaneseq
    %v4149 = vshrl.u32 %v4148, 7
    %v4150 = vsub.s32 0, %v4149
    %v4151 = vrot.slane %v4028, %v4150
    %v4153 = vadd.f32 %v4139, %v4151
    %v4154 = vadd.f32 %v4140, %v4151
    %v4155 = vadd.f32 %v4141, %v4151
    %v4156 = vadd.f32 %v4142, %v4151
    %v4157 = vadd.f32 %v4143, %v4151
    %v4158 = vadd.f32 %v4144, %v4151
    %v4159 = vadd.f32 %v4145, %v4151
    %v4160 = vadd.f32 %v4146, %v4151
    %v4161 = vsel %vm71, %v4153, -inf
    %v4162 = vrot.slane %v4161, 4
    %v4163 = vmax.f32 %v4161, %v4162
    %v4164 = vrot.slane %v4163, 2
    %v4165 = vmax.f32 %v4163, %v4164
    %v4166 = vrot.slane %v4165, 1
    %v4167 = vmax.f32 %v4165, %v4166
    %v4168 = vsel %vm71, %v4154, -inf
    %v4169 = vrot.slane %v4168, 4
    %v4170 = vmax.f32 %v4168, %v4169
    %v4171 = vrot.slane %v4170, 2
    %v4172 = vmax.f32 %v4170, %v4171
    %v4173 = vrot.slane %v4172, 1
    %v4174 = vmax.f32 %v4172, %v4173
    %v4175 = vsel %vm71, %v4155, -inf
    %v4176 = vrot.slane %v4175, 4
    %v4177 = vmax.f32 %v4175, %v4176
    %v4178 = vrot.slane %v4177, 2
    %v4179 = vmax.f32 %v4177, %v4178
    %v4180 = vrot.slane %v4179, 1
    %v4181 = vmax.f32 %v4179, %v4180
    %v4182 = vsel %vm71, %v4156, -inf
    %v4183 = vrot.slane %v4182, 4
    %v4184 = vmax.f32 %v4182, %v4183
    %v4185 = vrot.slane %v4184, 2
    %v4186 = vmax.f32 %v4184, %v4185
    %v4187 = vrot.slane %v4186, 1
    %v4188 = vmax.f32 %v4186, %v4187
    %v4189 = vsel %vm71, %v4157, -inf
    %v4190 = vrot.slane %v4189, 4
    %v4191 = vmax.f32 %v4189, %v4190
    %v4192 = vrot.slane %v4191, 2
    %v4193 = vmax.f32 %v4191, %v4192
    %v4194 = vrot.slane %v4193, 1
    %v4195 = vmax.f32 %v4193, %v4194
    %v4196 = vsel %vm71, %v4158, -inf
    %v4197 = vrot.slane %v4196, 4
    %v4198 = vmax.f32 %v4196, %v4197
    %v4199 = vrot.slane %v4198, 2
    %v4200 = vmax.f32 %v4198, %v4199
    %v4201 = vrot.slane %v4200, 1
    %v4202 = vmax.f32 %v4200, %v4201
    %v4203 = vsel %vm71, %v4159, -inf
    %v4204 = vrot.slane %v4203, 4
    %v4205 = vmax.f32 %v4203, %v4204
    %v4206 = vrot.slane %v4205, 2
    %v4207 = vmax.f32 %v4205, %v4206
    %v4208 = vrot.slane %v4207, 1
    %v4209 = vmax.f32 %v4207, %v4208
    %v4210 = vsel %vm71, %v4160, -inf
    %v4211 = vrot.slane %v4210, 4
    %v4212 = vmax.f32 %v4210, %v4211
    %v4213 = vrot.slane %v4212, 2
    %v4214 = vmax.f32 %v4212, %v4213
    %v4215 = vrot.slane %v4214, 1
    %v4216 = vmax.f32 %v4214, %v4215
    %vm4225 = vcmask 1041409
    %v4226 = vsel %vm4225, %v4174, %v4167
    %vm4227 = vcmask 1042434
    %v4228 = vsel %vm4227, %v4181, %v4226
    %vm4229 = vcmask 1043459
    %v4230 = vsel %vm4229, %v4188, %v4228
    %vm4231 = vcmask 1044484
    %v4232 = vsel %vm4231, %v4195, %v4230
    %vm4233 = vcmask 1045509
    %v4234 = vsel %vm4233, %v4202, %v4232
    %vm4235 = vcmask 1046534
    %v4236 = vsel %vm4235, %v4209, %v4234
    %vm4237 = vcmask 1047559
    %v4238 = vsel %vm4237, %v4216, %v4236
    %4240 = vst.msk [vmem:[#allocation2] sm:$0xff] %vm71, %v4238
    // Predicated region
    $region74: #{tpu_custom_call.1} parent=1 // pred_check
      _
    $region75: #{tpu_custom_call.1} parent=1 // pred_check_branch
      %4242 = sbr.rel (0) target = $region77
    $region76: #{tpu_custom_call.1} parent=1 // pred_region
      %s4244 = ssub.s32 128, 128
      %4245 = vsyncadd [#allocation3], %s4244
      %s4247 = sshll.u32 [#allocation2], 4
      %s4248 = int_to_ptr.vmem [resolvable:$true] %s4247
      %4250 = dma.vmem_to_hbm [thread:$0]  %s4248, 128, %s18, [#allocation3]
    $region77: #{tpu_custom_call.1} parent=1 // pred_fallthru
      _
    // Predicated region
    $region78: #{tpu_custom_call.1} parent=1 // pred_check
      _
    $region79: #{tpu_custom_call.1} parent=1 // pred_check_branch
      %4252 = sbr.rel (0) target = $region81
    $region80: #{tpu_custom_call.1} parent=1 // pred_region
      %4253 = dma.done [#allocation3], 128
    $region81: #{tpu_custom_call.1} parent=1 // pred_fallthru
      _
    %4254 = vsyncpa [#allocation3], 1

</llo_original>
